<compile_context>
chip_gen: v7x
topology: tpu7x:2x2x1
jax: 0.10.0
libtpu: 0.0.40
codegen_flags: <defaults>
</compile_context>

<pallas_src>
import math

import jax
import jax.numpy as jnp
from jax import lax
from jax.experimental import pallas as pl
from jax.experimental.pallas import tpu as pltpu

LN_EPS = 1e-5  # PyTorch LayerNorm default


# ----------------------------- packed-param layout -----------------------------
def _build_layout(C, F):
    """Row layout of the small-parameter slab (width = max(3C, F, 128))."""
    entries = [
        ("wqkvT", (C, 3 * C)),   # in_proj weight, pre-transposed: x @ WqkvT
        ("bqkv",  (1, 3 * C)),
        ("woT",   (C, C)),       # out_proj weight, pre-transposed
        ("bo",    (1, C)),
        ("ln1w",  (1, C)),
        ("ln1b",  (1, C)),
        ("w1T",   (C, F)),       # linear1, pre-transposed
        ("b1",    (1, F)),
        ("w2T",   (F, C)),       # linear2, pre-transposed
        ("b2",    (1, C)),
        ("ln2w",  (1, C)),
        ("ln2b",  (1, C)),
    ]
    layout, r = {}, 0
    for name, shp in entries:
        layout[name] = (r, shp)
        r += shp[0]
    rows = ((r + 7) // 8) * 8
    width = max(3 * C, F, 128)
    return layout, rows, width


def _pack_slab(params, layout, rows, width):
    slab = jnp.zeros((rows, width), jnp.float32)
    for name, (r, (nr, nc)) in layout.items():
        slab = slab.at[r:r + nr, 0:nc].set(params[name].reshape(nr, nc))
    return slab


# --------------------------------- kernel ---------------------------------
def _layer_norm(x, w, b):
    m = jnp.mean(x, axis=-1, keepdims=True)
    v = jnp.mean((x - m) ** 2, axis=-1, keepdims=True)
    return (x - m) * lax.rsqrt(v + LN_EPS) * w + b


def _make_kernel(B, S, C, H, F, TN, layout):
    hd = C // H
    scale = 1.0 / math.sqrt(hd)

    def kernel(x_ref, slab_ref, w3_ref, bboth_ref, out_ref, h2_ref):
        j = pl.program_id(0)

        def param(name):
            r, (nr, nc) = layout[name]
            return slab_ref[r:r + nr, 0:nc]

        # ----- step 0 only: transformer encoder layer on all B*S tokens -----
        @pl.when(j == 0)
        def _():
            wqkvT = param("wqkvT"); bqkv = param("bqkv")
            woT = param("woT");     bo = param("bo")
            ln1w = param("ln1w");   ln1b = param("ln1b")
            w1T = param("w1T");     b1 = param("b1")
            w2T = param("w2T");     b2 = param("b2")
            ln2w = param("ln2w");   ln2b = param("ln2b")

            x = x_ref[...]                                        # (B*S, C)
            qkv = jnp.dot(x, wqkvT,
                          preferred_element_type=jnp.float32) + bqkv   # (B*S, 3C)

            # multi-head self-attention (dropout = identity), per (batch, head)
            attn_rows = []
            for b in range(B):
                r0, r1 = b * S, (b + 1) * S
                acc_b = None
                for h in range(H):
                    q = qkv[r0:r1, h * hd:(h + 1) * hd] * scale
                    k = qkv[r0:r1, C + h * hd:C + (h + 1) * hd]
                    v = qkv[r0:r1, 2 * C + h * hd:2 * C + (h + 1) * hd]
                    sc = jnp.einsum("qd,kd->qk", q, k,
                                    preferred_element_type=jnp.float32)   # (S, S)
                    sc = sc - jnp.max(sc, axis=-1, keepdims=True)
                    p = jnp.exp(sc)
                    p = p * pl.reciprocal(jnp.sum(p, axis=-1, keepdims=True),
                                          approx=True)
                    o = jnp.dot(p, v, preferred_element_type=jnp.float32)  # (S, hd)
                    # concat(heads) @ Wo^T == sum_h o_h @ Wo^T[h*hd:(h+1)*hd, :]
                    term = jnp.dot(o, woT[h * hd:(h + 1) * hd, :],
                                   preferred_element_type=jnp.float32)
                    acc_b = term if acc_b is None else acc_b + term
                attn_rows.append(acc_b)
            attn = jnp.concatenate(attn_rows, axis=0) + bo        # (B*S, C)

            h1 = _layer_norm(x + attn, ln1w, ln1b)

            # feed-forward (relu), batched over all tokens
            ff = jnp.dot(
                jnp.maximum(jnp.dot(h1, w1T, preferred_element_type=jnp.float32)
                            + b1, 0.0),
                w2T, preferred_element_type=jnp.float32) + b2
            h2_ref[...] = _layer_norm(h1 + ff, ln2w, ln2b)

        # ----- every step: one column tile of fused fc_mu / fc_log_sigma -----
        # flatten(h2) @ W3[:, tile] + bias[tile], decomposed over the sequence
        # axis so no sublane->lane reshape is ever materialized:
        #   out[b, :] = sum_s h2[b*S + s, :] @ W3[s*C:(s+1)*C, tile]
        h2 = h2_ref[...]                                          # (B*S, C)
        acc = jnp.zeros((B, TN), jnp.float32)
        for s in range(S):
            rows = jnp.concatenate(
                [h2[b * S + s: b * S + s + 1, :] for b in range(B)], axis=0)  # (B, C)
            acc = acc + jnp.dot(rows, w3_ref[s * C:(s + 1) * C, :],
                                preferred_element_type=jnp.float32)
        out_ref[...] = acc + bboth_ref[...]                       # lane-dense (B, TN)

    return kernel


# --------------------------------- wrapper ---------------------------------
def vte_forward(x, params, *, nheads, col_tile=None):
    B, S, C = x.shape
    assert C % nheads == 0
    L = S * C
    F = params["w1T"].shape[1]
    layout, rows, width = _build_layout(C, F)

    TN = col_tile if col_tile is not None else L        # column tile of fused fc
    assert (2 * L) % TN == 0 and TN % 128 == 0
    NT = (2 * L) // TN

    slab = _pack_slab(params, layout, rows, width)                       # (rows, width)
    w3 = jnp.concatenate([params["mu_wT"], params["ls_wT"]], axis=1)     # (L, 2L)
    bboth = jnp.concatenate([params["mu_b"], params["ls_b"]])[None, :]   # (1, 2L)
    x2d = x.reshape(B * S, C)

    kernel = _make_kernel(B, S, C, nheads, F, TN, layout)

    out = pl.pallas_call(
        kernel,
        grid=(NT,),
        in_specs=[
            pl.BlockSpec((B * S, C), lambda j: (0, 0)),
            pl.BlockSpec((rows, width), lambda j: (0, 0)),
            pl.BlockSpec((L, TN), lambda j: (0, j)),     # streamed column tiles
            pl.BlockSpec((1, TN), lambda j: (0, j)),
        ],
        out_specs=pl.BlockSpec((B, TN), lambda j: (0, j)),
        out_shape=jax.ShapeDtypeStruct((B, 2 * L), jnp.float32),
        scratch_shapes=[pltpu.VMEM((B * S, C), jnp.float32)],   # h2 across steps
        compiler_params=pltpu.CompilerParams(dimension_semantics=("arbitrary",)),
    )(x2d, slab, w3, bboth)

    return out[:, :L], out[:, L:]


# ----------------------------- pure-JAX reference -----------------------------
def reference_forward(x, params, *, nheads):
    B, S, C = x.shape
    H, hd, L = nheads, C // nheads, S * C

    def ln(t, w, b):
        m = t.mean(-1, keepdims=True)
        v = ((t - m) ** 2).mean(-1, keepdims=True)
        return (t - m) / jnp.sqrt(v + LN_EPS) * w + b

    qkv = x @ params["wqkvT"] + params["bqkv"]
    q, k, v = qkv[..., :C], qkv[..., C:2 * C], qkv[..., 2 * C:]
    heads = lambda t: t.reshape(B, S, H, hd).transpose(0, 2, 1, 3)
    qh, kh, vh = heads(q), heads(k), heads(v)
    s = jnp.einsum("bhqd,bhkd->bhqk", qh, kh) / math.sqrt(hd)
    p = jax.nn.softmax(s, axis=-1)
    o = jnp.einsum("bhqk,bhkd->bhqd", p, vh).transpose(0, 2, 1, 3).reshape(B, S, C)
    attn = o @ params["woT"] + params["bo"]
    h1 = ln(x + attn, params["ln1w"], params["ln1b"])
    ff = jnp.maximum(h1 @ params["w1T"] + params["b1"], 0.0) @ params["w2T"] + params["b2"]
    h2 = ln(h1 + ff, params["ln2w"], params["ln2b"])
    flat = h2.reshape(B, L)
    mu = flat @ params["mu_wT"] + params["mu_b"]
    ls = flat @ params["ls_wT"] + params["ls_b"]
    return mu, ls


def init_params(key, S, C, F):
    """Synthetic parameters. Linear weights are stored pre-transposed (x @ W^T)."""
    L = S * C
    ks = jax.random.split(key, 12)
    rnd = lambda k, shape, sc=0.1: jax.random.normal(k, shape, jnp.float32) * sc
    p = {
        "wqkvT": rnd(ks[0], (C, 3 * C)),
        "bqkv":  rnd(ks[1], (1, 3 * C)),
        "woT":   rnd(ks[2], (C, C)),
        "bo":    rnd(ks[3], (1, C)),
        "ln1w":  jnp.ones((1, C), jnp.float32),
        "ln1b":  jnp.zeros((1, C), jnp.float32),
        "w1T":   rnd(ks[4], (C, F)),
        "b1":    rnd(ks[5], (1, F)),
        "w2T":   rnd(ks[6], (F, C)),
        "b2":    rnd(ks[7], (1, C)),
        "ln2w":  jnp.ones((1, C), jnp.float32),
        "ln2b":  jnp.zeros((1, C), jnp.float32),
        "mu_wT": rnd(ks[8], (L, L), 0.02),
        "ls_wT": rnd(ks[9], (L, L), 0.02),
        "mu_b":  rnd(ks[10], (L,)),
        "ls_b":  rnd(ks[11], (L,)),
    }
    return p


if __name__ == "__main__":
    # Small consistent config (module defaults are self-inconsistent):
    # batch=2, seq=8, channels=64, nheads=4, ff_dim=32  ->  latent L = 512
    B, S, C, H, F = 2, 8, 64, 4, 32
    key = jax.random.PRNGKey(0)
    kx, kp = jax.random.split(key)

    x = jax.random.normal(kx, (B, S, C), dtype=jnp.float32)
    params = init_params(kp, S, C, F)

    mu, log_sigma = vte_forward(x, params, nheads=H)
    jax.block_until_ready((mu, log_sigma))

    assert mu.shape == (B, S * C)
    assert log_sigma.shape == (B, S * C)

    mu_ref, ls_ref = reference_forward(x, params, nheads=H)
    assert jnp.allclose(mu, mu_ref, rtol=5e-2, atol=5e-2)
    assert jnp.allclose(log_sigma, ls_ref, rtol=5e-2, atol=5e-2)

    print("KERNEL_OK")
</pallas_src>

<mosaic_0001>
module attributes {stable_mosaic.version = 11 : i64} {
  func.func @kernel(%arg0: i32, %arg1: memref<16x64xf32, #tpu.memory_space<vmem>>, %arg2: memref<232x192xf32, #tpu.memory_space<vmem>>, %arg3: memref<512x512xf32, #tpu.memory_space<vmem>>, %arg4: memref<1x512xf32, #tpu.memory_space<vmem>>, %arg5: memref<2x512xf32, #tpu.memory_space<vmem>>, %arg6: memref<16x64xf32, #tpu.memory_space<vmem>>) attributes {dimension_semantics = [#tpu.dimension_semantics<arbitrary>], iteration_bounds = array<i64: 2>, scalar_prefetch = 0 : i64, scratch_operands = 1 : i64, tpu.core_type = #tpu.core_type<tc>, window_params = [{pipeline_mode = #tpu.pipeline_mode<synchronous>, transform_indices = @transform_0, window_bounds = array<i64: 16, 64>}, {pipeline_mode = #tpu.pipeline_mode<synchronous>, transform_indices = @transform_1, window_bounds = array<i64: 232, 192>}, {transform_indices = @transform_2, window_bounds = array<i64: 512, 512>}, {transform_indices = @transform_3, window_bounds = array<i64: 1, 512>}, {transform_indices = @transform_4, window_bounds = array<i64: 2, 512>}]} {
    %c0_i32 = arith.constant 0 : i32
    %0 = arith.cmpi eq, %arg0, %c0_i32 : i32
    %1 = arith.extui %0 : i1 to i32
    %c0_i32_0 = arith.constant 0 : i32
    %2 = arith.cmpi ne, %1, %c0_i32_0 : i32
    scf.if %2 {
      %c0_23 = arith.constant 0 : index
      %c0_24 = arith.constant 0 : index
      %57 = vector.load %arg2[%c0_23, %c0_24] : memref<232x192xf32, #tpu.memory_space<vmem>>, vector<64x192xf32>
      %c64_25 = arith.constant 64 : index
      %c0_26 = arith.constant 0 : index
      %58 = vector.load %arg2[%c64_25, %c0_26] : memref<232x192xf32, #tpu.memory_space<vmem>>, vector<1x192xf32>
      %c65 = arith.constant 65 : index
      %c0_27 = arith.constant 0 : index
      %59 = vector.load %arg2[%c65, %c0_27] : memref<232x192xf32, #tpu.memory_space<vmem>>, vector<64x64xf32>
      %c129 = arith.constant 129 : index
      %c0_28 = arith.constant 0 : index
      %60 = vector.load %arg2[%c129, %c0_28] : memref<232x192xf32, #tpu.memory_space<vmem>>, vector<1x64xf32>
      %c130 = arith.constant 130 : index
      %c0_29 = arith.constant 0 : index
      %61 = vector.load %arg2[%c130, %c0_29] : memref<232x192xf32, #tpu.memory_space<vmem>>, vector<1x64xf32>
      %c131 = arith.constant 131 : index
      %c0_30 = arith.constant 0 : index
      %62 = vector.load %arg2[%c131, %c0_30] : memref<232x192xf32, #tpu.memory_space<vmem>>, vector<1x64xf32>
      %c132 = arith.constant 132 : index
      %c0_31 = arith.constant 0 : index
      %63 = vector.load %arg2[%c132, %c0_31] : memref<232x192xf32, #tpu.memory_space<vmem>>, vector<64x32xf32>
      %c196 = arith.constant 196 : index
      %c0_32 = arith.constant 0 : index
      %64 = vector.load %arg2[%c196, %c0_32] : memref<232x192xf32, #tpu.memory_space<vmem>>, vector<1x32xf32>
      %c197 = arith.constant 197 : index
      %c0_33 = arith.constant 0 : index
      %65 = vector.load %arg2[%c197, %c0_33] : memref<232x192xf32, #tpu.memory_space<vmem>>, vector<32x64xf32>
      %c229 = arith.constant 229 : index
      %c0_34 = arith.constant 0 : index
      %66 = vector.load %arg2[%c229, %c0_34] : memref<232x192xf32, #tpu.memory_space<vmem>>, vector<1x64xf32>
      %c230 = arith.constant 230 : index
      %c0_35 = arith.constant 0 : index
      %67 = vector.load %arg2[%c230, %c0_35] : memref<232x192xf32, #tpu.memory_space<vmem>>, vector<1x64xf32>
      %c231 = arith.constant 231 : index
      %c0_36 = arith.constant 0 : index
      %68 = vector.load %arg2[%c231, %c0_36] : memref<232x192xf32, #tpu.memory_space<vmem>>, vector<1x64xf32>
      %c0_37 = arith.constant 0 : index
      %c0_38 = arith.constant 0 : index
      %69 = vector.load %arg1[%c0_37, %c0_38] : memref<16x64xf32, #tpu.memory_space<vmem>>, vector<16x64xf32>
      %cst_39 = arith.constant dense<0.000000e+00> : vector<16x192xf32>
      %70 = tpu.matmul %69, %57, %cst_39 {dimension_numbers = #tpu.dot_dimension_numbers<[1], [0], [0], [1], [0, 0, 1, 1], [], []>} : vector<16x64xf32>, vector<64x192xf32>, vector<16x192xf32> -> vector<16x192xf32>
      %71 = vector.broadcast %58 : vector<1x192xf32> to vector<16x192xf32>
      %72 = arith.addf %70, %71 : vector<16x192xf32>
      %73 = vector.extract_strided_slice %72 {offsets = [0, 0], sizes = [8, 16], strides = [1, 1]} : vector<16x192xf32> to vector<8x16xf32>
      %cst_40 = arith.constant 2.500000e-01 : f32
      %74 = vector.broadcast %cst_40 : f32 to vector<8x16xf32>
      %75 = arith.mulf %73, %74 : vector<8x16xf32>
      %76 = vector.extract_strided_slice %72 {offsets = [0, 64], sizes = [8, 16], strides = [1, 1]} : vector<16x192xf32> to vector<8x16xf32>
      %77 = vector.extract_strided_slice %72 {offsets = [0, 128], sizes = [8, 16], strides = [1, 1]} : vector<16x192xf32> to vector<8x16xf32>
      "tpu.trace_start"() <{level = 10 : i32, message = "qd,kd->qk"}> : () -> ()
      %cst_41 = arith.constant dense<0.000000e+00> : vector<8x8xf32>
      %78 = tpu.matmul %75, %76, %cst_41 {dimension_numbers = #tpu.dot_dimension_numbers<[1], [1], [0], [0], [0, 0, 1, 0], [], []>} : vector<8x16xf32>, vector<8x16xf32>, vector<8x8xf32> -> vector<8x8xf32>
      "tpu.trace_stop"() : () -> ()
      %cst_42 = arith.constant dense<0xFF800000> : vector<8xf32>
      %79 = vector.multi_reduction <maximumf>, %78, %cst_42 [1] : vector<8x8xf32> to vector<8xf32>
      %80 = vector.shape_cast %79 : vector<8xf32> to vector<8x1xf32>
      %81 = vector.broadcast %80 : vector<8x1xf32> to vector<8x8xf32>
      %82 = arith.subf %78, %81 : vector<8x8xf32>
      %83 = math.exp %82 : vector<8x8xf32>
      %cst_43 = arith.constant dense<0.000000e+00> : vector<8xf32>
      %84 = vector.multi_reduction <add>, %83, %cst_43 [1] : vector<8x8xf32> to vector<8xf32>
      %85 = vector.shape_cast %84 : vector<8xf32> to vector<8x1xf32>
      %86 = tpu.reciprocal %85 {approx = true} : vector<8x1xf32> -> vector<8x1xf32>
      %87 = vector.broadcast %86 : vector<8x1xf32> to vector<8x8xf32>
      %88 = arith.mulf %83, %87 : vector<8x8xf32>
      %cst_44 = arith.constant dense<0.000000e+00> : vector<8x16xf32>
      %89 = tpu.matmul %88, %77, %cst_44 {dimension_numbers = #tpu.dot_dimension_numbers<[1], [0], [0], [1], [0, 0, 1, 1], [], []>} : vector<8x8xf32>, vector<8x16xf32>, vector<8x16xf32> -> vector<8x16xf32>
      %90 = vector.extract_strided_slice %59 {offsets = [0, 0], sizes = [16, 64], strides = [1, 1]} : vector<64x64xf32> to vector<16x64xf32>
      %cst_45 = arith.constant dense<0.000000e+00> : vector<8x64xf32>
      %91 = tpu.matmul %89, %90, %cst_45 {dimension_numbers = #tpu.dot_dimension_numbers<[1], [0], [0], [1], [0, 0, 1, 1], [], []>} : vector<8x16xf32>, vector<16x64xf32>, vector<8x64xf32> -> vector<8x64xf32>
      %92 = vector.extract_strided_slice %72 {offsets = [0, 16], sizes = [8, 16], strides = [1, 1]} : vector<16x192xf32> to vector<8x16xf32>
      %cst_46 = arith.constant 2.500000e-01 : f32
      %93 = vector.broadcast %cst_46 : f32 to vector<8x16xf32>
      %94 = arith.mulf %92, %93 : vector<8x16xf32>
      %95 = vector.extract_strided_slice %72 {offsets = [0, 80], sizes = [8, 16], strides = [1, 1]} : vector<16x192xf32> to vector<8x16xf32>
      %96 = vector.extract_strided_slice %72 {offsets = [0, 144], sizes = [8, 16], strides = [1, 1]} : vector<16x192xf32> to vector<8x16xf32>
      "tpu.trace_start"() <{level = 10 : i32, message = "qd,kd->qk"}> : () -> ()
      %cst_47 = arith.constant dense<0.000000e+00> : vector<8x8xf32>
      %97 = tpu.matmul %94, %95, %cst_47 {dimension_numbers = #tpu.dot_dimension_numbers<[1], [1], [0], [0], [0, 0, 1, 0], [], []>} : vector<8x16xf32>, vector<8x16xf32>, vector<8x8xf32> -> vector<8x8xf32>
      "tpu.trace_stop"() : () -> ()
      %cst_48 = arith.constant dense<0xFF800000> : vector<8xf32>
      %98 = vector.multi_reduction <maximumf>, %97, %cst_48 [1] : vector<8x8xf32> to vector<8xf32>
      %99 = vector.shape_cast %98 : vector<8xf32> to vector<8x1xf32>
      %100 = vector.broadcast %99 : vector<8x1xf32> to vector<8x8xf32>
      %101 = arith.subf %97, %100 : vector<8x8xf32>
      %102 = math.exp %101 : vector<8x8xf32>
      %cst_49 = arith.constant dense<0.000000e+00> : vector<8xf32>
      %103 = vector.multi_reduction <add>, %102, %cst_49 [1] : vector<8x8xf32> to vector<8xf32>
      %104 = vector.shape_cast %103 : vector<8xf32> to vector<8x1xf32>
      %105 = tpu.reciprocal %104 {approx = true} : vector<8x1xf32> -> vector<8x1xf32>
      %106 = vector.broadcast %105 : vector<8x1xf32> to vector<8x8xf32>
      %107 = arith.mulf %102, %106 : vector<8x8xf32>
      %cst_50 = arith.constant dense<0.000000e+00> : vector<8x16xf32>
      %108 = tpu.matmul %107, %96, %cst_50 {dimension_numbers = #tpu.dot_dimension_numbers<[1], [0], [0], [1], [0, 0, 1, 1], [], []>} : vector<8x8xf32>, vector<8x16xf32>, vector<8x16xf32> -> vector<8x16xf32>
      %109 = vector.extract_strided_slice %59 {offsets = [16, 0], sizes = [16, 64], strides = [1, 1]} : vector<64x64xf32> to vector<16x64xf32>
      %cst_51 = arith.constant dense<0.000000e+00> : vector<8x64xf32>
      %110 = tpu.matmul %108, %109, %cst_51 {dimension_numbers = #tpu.dot_dimension_numbers<[1], [0], [0], [1], [0, 0, 1, 1], [], []>} : vector<8x16xf32>, vector<16x64xf32>, vector<8x64xf32> -> vector<8x64xf32>
      %111 = arith.addf %91, %110 : vector<8x64xf32>
      %112 = vector.extract_strided_slice %72 {offsets = [0, 32], sizes = [8, 16], strides = [1, 1]} : vector<16x192xf32> to vector<8x16xf32>
      %cst_52 = arith.constant 2.500000e-01 : f32
      %113 = vector.broadcast %cst_52 : f32 to vector<8x16xf32>
      %114 = arith.mulf %112, %113 : vector<8x16xf32>
      %115 = vector.extract_strided_slice %72 {offsets = [0, 96], sizes = [8, 16], strides = [1, 1]} : vector<16x192xf32> to vector<8x16xf32>
      %116 = vector.extract_strided_slice %72 {offsets = [0, 160], sizes = [8, 16], strides = [1, 1]} : vector<16x192xf32> to vector<8x16xf32>
      "tpu.trace_start"() <{level = 10 : i32, message = "qd,kd->qk"}> : () -> ()
      %cst_53 = arith.constant dense<0.000000e+00> : vector<8x8xf32>
      %117 = tpu.matmul %114, %115, %cst_53 {dimension_numbers = #tpu.dot_dimension_numbers<[1], [1], [0], [0], [0, 0, 1, 0], [], []>} : vector<8x16xf32>, vector<8x16xf32>, vector<8x8xf32> -> vector<8x8xf32>
      "tpu.trace_stop"() : () -> ()
      %cst_54 = arith.constant dense<0xFF800000> : vector<8xf32>
      %118 = vector.multi_reduction <maximumf>, %117, %cst_54 [1] : vector<8x8xf32> to vector<8xf32>
      %119 = vector.shape_cast %118 : vector<8xf32> to vector<8x1xf32>
      %120 = vector.broadcast %119 : vector<8x1xf32> to vector<8x8xf32>
      %121 = arith.subf %117, %120 : vector<8x8xf32>
      %122 = math.exp %121 : vector<8x8xf32>
      %cst_55 = arith.constant dense<0.000000e+00> : vector<8xf32>
      %123 = vector.multi_reduction <add>, %122, %cst_55 [1] : vector<8x8xf32> to vector<8xf32>
      %124 = vector.shape_cast %123 : vector<8xf32> to vector<8x1xf32>
      %125 = tpu.reciprocal %124 {approx = true} : vector<8x1xf32> -> vector<8x1xf32>
      %126 = vector.broadcast %125 : vector<8x1xf32> to vector<8x8xf32>
      %127 = arith.mulf %122, %126 : vector<8x8xf32>
      %cst_56 = arith.constant dense<0.000000e+00> : vector<8x16xf32>
      %128 = tpu.matmul %127, %116, %cst_56 {dimension_numbers = #tpu.dot_dimension_numbers<[1], [0], [0], [1], [0, 0, 1, 1], [], []>} : vector<8x8xf32>, vector<8x16xf32>, vector<8x16xf32> -> vector<8x16xf32>
      %129 = vector.extract_strided_slice %59 {offsets = [32, 0], sizes = [16, 64], strides = [1, 1]} : vector<64x64xf32> to vector<16x64xf32>
      %cst_57 = arith.constant dense<0.000000e+00> : vector<8x64xf32>
      %130 = tpu.matmul %128, %129, %cst_57 {dimension_numbers = #tpu.dot_dimension_numbers<[1], [0], [0], [1], [0, 0, 1, 1], [], []>} : vector<8x16xf32>, vector<16x64xf32>, vector<8x64xf32> -> vector<8x64xf32>
      %131 = arith.addf %111, %130 : vector<8x64xf32>
      %132 = vector.extract_strided_slice %72 {offsets = [0, 48], sizes = [8, 16], strides = [1, 1]} : vector<16x192xf32> to vector<8x16xf32>
      %cst_58 = arith.constant 2.500000e-01 : f32
      %133 = vector.broadcast %cst_58 : f32 to vector<8x16xf32>
      %134 = arith.mulf %132, %133 : vector<8x16xf32>
      %135 = vector.extract_strided_slice %72 {offsets = [0, 112], sizes = [8, 16], strides = [1, 1]} : vector<16x192xf32> to vector<8x16xf32>
      %136 = vector.extract_strided_slice %72 {offsets = [0, 176], sizes = [8, 16], strides = [1, 1]} : vector<16x192xf32> to vector<8x16xf32>
      "tpu.trace_start"() <{level = 10 : i32, message = "qd,kd->qk"}> : () -> ()
      %cst_59 = arith.constant dense<0.000000e+00> : vector<8x8xf32>
      %137 = tpu.matmul %134, %135, %cst_59 {dimension_numbers = #tpu.dot_dimension_numbers<[1], [1], [0], [0], [0, 0, 1, 0], [], []>} : vector<8x16xf32>, vector<8x16xf32>, vector<8x8xf32> -> vector<8x8xf32>
      "tpu.trace_stop"() : () -> ()
      %cst_60 = arith.constant dense<0xFF800000> : vector<8xf32>
      %138 = vector.multi_reduction <maximumf>, %137, %cst_60 [1] : vector<8x8xf32> to vector<8xf32>
      %139 = vector.shape_cast %138 : vector<8xf32> to vector<8x1xf32>
      %140 = vector.broadcast %139 : vector<8x1xf32> to vector<8x8xf32>
      %141 = arith.subf %137, %140 : vector<8x8xf32>
      %142 = math.exp %141 : vector<8x8xf32>
      %cst_61 = arith.constant dense<0.000000e+00> : vector<8xf32>
      %143 = vector.multi_reduction <add>, %142, %cst_61 [1] : vector<8x8xf32> to vector<8xf32>
      %144 = vector.shape_cast %143 : vector<8xf32> to vector<8x1xf32>
      %145 = tpu.reciprocal %144 {approx = true} : vector<8x1xf32> -> vector<8x1xf32>
      %146 = vector.broadcast %145 : vector<8x1xf32> to vector<8x8xf32>
      %147 = arith.mulf %142, %146 : vector<8x8xf32>
      %cst_62 = arith.constant dense<0.000000e+00> : vector<8x16xf32>
      %148 = tpu.matmul %147, %136, %cst_62 {dimension_numbers = #tpu.dot_dimension_numbers<[1], [0], [0], [1], [0, 0, 1, 1], [], []>} : vector<8x8xf32>, vector<8x16xf32>, vector<8x16xf32> -> vector<8x16xf32>
      %149 = vector.extract_strided_slice %59 {offsets = [48, 0], sizes = [16, 64], strides = [1, 1]} : vector<64x64xf32> to vector<16x64xf32>
      %cst_63 = arith.constant dense<0.000000e+00> : vector<8x64xf32>
      %150 = tpu.matmul %148, %149, %cst_63 {dimension_numbers = #tpu.dot_dimension_numbers<[1], [0], [0], [1], [0, 0, 1, 1], [], []>} : vector<8x16xf32>, vector<16x64xf32>, vector<8x64xf32> -> vector<8x64xf32>
      %151 = arith.addf %131, %150 : vector<8x64xf32>
      %152 = vector.extract_strided_slice %72 {offsets = [8, 0], sizes = [8, 16], strides = [1, 1]} : vector<16x192xf32> to vector<8x16xf32>
      %cst_64 = arith.constant 2.500000e-01 : f32
      %153 = vector.broadcast %cst_64 : f32 to vector<8x16xf32>
      %154 = arith.mulf %152, %153 : vector<8x16xf32>
      %155 = vector.extract_strided_slice %72 {offsets = [8, 64], sizes = [8, 16], strides = [1, 1]} : vector<16x192xf32> to vector<8x16xf32>
      %156 = vector.extract_strided_slice %72 {offsets = [8, 128], sizes = [8, 16], strides = [1, 1]} : vector<16x192xf32> to vector<8x16xf32>
      "tpu.trace_start"() <{level = 10 : i32, message = "qd,kd->qk"}> : () -> ()
      %cst_65 = arith.constant dense<0.000000e+00> : vector<8x8xf32>
      %157 = tpu.matmul %154, %155, %cst_65 {dimension_numbers = #tpu.dot_dimension_numbers<[1], [1], [0], [0], [0, 0, 1, 0], [], []>} : vector<8x16xf32>, vector<8x16xf32>, vector<8x8xf32> -> vector<8x8xf32>
      "tpu.trace_stop"() : () -> ()
      %cst_66 = arith.constant dense<0xFF800000> : vector<8xf32>
      %158 = vector.multi_reduction <maximumf>, %157, %cst_66 [1] : vector<8x8xf32> to vector<8xf32>
      %159 = vector.shape_cast %158 : vector<8xf32> to vector<8x1xf32>
      %160 = vector.broadcast %159 : vector<8x1xf32> to vector<8x8xf32>
      %161 = arith.subf %157, %160 : vector<8x8xf32>
      %162 = math.exp %161 : vector<8x8xf32>
      %cst_67 = arith.constant dense<0.000000e+00> : vector<8xf32>
      %163 = vector.multi_reduction <add>, %162, %cst_67 [1] : vector<8x8xf32> to vector<8xf32>
      %164 = vector.shape_cast %163 : vector<8xf32> to vector<8x1xf32>
      %165 = tpu.reciprocal %164 {approx = true} : vector<8x1xf32> -> vector<8x1xf32>
      %166 = vector.broadcast %165 : vector<8x1xf32> to vector<8x8xf32>
      %167 = arith.mulf %162, %166 : vector<8x8xf32>
      %cst_68 = arith.constant dense<0.000000e+00> : vector<8x16xf32>
      %168 = tpu.matmul %167, %156, %cst_68 {dimension_numbers = #tpu.dot_dimension_numbers<[1], [0], [0], [1], [0, 0, 1, 1], [], []>} : vector<8x8xf32>, vector<8x16xf32>, vector<8x16xf32> -> vector<8x16xf32>
      %169 = vector.extract_strided_slice %59 {offsets = [0, 0], sizes = [16, 64], strides = [1, 1]} : vector<64x64xf32> to vector<16x64xf32>
      %cst_69 = arith.constant dense<0.000000e+00> : vector<8x64xf32>
      %170 = tpu.matmul %168, %169, %cst_69 {dimension_numbers = #tpu.dot_dimension_numbers<[1], [0], [0], [1], [0, 0, 1, 1], [], []>} : vector<8x16xf32>, vector<16x64xf32>, vector<8x64xf32> -> vector<8x64xf32>
      %171 = vector.extract_strided_slice %72 {offsets = [8, 16], sizes = [8, 16], strides = [1, 1]} : vector<16x192xf32> to vector<8x16xf32>
      %cst_70 = arith.constant 2.500000e-01 : f32
      %172 = vector.broadcast %cst_70 : f32 to vector<8x16xf32>
      %173 = arith.mulf %171, %172 : vector<8x16xf32>
      %174 = vector.extract_strided_slice %72 {offsets = [8, 80], sizes = [8, 16], strides = [1, 1]} : vector<16x192xf32> to vector<8x16xf32>
      %175 = vector.extract_strided_slice %72 {offsets = [8, 144], sizes = [8, 16], strides = [1, 1]} : vector<16x192xf32> to vector<8x16xf32>
      "tpu.trace_start"() <{level = 10 : i32, message = "qd,kd->qk"}> : () -> ()
      %cst_71 = arith.constant dense<0.000000e+00> : vector<8x8xf32>
      %176 = tpu.matmul %173, %174, %cst_71 {dimension_numbers = #tpu.dot_dimension_numbers<[1], [1], [0], [0], [0, 0, 1, 0], [], []>} : vector<8x16xf32>, vector<8x16xf32>, vector<8x8xf32> -> vector<8x8xf32>
      "tpu.trace_stop"() : () -> ()
      %cst_72 = arith.constant dense<0xFF800000> : vector<8xf32>
      %177 = vector.multi_reduction <maximumf>, %176, %cst_72 [1] : vector<8x8xf32> to vector<8xf32>
      %178 = vector.shape_cast %177 : vector<8xf32> to vector<8x1xf32>
      %179 = vector.broadcast %178 : vector<8x1xf32> to vector<8x8xf32>
      %180 = arith.subf %176, %179 : vector<8x8xf32>
      %181 = math.exp %180 : vector<8x8xf32>
      %cst_73 = arith.constant dense<0.000000e+00> : vector<8xf32>
      %182 = vector.multi_reduction <add>, %181, %cst_73 [1] : vector<8x8xf32> to vector<8xf32>
      %183 = vector.shape_cast %182 : vector<8xf32> to vector<8x1xf32>
      %184 = tpu.reciprocal %183 {approx = true} : vector<8x1xf32> -> vector<8x1xf32>
      %185 = vector.broadcast %184 : vector<8x1xf32> to vector<8x8xf32>
      %186 = arith.mulf %181, %185 : vector<8x8xf32>
      %cst_74 = arith.constant dense<0.000000e+00> : vector<8x16xf32>
      %187 = tpu.matmul %186, %175, %cst_74 {dimension_numbers = #tpu.dot_dimension_numbers<[1], [0], [0], [1], [0, 0, 1, 1], [], []>} : vector<8x8xf32>, vector<8x16xf32>, vector<8x16xf32> -> vector<8x16xf32>
      %188 = vector.extract_strided_slice %59 {offsets = [16, 0], sizes = [16, 64], strides = [1, 1]} : vector<64x64xf32> to vector<16x64xf32>
      %cst_75 = arith.constant dense<0.000000e+00> : vector<8x64xf32>
      %189 = tpu.matmul %187, %188, %cst_75 {dimension_numbers = #tpu.dot_dimension_numbers<[1], [0], [0], [1], [0, 0, 1, 1], [], []>} : vector<8x16xf32>, vector<16x64xf32>, vector<8x64xf32> -> vector<8x64xf32>
      %190 = arith.addf %170, %189 : vector<8x64xf32>
      %191 = vector.extract_strided_slice %72 {offsets = [8, 32], sizes = [8, 16], strides = [1, 1]} : vector<16x192xf32> to vector<8x16xf32>
      %cst_76 = arith.constant 2.500000e-01 : f32
      %192 = vector.broadcast %cst_76 : f32 to vector<8x16xf32>
      %193 = arith.mulf %191, %192 : vector<8x16xf32>
      %194 = vector.extract_strided_slice %72 {offsets = [8, 96], sizes = [8, 16], strides = [1, 1]} : vector<16x192xf32> to vector<8x16xf32>
      %195 = vector.extract_strided_slice %72 {offsets = [8, 160], sizes = [8, 16], strides = [1, 1]} : vector<16x192xf32> to vector<8x16xf32>
      "tpu.trace_start"() <{level = 10 : i32, message = "qd,kd->qk"}> : () -> ()
      %cst_77 = arith.constant dense<0.000000e+00> : vector<8x8xf32>
      %196 = tpu.matmul %193, %194, %cst_77 {dimension_numbers = #tpu.dot_dimension_numbers<[1], [1], [0], [0], [0, 0, 1, 0], [], []>} : vector<8x16xf32>, vector<8x16xf32>, vector<8x8xf32> -> vector<8x8xf32>
      "tpu.trace_stop"() : () -> ()
      %cst_78 = arith.constant dense<0xFF800000> : vector<8xf32>
      %197 = vector.multi_reduction <maximumf>, %196, %cst_78 [1] : vector<8x8xf32> to vector<8xf32>
      %198 = vector.shape_cast %197 : vector<8xf32> to vector<8x1xf32>
      %199 = vector.broadcast %198 : vector<8x1xf32> to vector<8x8xf32>
      %200 = arith.subf %196, %199 : vector<8x8xf32>
      %201 = math.exp %200 : vector<8x8xf32>
      %cst_79 = arith.constant dense<0.000000e+00> : vector<8xf32>
      %202 = vector.multi_reduction <add>, %201, %cst_79 [1] : vector<8x8xf32> to vector<8xf32>
      %203 = vector.shape_cast %202 : vector<8xf32> to vector<8x1xf32>
      %204 = tpu.reciprocal %203 {approx = true} : vector<8x1xf32> -> vector<8x1xf32>
      %205 = vector.broadcast %204 : vector<8x1xf32> to vector<8x8xf32>
      %206 = arith.mulf %201, %205 : vector<8x8xf32>
      %cst_80 = arith.constant dense<0.000000e+00> : vector<8x16xf32>
      %207 = tpu.matmul %206, %195, %cst_80 {dimension_numbers = #tpu.dot_dimension_numbers<[1], [0], [0], [1], [0, 0, 1, 1], [], []>} : vector<8x8xf32>, vector<8x16xf32>, vector<8x16xf32> -> vector<8x16xf32>
      %208 = vector.extract_strided_slice %59 {offsets = [32, 0], sizes = [16, 64], strides = [1, 1]} : vector<64x64xf32> to vector<16x64xf32>
      %cst_81 = arith.constant dense<0.000000e+00> : vector<8x64xf32>
      %209 = tpu.matmul %207, %208, %cst_81 {dimension_numbers = #tpu.dot_dimension_numbers<[1], [0], [0], [1], [0, 0, 1, 1], [], []>} : vector<8x16xf32>, vector<16x64xf32>, vector<8x64xf32> -> vector<8x64xf32>
      %210 = arith.addf %190, %209 : vector<8x64xf32>
      %211 = vector.extract_strided_slice %72 {offsets = [8, 48], sizes = [8, 16], strides = [1, 1]} : vector<16x192xf32> to vector<8x16xf32>
      %cst_82 = arith.constant 2.500000e-01 : f32
      %212 = vector.broadcast %cst_82 : f32 to vector<8x16xf32>
      %213 = arith.mulf %211, %212 : vector<8x16xf32>
      %214 = vector.extract_strided_slice %72 {offsets = [8, 112], sizes = [8, 16], strides = [1, 1]} : vector<16x192xf32> to vector<8x16xf32>
      %215 = vector.extract_strided_slice %72 {offsets = [8, 176], sizes = [8, 16], strides = [1, 1]} : vector<16x192xf32> to vector<8x16xf32>
      "tpu.trace_start"() <{level = 10 : i32, message = "qd,kd->qk"}> : () -> ()
      %cst_83 = arith.constant dense<0.000000e+00> : vector<8x8xf32>
      %216 = tpu.matmul %213, %214, %cst_83 {dimension_numbers = #tpu.dot_dimension_numbers<[1], [1], [0], [0], [0, 0, 1, 0], [], []>} : vector<8x16xf32>, vector<8x16xf32>, vector<8x8xf32> -> vector<8x8xf32>
      "tpu.trace_stop"() : () -> ()
      %cst_84 = arith.constant dense<0xFF800000> : vector<8xf32>
      %217 = vector.multi_reduction <maximumf>, %216, %cst_84 [1] : vector<8x8xf32> to vector<8xf32>
      %218 = vector.shape_cast %217 : vector<8xf32> to vector<8x1xf32>
      %219 = vector.broadcast %218 : vector<8x1xf32> to vector<8x8xf32>
      %220 = arith.subf %216, %219 : vector<8x8xf32>
      %221 = math.exp %220 : vector<8x8xf32>
      %cst_85 = arith.constant dense<0.000000e+00> : vector<8xf32>
      %222 = vector.multi_reduction <add>, %221, %cst_85 [1] : vector<8x8xf32> to vector<8xf32>
      %223 = vector.shape_cast %222 : vector<8xf32> to vector<8x1xf32>
      %224 = tpu.reciprocal %223 {approx = true} : vector<8x1xf32> -> vector<8x1xf32>
      %225 = vector.broadcast %224 : vector<8x1xf32> to vector<8x8xf32>
      %226 = arith.mulf %221, %225 : vector<8x8xf32>
      %cst_86 = arith.constant dense<0.000000e+00> : vector<8x16xf32>
      %227 = tpu.matmul %226, %215, %cst_86 {dimension_numbers = #tpu.dot_dimension_numbers<[1], [0], [0], [1], [0, 0, 1, 1], [], []>} : vector<8x8xf32>, vector<8x16xf32>, vector<8x16xf32> -> vector<8x16xf32>
      %228 = vector.extract_strided_slice %59 {offsets = [48, 0], sizes = [16, 64], strides = [1, 1]} : vector<64x64xf32> to vector<16x64xf32>
      %cst_87 = arith.constant dense<0.000000e+00> : vector<8x64xf32>
      %229 = tpu.matmul %227, %228, %cst_87 {dimension_numbers = #tpu.dot_dimension_numbers<[1], [0], [0], [1], [0, 0, 1, 1], [], []>} : vector<8x16xf32>, vector<16x64xf32>, vector<8x64xf32> -> vector<8x64xf32>
      %230 = arith.addf %210, %229 : vector<8x64xf32>
      %231 = tpu.concatenate %151, %230 in 0 : vector<8x64xf32>, vector<8x64xf32> -> vector<16x64xf32>
      %232 = vector.broadcast %60 : vector<1x64xf32> to vector<16x64xf32>
      %233 = arith.addf %231, %232 : vector<16x64xf32>
      %234 = arith.addf %69, %233 : vector<16x64xf32>
      %cst_88 = arith.constant dense<0.000000e+00> : vector<16xf32>
      %235 = vector.multi_reduction <add>, %234, %cst_88 [1] : vector<16x64xf32> to vector<16xf32>
      %236 = vector.shape_cast %235 : vector<16xf32> to vector<16x1xf32>
      %cst_89 = arith.constant 6.400000e+01 : f32
      %237 = vector.broadcast %cst_89 : f32 to vector<16x1xf32>
      %238 = arith.divf %236, %237 : vector<16x1xf32>
      %239 = vector.broadcast %238 : vector<16x1xf32> to vector<16x64xf32>
      %240 = arith.subf %234, %239 : vector<16x64xf32>
      %241 = arith.mulf %240, %240 : vector<16x64xf32>
      %cst_90 = arith.constant dense<0.000000e+00> : vector<16xf32>
      %242 = vector.multi_reduction <add>, %241, %cst_90 [1] : vector<16x64xf32> to vector<16xf32>
      %243 = vector.shape_cast %242 : vector<16xf32> to vector<16x1xf32>
      %cst_91 = arith.constant 6.400000e+01 : f32
      %244 = vector.broadcast %cst_91 : f32 to vector<16x1xf32>
      %245 = arith.divf %243, %244 : vector<16x1xf32>
      %246 = vector.broadcast %238 : vector<16x1xf32> to vector<16x64xf32>
      %247 = arith.subf %234, %246 : vector<16x64xf32>
      %cst_92 = arith.constant 9.99999974E-6 : f32
      %248 = vector.broadcast %cst_92 : f32 to vector<16x1xf32>
      %249 = arith.addf %245, %248 : vector<16x1xf32>
      %250 = math.rsqrt %249 : vector<16x1xf32>
      %251 = vector.broadcast %250 : vector<16x1xf32> to vector<16x64xf32>
      %252 = arith.mulf %247, %251 : vector<16x64xf32>
      %253 = vector.broadcast %61 : vector<1x64xf32> to vector<16x64xf32>
      %254 = arith.mulf %252, %253 : vector<16x64xf32>
      %255 = vector.broadcast %62 : vector<1x64xf32> to vector<16x64xf32>
      %256 = arith.addf %254, %255 : vector<16x64xf32>
      %cst_93 = arith.constant dense<0.000000e+00> : vector<16x32xf32>
      %257 = tpu.matmul %256, %63, %cst_93 {dimension_numbers = #tpu.dot_dimension_numbers<[1], [0], [0], [1], [0, 0, 1, 1], [], []>} : vector<16x64xf32>, vector<64x32xf32>, vector<16x32xf32> -> vector<16x32xf32>
      %258 = vector.broadcast %64 : vector<1x32xf32> to vector<16x32xf32>
      %259 = arith.addf %257, %258 : vector<16x32xf32>
      %cst_94 = arith.constant 0.000000e+00 : f32
      %260 = vector.broadcast %cst_94 : f32 to vector<16x32xf32>
      %261 = arith.maximumf %259, %260 : vector<16x32xf32>
      %cst_95 = arith.constant dense<0.000000e+00> : vector<16x64xf32>
      %262 = tpu.matmul %261, %65, %cst_95 {dimension_numbers = #tpu.dot_dimension_numbers<[1], [0], [0], [1], [0, 0, 1, 1], [], []>} : vector<16x32xf32>, vector<32x64xf32>, vector<16x64xf32> -> vector<16x64xf32>
      %263 = vector.broadcast %66 : vector<1x64xf32> to vector<16x64xf32>
      %264 = arith.addf %262, %263 : vector<16x64xf32>
      %265 = arith.addf %256, %264 : vector<16x64xf32>
      %cst_96 = arith.constant dense<0.000000e+00> : vector<16xf32>
      %266 = vector.multi_reduction <add>, %265, %cst_96 [1] : vector<16x64xf32> to vector<16xf32>
      %267 = vector.shape_cast %266 : vector<16xf32> to vector<16x1xf32>
      %cst_97 = arith.constant 6.400000e+01 : f32
      %268 = vector.broadcast %cst_97 : f32 to vector<16x1xf32>
      %269 = arith.divf %267, %268 : vector<16x1xf32>
      %270 = vector.broadcast %269 : vector<16x1xf32> to vector<16x64xf32>
      %271 = arith.subf %265, %270 : vector<16x64xf32>
      %272 = arith.mulf %271, %271 : vector<16x64xf32>
      %cst_98 = arith.constant dense<0.000000e+00> : vector<16xf32>
      %273 = vector.multi_reduction <add>, %272, %cst_98 [1] : vector<16x64xf32> to vector<16xf32>
      %274 = vector.shape_cast %273 : vector<16xf32> to vector<16x1xf32>
      %cst_99 = arith.constant 6.400000e+01 : f32
      %275 = vector.broadcast %cst_99 : f32 to vector<16x1xf32>
      %276 = arith.divf %274, %275 : vector<16x1xf32>
      %277 = vector.broadcast %269 : vector<16x1xf32> to vector<16x64xf32>
      %278 = arith.subf %265, %277 : vector<16x64xf32>
      %cst_100 = arith.constant 9.99999974E-6 : f32
      %279 = vector.broadcast %cst_100 : f32 to vector<16x1xf32>
      %280 = arith.addf %276, %279 : vector<16x1xf32>
      %281 = math.rsqrt %280 : vector<16x1xf32>
      %282 = vector.broadcast %281 : vector<16x1xf32> to vector<16x64xf32>
      %283 = arith.mulf %278, %282 : vector<16x64xf32>
      %284 = vector.broadcast %67 : vector<1x64xf32> to vector<16x64xf32>
      %285 = arith.mulf %283, %284 : vector<16x64xf32>
      %286 = vector.broadcast %68 : vector<1x64xf32> to vector<16x64xf32>
      %287 = arith.addf %285, %286 : vector<16x64xf32>
      %c0_101 = arith.constant 0 : index
      %c0_102 = arith.constant 0 : index
      %288 = vector.load %arg6[%c0_101, %c0_102] : memref<16x64xf32, #tpu.memory_space<vmem>>, vector<16x64xf32>
      tpu.vector_store %arg6[%c0_101, %c0_102], %287 {strides = array<i32>} : memref<16x64xf32, #tpu.memory_space<vmem>>, vector<16x64xf32>,
    } else {
    }
    %c0 = arith.constant 0 : index
    %c0_1 = arith.constant 0 : index
    %3 = vector.load %arg6[%c0, %c0_1] : memref<16x64xf32, #tpu.memory_space<vmem>>, vector<16x64xf32>
    %cst = arith.constant 0.000000e+00 : f32
    %4 = vector.broadcast %cst : f32 to vector<2x512xf32>
    %5 = vector.extract_strided_slice %3 {offsets = [0, 0], sizes = [1, 64], strides = [1, 1]} : vector<16x64xf32> to vector<1x64xf32>
    %6 = vector.extract_strided_slice %3 {offsets = [8, 0], sizes = [1, 64], strides = [1, 1]} : vector<16x64xf32> to vector<1x64xf32>
    %7 = tpu.concatenate %5, %6 in 0 : vector<1x64xf32>, vector<1x64xf32> -> vector<2x64xf32>
    %c0_2 = arith.constant 0 : index
    %c0_3 = arith.constant 0 : index
    %8 = vector.load %arg3[%c0_2, %c0_3] : memref<512x512xf32, #tpu.memory_space<vmem>>, vector<64x512xf32>
    %cst_4 = arith.constant dense<0.000000e+00> : vector<2x512xf32>
    %9 = tpu.matmul %7, %8, %cst_4 {dimension_numbers = #tpu.dot_dimension_numbers<[1], [0], [0], [1], [0, 0, 1, 1], [], []>} : vector<2x64xf32>, vector<64x512xf32>, vector<2x512xf32> -> vector<2x512xf32>
    %10 = arith.addf %4, %9 : vector<2x512xf32>
    %11 = vector.extract_strided_slice %3 {offsets = [1, 0], sizes = [1, 64], strides = [1, 1]} : vector<16x64xf32> to vector<1x64xf32>
    %12 = vector.extract_strided_slice %3 {offsets = [9, 0], sizes = [1, 64], strides = [1, 1]} : vector<16x64xf32> to vector<1x64xf32>
    %13 = tpu.concatenate %11, %12 in 0 : vector<1x64xf32>, vector<1x64xf32> -> vector<2x64xf32>
    %c64 = arith.constant 64 : index
    %c0_5 = arith.constant 0 : index
    %14 = vector.load %arg3[%c64, %c0_5] : memref<512x512xf32, #tpu.memory_space<vmem>>, vector<64x512xf32>
    %cst_6 = arith.constant dense<0.000000e+00> : vector<2x512xf32>
    %15 = tpu.matmul %13, %14, %cst_6 {dimension_numbers = #tpu.dot_dimension_numbers<[1], [0], [0], [1], [0, 0, 1, 1], [], []>} : vector<2x64xf32>, vector<64x512xf32>, vector<2x512xf32> -> vector<2x512xf32>
    %16 = arith.addf %10, %15 : vector<2x512xf32>
    %17 = vector.extract_strided_slice %3 {offsets = [2, 0], sizes = [1, 64], strides = [1, 1]} : vector<16x64xf32> to vector<1x64xf32>
    %18 = vector.extract_strided_slice %3 {offsets = [10, 0], sizes = [1, 64], strides = [1, 1]} : vector<16x64xf32> to vector<1x64xf32>
    %19 = tpu.concatenate %17, %18 in 0 : vector<1x64xf32>, vector<1x64xf32> -> vector<2x64xf32>
    %c128 = arith.constant 128 : index
    %c0_7 = arith.constant 0 : index
    %20 = vector.load %arg3[%c128, %c0_7] : memref<512x512xf32, #tpu.memory_space<vmem>>, vector<64x512xf32>
    %cst_8 = arith.constant dense<0.000000e+00> : vector<2x512xf32>
    %21 = tpu.matmul %19, %20, %cst_8 {dimension_numbers = #tpu.dot_dimension_numbers<[1], [0], [0], [1], [0, 0, 1, 1], [], []>} : vector<2x64xf32>, vector<64x512xf32>, vector<2x512xf32> -> vector<2x512xf32>
    %22 = arith.addf %16, %21 : vector<2x512xf32>
    %23 = vector.extract_strided_slice %3 {offsets = [3, 0], sizes = [1, 64], strides = [1, 1]} : vector<16x64xf32> to vector<1x64xf32>
    %24 = vector.extract_strided_slice %3 {offsets = [11, 0], sizes = [1, 64], strides = [1, 1]} : vector<16x64xf32> to vector<1x64xf32>
    %25 = tpu.concatenate %23, %24 in 0 : vector<1x64xf32>, vector<1x64xf32> -> vector<2x64xf32>
    %c192 = arith.constant 192 : index
    %c0_9 = arith.constant 0 : index
    %26 = vector.load %arg3[%c192, %c0_9] : memref<512x512xf32, #tpu.memory_space<vmem>>, vector<64x512xf32>
    %cst_10 = arith.constant dense<0.000000e+00> : vector<2x512xf32>
    %27 = tpu.matmul %25, %26, %cst_10 {dimension_numbers = #tpu.dot_dimension_numbers<[1], [0], [0], [1], [0, 0, 1, 1], [], []>} : vector<2x64xf32>, vector<64x512xf32>, vector<2x512xf32> -> vector<2x512xf32>
    %28 = arith.addf %22, %27 : vector<2x512xf32>
    %29 = vector.extract_strided_slice %3 {offsets = [4, 0], sizes = [1, 64], strides = [1, 1]} : vector<16x64xf32> to vector<1x64xf32>
    %30 = vector.extract_strided_slice %3 {offsets = [12, 0], sizes = [1, 64], strides = [1, 1]} : vector<16x64xf32> to vector<1x64xf32>
    %31 = tpu.concatenate %29, %30 in 0 : vector<1x64xf32>, vector<1x64xf32> -> vector<2x64xf32>
    %c256 = arith.constant 256 : index
    %c0_11 = arith.constant 0 : index
    %32 = vector.load %arg3[%c256, %c0_11] : memref<512x512xf32, #tpu.memory_space<vmem>>, vector<64x512xf32>
    %cst_12 = arith.constant dense<0.000000e+00> : vector<2x512xf32>
    %33 = tpu.matmul %31, %32, %cst_12 {dimension_numbers = #tpu.dot_dimension_numbers<[1], [0], [0], [1], [0, 0, 1, 1], [], []>} : vector<2x64xf32>, vector<64x512xf32>, vector<2x512xf32> -> vector<2x512xf32>
    %34 = arith.addf %28, %33 : vector<2x512xf32>
    %35 = vector.extract_strided_slice %3 {offsets = [5, 0], sizes = [1, 64], strides = [1, 1]} : vector<16x64xf32> to vector<1x64xf32>
    %36 = vector.extract_strided_slice %3 {offsets = [13, 0], sizes = [1, 64], strides = [1, 1]} : vector<16x64xf32> to vector<1x64xf32>
    %37 = tpu.concatenate %35, %36 in 0 : vector<1x64xf32>, vector<1x64xf32> -> vector<2x64xf32>
    %c320 = arith.constant 320 : index
    %c0_13 = arith.constant 0 : index
    %38 = vector.load %arg3[%c320, %c0_13] : memref<512x512xf32, #tpu.memory_space<vmem>>, vector<64x512xf32>
    %cst_14 = arith.constant dense<0.000000e+00> : vector<2x512xf32>
    %39 = tpu.matmul %37, %38, %cst_14 {dimension_numbers = #tpu.dot_dimension_numbers<[1], [0], [0], [1], [0, 0, 1, 1], [], []>} : vector<2x64xf32>, vector<64x512xf32>, vector<2x512xf32> -> vector<2x512xf32>
    %40 = arith.addf %34, %39 : vector<2x512xf32>
    %41 = vector.extract_strided_slice %3 {offsets = [6, 0], sizes = [1, 64], strides = [1, 1]} : vector<16x64xf32> to vector<1x64xf32>
    %42 = vector.extract_strided_slice %3 {offsets = [14, 0], sizes = [1, 64], strides = [1, 1]} : vector<16x64xf32> to vector<1x64xf32>
    %43 = tpu.concatenate %41, %42 in 0 : vector<1x64xf32>, vector<1x64xf32> -> vector<2x64xf32>
    %c384 = arith.constant 384 : index
    %c0_15 = arith.constant 0 : index
    %44 = vector.load %arg3[%c384, %c0_15] : memref<512x512xf32, #tpu.memory_space<vmem>>, vector<64x512xf32>
    %cst_16 = arith.constant dense<0.000000e+00> : vector<2x512xf32>
    %45 = tpu.matmul %43, %44, %cst_16 {dimension_numbers = #tpu.dot_dimension_numbers<[1], [0], [0], [1], [0, 0, 1, 1], [], []>} : vector<2x64xf32>, vector<64x512xf32>, vector<2x512xf32> -> vector<2x512xf32>
    %46 = arith.addf %40, %45 : vector<2x512xf32>
    %47 = vector.extract_strided_slice %3 {offsets = [7, 0], sizes = [1, 64], strides = [1, 1]} : vector<16x64xf32> to vector<1x64xf32>
    %48 = vector.extract_strided_slice %3 {offsets = [15, 0], sizes = [1, 64], strides = [1, 1]} : vector<16x64xf32> to vector<1x64xf32>
    %49 = tpu.concatenate %47, %48 in 0 : vector<1x64xf32>, vector<1x64xf32> -> vector<2x64xf32>
    %c448 = arith.constant 448 : index
    %c0_17 = arith.constant 0 : index
    %50 = vector.load %arg3[%c448, %c0_17] : memref<512x512xf32, #tpu.memory_space<vmem>>, vector<64x512xf32>
    %cst_18 = arith.constant dense<0.000000e+00> : vector<2x512xf32>
    %51 = tpu.matmul %49, %50, %cst_18 {dimension_numbers = #tpu.dot_dimension_numbers<[1], [0], [0], [1], [0, 0, 1, 1], [], []>} : vector<2x64xf32>, vector<64x512xf32>, vector<2x512xf32> -> vector<2x512xf32>
    %52 = arith.addf %46, %51 : vector<2x512xf32>
    %c0_19 = arith.constant 0 : index
    %c0_20 = arith.constant 0 : index
    %53 = vector.load %arg4[%c0_19, %c0_20] : memref<1x512xf32, #tpu.memory_space<vmem>>, vector<1x512xf32>
    %54 = vector.broadcast %53 : vector<1x512xf32> to vector<2x512xf32>
    %55 = arith.addf %52, %54 : vector<2x512xf32>
    %c0_21 = arith.constant 0 : index
    %c0_22 = arith.constant 0 : index
    %56 = vector.load %arg5[%c0_21, %c0_22] : memref<2x512xf32, #tpu.memory_space<vmem>>, vector<2x512xf32>
    tpu.vector_store %arg5[%c0_21, %c0_22], %55 {strides = array<i32>} : memref<2x512xf32, #tpu.memory_space<vmem>>, vector<2x512xf32>,
    return
  }
  func.func @transform_0(%arg0: i32) -> (i32, i32) {
    %c0_i32 = arith.constant 0 : i32
    %c0_i32_0 = arith.constant 0 : i32
    %c0_i32_1 = arith.constant 0 : i32
    return %c0_i32, %c0_i32_0 : i32, i32
  }
  func.func @transform_1(%arg0: i32) -> (i32, i32) {
    %c0_i32 = arith.constant 0 : i32
    %c0_i32_0 = arith.constant 0 : i32
    %c0_i32_1 = arith.constant 0 : i32
    return %c0_i32, %c0_i32_0 : i32, i32
  }
  func.func @transform_2(%arg0: i32) -> (i32, i32) {
    %c0_i32 = arith.constant 0 : i32
    %c0_i32_0 = arith.constant 0 : i32
    return %c0_i32, %arg0 : i32, i32
  }
  func.func @transform_3(%arg0: i32) -> (i32, i32) {
    %c0_i32 = arith.constant 0 : i32
    %c0_i32_0 = arith.constant 0 : i32
    return %c0_i32, %arg0 : i32, i32
  }
  func.func @transform_4(%arg0: i32) -> (i32, i32) {
    %c0_i32 = arith.constant 0 : i32
    %c0_i32_0 = arith.constant 0 : i32
    return %c0_i32, %arg0 : i32, i32
  }
}

</mosaic_0001>

<llo_original>
// kernel: tpu_custom_call.1
$region0: #{tpu_custom_call.1}
  #allocation0 [shape = 'u32[]', space=smem, size = 0x4, offset = 0x4, fixed_abs, tag = 'smem constant byte address 0x4 - core index']
  #allocation1 [shape = 'u32[144,128]{1,0:T(1,128)}', space=vmem, size = 0x12000, scoped, tag = 'internal scratch']
  #allocation2 [shape = 'f32[16,64]{1,0:T(8,128)}', space=vmem, size = 0x2000, scoped, tag = 'scratch operand']
  %s0 = inlined_call_operand.hbm [shape: f32[16,64], index: 0, kind: input, shape index: {}]
  %s1 = inlined_call_operand.vmem [shape: f32[232,192], index: 1, kind: input, shape index: {}]
  %s2 = inlined_call_operand.hbm [shape: f32[512,1024], index: 2, kind: input, shape index: {}]
  %s3 = inlined_call_operand.hbm [shape: f32[1,1024], index: 3, kind: input, shape index: {}]
  %s4 = inlined_call_operand.hbm [shape: f32[2,1024], index: 4, kind: output, shape index: {}]
  %s5 = sld [smem:[#allocation0]]
  $region65: #{tpu_custom_call.1} parent=0
    _
  %s7 = ssub.s32 1, %s5
  %s8 = scalar_select 0, %s7, %s5
  $region1: #{tpu_custom_call.1} parent=0
    #allocation3 [shape = 'u8[8192]{0}', space=vmem, size = 0x2000, scoped, tag = 'input window, operand 0, single buffered']
    #allocation4 [shape = 's32[2]{0}', space=sflag, size = 0x8, scoped, tag = 'scoped memory for tpu_custom_call.1']
    #allocation5 [shape = 's32[2]{0}', space=sflag, size = 0x8, scoped, tag = 'scoped memory for tpu_custom_call.1']
    #allocation6 [shape = 'u8[2097152]{0}', space=vmem, size = 0x200000, scoped, tag = 'input window, operand 2']
    #allocation7 [shape = 's32[2]{0}', space=sflag, size = 0x8, scoped, tag = 'scoped memory for tpu_custom_call.1']
    #allocation8 [shape = 'u8[4096]{0}', space=vmem, size = 0x1000, scoped, tag = 'input window, operand 3']
    #allocation9 [shape = 'u8[8192]{0}', space=vmem, size = 0x2000, scoped, tag = 'output window, operand 0']
    %9 = vsyncpa [#allocation4], 0
    %10 = vsyncpa [#allocation7], 0
    %s11 = scalar_lea.sflag [#allocation7], 1
    %12 = vsyncpa %s11, 0
    %13 = vsyncpa [#allocation5], 0
    %s14 = scalar_lea.sflag [#allocation5], 1
    %15 = vsyncpa %s14, 0
    loop: start=0, step=1, limit=4
    $region2: #{tpu_custom_call.1} parent=1 // loop_pre_header
      _
    $region3: #{tpu_custom_call.1} parent=1 // loop_header
      %s17 = sphi 0, %s21
      %p18 = scmp.ge.s32.totalorder %s17, 4
      %s25 = sphi 0, %s25
      %s27 = sphi 0, %s25
      %s28 = sphi 0, %s27
      %s42 = sphi 0, %s28
      %s46 = sphi 0, %s46
      %s48 = sphi 0, %s46
      %s49 = sphi 0, %s48
      %s63 = sphi 0, %s49
      %s69 = sphi 0, %s71
      %s72 = sphi 0, %s69
      %s73 = sphi 0, %s72
      %s89 = sphi 0, %s73
      %s95 = sphi 0, %s97
      %s98 = sphi 0, %s95
      %s99 = sphi 0, %s98
      %s115 = sphi 0, %s99
      %s121 = sphi 0, %s123
      %s124 = sphi 0, %s121
      %s125 = sphi 0, %s124
      %s141 = sphi 0, %s125
    $region4: #{tpu_custom_call.1} parent=1 // loop_header_branch
      %20 = sbr.rel (%p18) target = $region8
    $region5: #{tpu_custom_call.1} parent=1 // loop_body
      %s22 = ssub.s32 %s17, 1
      %s23 = ssub.s32 %s17, 2
      %s24 = sadd.s32 %s17, 1
      %s26 = sadd.s32 %s25, 1
      %p29 = scmp.eq.s32.totalorder %s17, 1
      %p30 = scmp.ne.s32.totalorder %s25, %s27
      %p31 = scmp.eq.s32.totalorder %s17, 0
      %p32 = por %p30, %p31
      %p33 = scmp.ne.s32.totalorder %s25, %s27
      %p34 = scmp.eq.s32.totalorder %s22, 1
      %p35 = por %p33, %p34
      %p36 = scmp.ne.s32.totalorder %s27, %s28
      %p37 = scmp.eq.s32.totalorder %s22, 0
      %p38 = por %p36, %p37
      %p39 = scmp.ne.s32.totalorder %s27, %s28
      %p40 = scmp.eq.s32.totalorder %s23, 1
      %p41 = por %p39, %p40
      %p43 = scmp.ne.s32.totalorder %s28, %s42
      %p44 = scmp.eq.s32.totalorder %s23, 0
      %p45 = por %p43, %p44
      %s47 = sadd.s32 %s46, 1
      %p50 = scmp.eq.s32.totalorder %s17, 1
      %p51 = scmp.ne.s32.totalorder %s46, %s48
      %p52 = scmp.eq.s32.totalorder %s17, 0
      %p53 = por %p51, %p52
      %p54 = scmp.ne.s32.totalorder %s46, %s48
      %p55 = scmp.eq.s32.totalorder %s22, 1
      %p56 = por %p54, %p55
      %p57 = scmp.ne.s32.totalorder %s48, %s49
      %p58 = scmp.eq.s32.totalorder %s22, 0
      %p59 = por %p57, %p58
      %p60 = scmp.ne.s32.totalorder %s48, %s49
      %p61 = scmp.eq.s32.totalorder %s23, 1
      %p62 = por %p60, %p61
      %p64 = scmp.ne.s32.totalorder %s49, %s63
      %p65 = scmp.eq.s32.totalorder %s23, 0
      %p66 = por %p64, %p65
      %s67 = ssub.s32 %s17, %s24
      %p68 = scmp.eq.s32.totalorder %s67, 0
      %s70 = sadd.s32 %s69, 1
      %s71 = scalar_select %p68, %s69, %s70
      %p74 = pneg %p68
      %p75 = scmp.eq.s32.totalorder %s17, 1
      %p76 = por %p74, %p75
      %p77 = scmp.ne.s32.totalorder %s69, %s72
      %p78 = scmp.eq.s32.totalorder %s17, 0
      %p79 = por %p77, %p78
      %p80 = scmp.ne.s32.totalorder %s69, %s72
      %p81 = scmp.eq.s32.totalorder %s22, 1
      %p82 = por %p80, %p81
      %p83 = scmp.ne.s32.totalorder %s72, %s73
      %p84 = scmp.eq.s32.totalorder %s22, 0
      %p85 = por %p83, %p84
      %p86 = scmp.ne.s32.totalorder %s72, %s73
      %p87 = scmp.eq.s32.totalorder %s23, 1
      %p88 = por %p86, %p87
      %p90 = scmp.ne.s32.totalorder %s73, %s89
      %p91 = scmp.eq.s32.totalorder %s23, 0
      %p92 = por %p90, %p91
      %s93 = ssub.s32 %s17, %s24
      %p94 = scmp.eq.s32.totalorder %s93, 0
      %s96 = sadd.s32 %s95, 1
      %s97 = scalar_select %p94, %s95, %s96
      %p100 = pneg %p94
      %p101 = scmp.eq.s32.totalorder %s17, 1
      %p102 = por %p100, %p101
      %p103 = scmp.ne.s32.totalorder %s95, %s98
      %p104 = scmp.eq.s32.totalorder %s17, 0
      %p105 = por %p103, %p104
      %p106 = scmp.ne.s32.totalorder %s95, %s98
      %p107 = scmp.eq.s32.totalorder %s22, 1
      %p108 = por %p106, %p107
      %p109 = scmp.ne.s32.totalorder %s98, %s99
      %p110 = scmp.eq.s32.totalorder %s22, 0
      %p111 = por %p109, %p110
      %p112 = scmp.ne.s32.totalorder %s98, %s99
      %p113 = scmp.eq.s32.totalorder %s23, 1
      %p114 = por %p112, %p113
      %p116 = scmp.ne.s32.totalorder %s99, %s115
      %p117 = scmp.eq.s32.totalorder %s23, 0
      %p118 = por %p116, %p117
      %s119 = ssub.s32 %s17, %s24
      %p120 = scmp.eq.s32.totalorder %s119, 0
      %s122 = sadd.s32 %s121, 1
      %s123 = scalar_select %p120, %s121, %s122
      %p126 = pneg %p120
      %p127 = scmp.eq.s32.totalorder %s17, 1
      %p128 = por %p126, %p127
      %p129 = scmp.ne.s32.totalorder %s121, %s124
      %p130 = scmp.eq.s32.totalorder %s17, 0
      %p131 = por %p129, %p130
      %p132 = scmp.ne.s32.totalorder %s121, %s124
      %p133 = scmp.eq.s32.totalorder %s22, 1
      %p134 = por %p132, %p133
      %p135 = scmp.ne.s32.totalorder %s124, %s125
      %p136 = scmp.eq.s32.totalorder %s22, 0
      %p137 = por %p135, %p136
      %p138 = scmp.ne.s32.totalorder %s124, %s125
      %p139 = scmp.eq.s32.totalorder %s23, 1
      %p140 = por %p138, %p139
      %p142 = scmp.ne.s32.totalorder %s125, %s141
      %p143 = scmp.eq.s32.totalorder %s23, 0
      %p144 = por %p142, %p143
      %p145 = scmp.le.s32.totalorder 1, %s17
      %p146 = scmp.lt.s32.totalorder %s17, 3
      %p147 = pnand %p145, %p146
      %p148 = pneg %p147
      // Predicated region
      $region9: #{tpu_custom_call.1} parent=5 // pred_check
        _
      $region10: #{tpu_custom_call.1} parent=5 // pred_check_branch
        %150 = sbr.rel (%p147) target = $region12
      $region11: #{tpu_custom_call.1} parent=5 // pred_region
        %s151 = ssub.s32 %s17, 1
        // Predicated region
        $region13: #{tpu_custom_call.1} parent=11 // pred_check
          %p152 = pneg %p38
        $region14: #{tpu_custom_call.1} parent=11 // pred_check_branch
          %154 = sbr.rel (%p152) target = $region16
        $region15: #{tpu_custom_call.1} parent=11 // pred_region
          %s156 = ssub.s32 256, 256
          %157 = vsyncadd [#allocation4], %s156
          %s158 = sshll.u32 [#allocation3], 4
          %s159 = int_to_ptr.vmem [resolvable:$true] %s158
          %164 = dma.hbm_to_vmem [thread:$0]  %s0, 256, %s159, [#allocation4], 128, 128, 8
        $region16: #{tpu_custom_call.1} parent=11 // pred_fallthru
          _
        // Predicated region
        $region17: #{tpu_custom_call.1} parent=11 // pred_check
          %p165 = pneg %p59
        $region18: #{tpu_custom_call.1} parent=11 // pred_check_branch
          %167 = sbr.rel (%p165) target = $region20
        $region19: #{tpu_custom_call.1} parent=11 // pred_region
          _
        $region20: #{tpu_custom_call.1} parent=11 // pred_fallthru
          _
      $region12: #{tpu_custom_call.1} parent=5 // pred_fallthru
        _
      %p168 = scmp.lt.s32.totalorder %s17, 2
      // Predicated region
      $region21: #{tpu_custom_call.1} parent=5 // pred_check
        %p169 = pneg %p168
      $region22: #{tpu_custom_call.1} parent=5 // pred_check_branch
        %171 = sbr.rel (%p169) target = $region24
      $region23: #{tpu_custom_call.1} parent=5 // pred_region
        // Predicated region
        $region25: #{tpu_custom_call.1} parent=23 // pred_check
          %p172 = pneg %p79
        $region26: #{tpu_custom_call.1} parent=23 // pred_check_branch
          %174 = sbr.rel (%p172) target = $region28
        $region27: #{tpu_custom_call.1} parent=23 // pred_region
          %s175 = sand.u32 %s17, 1
          %s176 = scalar_lea.sflag [#allocation7], %s175
          %s177 = sand.u32 %s69, 1
          %s178 = smul.addr %s177, 2048
          %s179 = scalar_lea.vmem [#allocation6], %s178
          %s180 = smul.u32 4, %s17
          %s182 = ssub.s32 32768, 32768
          %183 = vsyncadd %s176, %s182
          %s184 = smul.addr %s180, 128
          %s185 = scalar_lea.hbm %s2, %s184
          %s186 = sshll.u32 %s179, 4
          %s187 = int_to_ptr.vmem [resolvable:$true] %s186
          %192 = dma.hbm_to_vmem [thread:$0]  %s185, 32768, %s187, %s176, 1024, 512, 32
        $region28: #{tpu_custom_call.1} parent=23 // pred_fallthru
          _
        // Predicated region
        $region29: #{tpu_custom_call.1} parent=23 // pred_check
          %p193 = pneg %p105
        $region30: #{tpu_custom_call.1} parent=23 // pred_check_branch
          %195 = sbr.rel (%p193) target = $region32
        $region31: #{tpu_custom_call.1} parent=23 // pred_region
          %s196 = sand.u32 %s17, 1
          %s197 = scalar_lea.sflag [#allocation7], %s196
          %s198 = sand.u32 %s95, 1
          %s199 = smul.addr %s198, 4
          %s200 = scalar_lea.vmem [#allocation8], %s199
          %s201 = smul.u32 4, %s17
          %s203 = ssub.s32 64, 64
          %204 = vsyncadd %s197, %s203
          %s205 = smul.addr %s201, 16
          %s206 = scalar_lea.hbm %s3, %s205
          %s208 = sshll.u32 %s200, 4
          %s209 = int_to_ptr.vmem [resolvable:$true] %s208
          %211 = dma.hbm_to_vmem [thread:$0]  %s206, 64, %s209, %s197
        $region32: #{tpu_custom_call.1} parent=23 // pred_fallthru
          _
      $region24: #{tpu_custom_call.1} parent=5 // pred_fallthru
        _
      %p212 = scmp.le.s32.totalorder 1, %s17
      %p213 = scmp.lt.s32.totalorder %s17, 3
      %p214 = pnand %p212, %p213
      %p215 = pneg %p214
      // Predicated region
      $region33: #{tpu_custom_call.1} parent=5 // pred_check
        _
      $region34: #{tpu_custom_call.1} parent=5 // pred_check_branch
        %217 = sbr.rel (%p214) target = $region36
      $region35: #{tpu_custom_call.1} parent=5 // pred_region
        %s218 = ssub.s32 %s17, 1
        // Predicated region
        $region37: #{tpu_custom_call.1} parent=35 // pred_check
          %p219 = pneg %p38
        $region38: #{tpu_custom_call.1} parent=35 // pred_check_branch
          %221 = sbr.rel (%p219) target = $region40
        $region39: #{tpu_custom_call.1} parent=35 // pred_region
          %222 = dma.done [#allocation4], 256
        $region40: #{tpu_custom_call.1} parent=35 // pred_fallthru
          _
        %s223 = sand.u32 %s22, 1
        %s224 = scalar_lea.sflag [#allocation7], %s223
        %s225 = sand.u32 %s72, 1
        %s226 = smul.addr %s225, 2048
        %s227 = scalar_lea.vmem [#allocation6], %s226
        // Predicated region
        $region41: #{tpu_custom_call.1} parent=35 // pred_check
          %p228 = pneg %p85
        $region42: #{tpu_custom_call.1} parent=35 // pred_check_branch
          %230 = sbr.rel (%p228) target = $region44
        $region43: #{tpu_custom_call.1} parent=35 // pred_region
          %231 = dma.done %s224, 32768
        $region44: #{tpu_custom_call.1} parent=35 // pred_fallthru
          _
        %s232 = sand.u32 %s22, 1
        %s233 = scalar_lea.sflag [#allocation7], %s232
        %s234 = sand.u32 %s98, 1
        %s235 = smul.addr %s234, 4
        %s236 = scalar_lea.vmem [#allocation8], %s235
        // Predicated region
        $region45: #{tpu_custom_call.1} parent=35 // pred_check
          %p237 = pneg %p111
        $region46: #{tpu_custom_call.1} parent=35 // pred_check_branch
          %239 = sbr.rel (%p237) target = $region48
        $region47: #{tpu_custom_call.1} parent=35 // pred_region
          %240 = dma.done %s233, 64
        $region48: #{tpu_custom_call.1} parent=35 // pred_fallthru
          _
        %p241 = pneg %p38
        %p242 = pneg %p35
        %p243 = pneg %p59
        %p244 = pneg %p56
        %s245 = sand.u32 %s22, 1
        %s246 = scalar_lea.sflag [#allocation7], %s245
        %s247 = sand.u32 %s72, 1
        %s248 = smul.addr %s247, 2048
        %s249 = scalar_lea.vmem [#allocation6], %s248
        %p250 = pneg %p85
        %p251 = pneg %p82
        %s252 = sand.u32 %s22, 1
        %s253 = scalar_lea.sflag [#allocation7], %s252
        %s254 = sand.u32 %s98, 1
        %s255 = smul.addr %s254, 4
        %s256 = scalar_lea.vmem [#allocation8], %s255
        %p257 = pneg %p111
        %p258 = pneg %p108
        %p259 = pneg %p137
        %p260 = pneg %p134
        %s261 = sand.u32 %s124, 1
        %s262 = scalar_lea.sflag [#allocation5], %s261
        %s263 = sand.u32 %s124, 1
        %s264 = smul.addr %s263, 8
        %s265 = scalar_lea.vmem [#allocation9], %s264
        %s266 = smul.u32 4, %s22
        %s267 = smul.u32 4, %s22
        %s268 = smul.u32 4, %s22
        %p269 = scmp.eq.s32.totalorder %s22, 0
        // Predicated region
        $region49: #{tpu_custom_call.1} parent=35 // pred_check
          %p270 = pneg %p269
        $region50: #{tpu_custom_call.1} parent=35 // pred_check_branch
          %272 = sbr.rel (%p270) target = $region52
        $region51: #{tpu_custom_call.1} parent=35 // pred_region
          %v273 = vld [vmem:[%s1] sm:$0xff]
          %v274 = vld [vmem:[%s1 + $0x8] sm:$0xff]
          %v275 = vld [vmem:[%s1 + $0x10] sm:$0xff]
          %v276 = vld [vmem:[%s1 + $0x18] sm:$0xff]
          %v277 = vld [vmem:[%s1 + $0x20] sm:$0xff]
          %v278 = vld [vmem:[%s1 + $0x28] sm:$0xff]
          %v279 = vld [vmem:[%s1 + $0x30] sm:$0xff]
          %v280 = vld [vmem:[%s1 + $0x38] sm:$0xff]
          %v281 = vld [vmem:[%s1 + $0x40] sm:$0xff]
          %v282 = vld [vmem:[%s1 + $0x48] sm:$0xff]
          %v283 = vld [vmem:[%s1 + $0x50] sm:$0xff]
          %v284 = vld [vmem:[%s1 + $0x58] sm:$0xff]
          %v285 = vld [vmem:[%s1 + $0x60] sm:$0xff]
          %v286 = vld [vmem:[%s1 + $0x68] sm:$0xff]
          %v287 = vld [vmem:[%s1 + $0x70] sm:$0xff]
          %v288 = vld [vmem:[%s1 + $0x78] sm:$0xff]
          %s289 = scalar_lea.vmem %s1, 128
          %v290 = vld [vmem:[%s289] ss:$8 sm:$0x3]
          %v291 = vld [vmem:[%s1 + $0x80] sm:$0xfe]
          %v292 = vld [vmem:[%s1 + $0x90] sm:$0xff]
          %v293 = vld [vmem:[%s1 + $0xa0] sm:$0xff]
          %v294 = vld [vmem:[%s1 + $0xb0] sm:$0xff]
          %v295 = vld [vmem:[%s1 + $0xc0] sm:$0xff]
          %v296 = vld [vmem:[%s1 + $0xd0] sm:$0xff]
          %v297 = vld [vmem:[%s1 + $0xe0] sm:$0xff]
          %v298 = vld [vmem:[%s1 + $0xf0] sm:$0xff]
          %v299 = vld [vmem:[%s1 + $0x100] sm:$0x1]
          %v300 = vld [vmem:[%s1 + $0x101] ss:$0 sm:$0xff]
          %v301 = vld [vmem:[%s1 + $0x102] ss:$0 sm:$0xff]
          %v302 = vld [vmem:[%s1 + $0x103] ss:$0 sm:$0xff]
          %v303 = vld [vmem:[%s1 + $0x100] sm:$0xf0]
          %v304 = vld [vmem:[%s1 + $0x110] sm:$0xff]
          %v305 = vld [vmem:[%s1 + $0x120] sm:$0xff]
          %v306 = vld [vmem:[%s1 + $0x130] sm:$0xff]
          %v307 = vld [vmem:[%s1 + $0x140] sm:$0xff]
          %v308 = vld [vmem:[%s1 + $0x150] sm:$0xff]
          %v309 = vld [vmem:[%s1 + $0x160] sm:$0xff]
          %v310 = vld [vmem:[%s1 + $0x170] sm:$0xff]
          %v311 = vld [vmem:[%s1 + $0x180] sm:$0xf]
          %v312 = vld [vmem:[%s1 + $0x184] ss:$0 sm:$0xff]
          %v313 = vld [vmem:[%s1 + $0x180] sm:$0xe0]
          %v314 = vld [vmem:[%s1 + $0x190] sm:$0xff]
          %v315 = vld [vmem:[%s1 + $0x1a0] sm:$0xff]
          %v316 = vld [vmem:[%s1 + $0x1b0] sm:$0xff]
          %v317 = vld [vmem:[%s1 + $0x1c0] sm:$0x1f]
          %v318 = vld [vmem:[%s1 + $0x1c5] ss:$0 sm:$0xff]
          %v319 = vld [vmem:[%s1 + $0x1c6] ss:$0 sm:$0xff]
          %v320 = vld [vmem:[%s1 + $0x1c7] ss:$0 sm:$0xff]
          %v321 = vld [vmem:[#allocation3] sm:$0xff]
          %v322 = vld [vmem:[#allocation3 + $0x8] sm:$0xff]
          %v324 = vlaneseq
          %v325 = vshrl.u32 %v324, 7
          %v326 = vsub.s32 0, %v325
          %v327 = vrot.slane %v290, %v326
          %v328 = vlaneseq
          %v329 = vshrl.u32 %v328, 7
          %v330 = vsub.s32 1, %v329
          %v331 = vrot.slane %v290, %v330
          %vm334 = vcmask 523264
          %v336 = vsel %vm334, %v321, 0
          %v339 = vsel %vm334, %v322, 0
          %341 = vmatprep.subr.mxu0 %v274
          %342 = vmatpush1.msra.mxu0 %v273
          %343 = vmatprep.subr.mxu0 %v276
          %344 = vmatpush1.msra.mxu0 %v275
          %345 = vmatprep.subr.mxu0 %v278
          %346 = vmatpush1.msra.mxu0 %v277
          %347 = vmatprep.subr.mxu0 %v280
          %348 = vmatpush1.msra.mxu0 %v279
          %349 = vmatprep.subr.mxu0 %v282
          %350 = vmatpush1.msra.mxu0 %v281
          %351 = vmatprep.subr.mxu0 %v284
          %352 = vmatpush1.msra.mxu0 %v283
          %353 = vmatprep.subr.mxu0 %v286
          %354 = vmatpush1.msra.mxu0 %v285
          %355 = vmatprep.subr.mxu0 %v288
          %356 = vmatpush1.msra.mxu0 %v287
          %357 = vmatprep.subr.mxu0 0.0
          %358 = vmatpush1.msra.mxu0 0.0
          %359 = vmatprep.subr.mxu0 0.0
          %360 = vmatpush1.msra.mxu0 0.0
          %361 = vmatprep.subr.mxu0 0.0
          %362 = vmatpush1.msra.mxu0 0.0
          %363 = vmatprep.subr.mxu0 0.0
          %364 = vmatpush1.msra.mxu0 0.0
          %365 = vmatprep.subr.mxu0 0.0
          %366 = vmatpush1.msra.mxu0 0.0
          %367 = vmatprep.subr.mxu0 0.0
          %368 = vmatpush1.msra.mxu0 0.0
          %369 = vmatprep.subr.mxu0 0.0
          %370 = vmatpush1.msra.mxu0 0.0
          %371 = vmatprep.subr.mxu0 0.0
          %372 = vmatpush1.msra.mxu0 0.0
          %373 = vmatprep.subr.mxu0 0.0
          %374 = vmatpush1.msra.mxu0 0.0
          %375 = vmatprep.subr.mxu0 0.0
          %376 = vmatpush1.msra.mxu0 0.0
          %377 = vmatprep.subr.mxu0 0.0
          %378 = vmatpush1.msra.mxu0 0.0
          %379 = vmatprep.subr.mxu0 0.0
          %380 = vmatpush1.msra.mxu0 0.0
          %381 = vmatprep.subr.mxu0 0.0
          %382 = vmatpush1.msra.mxu0 0.0
          %383 = vmatprep.subr.mxu0 0.0
          %384 = vmatpush1.msra.mxu0 0.0
          %385 = vmatprep.subr.mxu0 0.0
          %386 = vmatpush1.msra.mxu0 0.0
          %387 = vmatprep.subr.mxu0 0.0
          %388 = vmatpush1.msra.mxu0 0.0
          %389 = vmatprep.subr.mxu0 0.0
          %390 = vmatpush1.msra.mxu0 0.0
          %391 = vmatprep.subr.mxu0 0.0
          %392 = vmatpush1.msra.mxu0 0.0
          %393 = vmatprep.subr.mxu0 0.0
          %394 = vmatpush1.msra.mxu0 0.0
          %395 = vmatprep.subr.mxu0 0.0
          %396 = vmatpush1.msra.mxu0 0.0
          %397 = vmatprep.subr.mxu0 0.0
          %398 = vmatpush1.msra.mxu0 0.0
          %399 = vmatprep.subr.mxu0 0.0
          %400 = vmatpush1.msra.mxu0 0.0
          %401 = vmatprep.subr.mxu0 0.0
          %402 = vmatpush1.msra.mxu0 0.0
          %403 = vmatprep.subr.mxu0 0.0
          %404 = vmatpush1.msra.mxu0 0.0
          %405 = vmatprep.mubr.f32.mxu0 0.0
          %406 = vmatmul.mubr.f32.gmra.mrb[0].mxu0 %v336
          %v407 = vpop.f32.mrb[0].mxu0
          %v408 = vadd.f32 %v327, %v407
          %v409 = vpop.f32.mrb[0].mxu0
          %v410 = vadd.f32 %v331, %v409
          %411 = vmatprep.mubr.f32.mxu0 0.0
          %412 = vmatmul.mubr.f32.gmra.mrb[0].mxu0 %v339
          %v413 = vpop.f32.mrb[0].mxu0
          %v414 = vadd.f32 %v327, %v413
          %v415 = vpop.f32.mrb[0].mxu0
          %v416 = vadd.f32 %v331, %v415
          %417 = vdwg.mxu0
          %v418 = vmul.f32 %v408, 0.25
          %420 = vrot.lane.b32.xlu0 %v408, 64
          %v421 = vpop.permute.xlu0 %420
          %vm422 = vcmask 130048
          %v424 = vsel %vm422, %v418, 0
          %v426 = vsel %vm422, %v421, 0
          %428 = vmatprep.subr.mxu0 0.0
          %429 = vmatpush1.xpose.msra.mxu0 %v426
          %430 = vmatprep.subr.mxu0 0.0
          %431 = vmatpush1.xpose.msra.mxu0 0.0
          %432 = vmatprep.subr.mxu0 0.0
          %433 = vmatpush1.xpose.msra.mxu0 0.0
          %434 = vmatprep.subr.mxu0 0.0
          %435 = vmatpush1.xpose.msra.mxu0 0.0
          %436 = vmatprep.subr.mxu0 0.0
          %437 = vmatpush1.xpose.msra.mxu0 0.0
          %438 = vmatprep.subr.mxu0 0.0
          %439 = vmatpush1.xpose.msra.mxu0 0.0
          %440 = vmatprep.subr.mxu0 0.0
          %441 = vmatpush1.xpose.msra.mxu0 0.0
          %442 = vmatprep.subr.mxu0 0.0
          %443 = vmatpush1.xpose.msra.mxu0 0.0
          %444 = vmatprep.subr.mxu0 0.0
          %445 = vmatpush1.xpose.msra.mxu0 0.0
          %446 = vmatprep.subr.mxu0 0.0
          %447 = vmatpush1.xpose.msra.mxu0 0.0
          %448 = vmatprep.subr.mxu0 0.0
          %449 = vmatpush1.xpose.msra.mxu0 0.0
          %450 = vmatprep.subr.mxu0 0.0
          %451 = vmatpush1.xpose.msra.mxu0 0.0
          %452 = vmatprep.subr.mxu0 0.0
          %453 = vmatpush1.xpose.msra.mxu0 0.0
          %454 = vmatprep.subr.mxu0 0.0
          %455 = vmatpush1.xpose.msra.mxu0 0.0
          %456 = vmatprep.subr.mxu0 0.0
          %457 = vmatpush1.xpose.msra.mxu0 0.0
          %458 = vmatprep.subr.mxu0 0.0
          %459 = vmatpush1.xpose.msra.mxu0 0.0
          %460 = vmatprep.subr.mxu0 0.0
          %461 = vmatpush1.xpose.msra.mxu0 0.0
          %462 = vmatprep.subr.mxu0 0.0
          %463 = vmatpush1.xpose.msra.mxu0 0.0
          %464 = vmatprep.subr.mxu0 0.0
          %465 = vmatpush1.xpose.msra.mxu0 0.0
          %466 = vmatprep.subr.mxu0 0.0
          %467 = vmatpush1.xpose.msra.mxu0 0.0
          %468 = vmatprep.subr.mxu0 0.0
          %469 = vmatpush1.xpose.msra.mxu0 0.0
          %470 = vmatprep.subr.mxu0 0.0
          %471 = vmatpush1.xpose.msra.mxu0 0.0
          %472 = vmatprep.subr.mxu0 0.0
          %473 = vmatpush1.xpose.msra.mxu0 0.0
          %474 = vmatprep.subr.mxu0 0.0
          %475 = vmatpush1.xpose.msra.mxu0 0.0
          %476 = vmatprep.subr.mxu0 0.0
          %477 = vmatpush1.xpose.msra.mxu0 0.0
          %478 = vmatprep.subr.mxu0 0.0
          %479 = vmatpush1.xpose.msra.mxu0 0.0
          %480 = vmatprep.subr.mxu0 0.0
          %481 = vmatpush1.xpose.msra.mxu0 0.0
          %482 = vmatprep.subr.mxu0 0.0
          %483 = vmatpush1.xpose.msra.mxu0 0.0
          %484 = vmatprep.subr.mxu0 0.0
          %485 = vmatpush1.xpose.msra.mxu0 0.0
          %486 = vmatprep.subr.mxu0 0.0
          %487 = vmatpush1.xpose.msra.mxu0 0.0
          %488 = vmatprep.subr.mxu0 0.0
          %489 = vmatpush1.xpose.msra.mxu0 0.0
          %490 = vmatprep.subr.mxu0 0.0
          %491 = vmatpush1.xpose.msra.mxu0 0.0
          %492 = vmatprep.mubr.f32.mxu0 0.0
          %493 = vmatmul.mubr.f32.gmra.mrb[0].mxu0 %v424
          %v494 = vpop.f32.mrb[0].mxu0
          %v495 = vadd.f32 0.0, %v494
          %v496 = vpop.f32.mrb[0].mxu0
          %497 = vdwg.mxu0
          %vm498 = vcmask 64512
          %v499 = vsel %vm498, %v495, -inf
          %500 = vmax.xlane.f32.xlu0 %v499
          %v501 = vpop.xlane.xlu0 %500
          %v502 = vsub.f32 %v495, %v501
          %v503 = vmul.f32 %v502, 1.442695
          %v504 = vpow.pop %v503
          %v505 = vsel %vm498, %v504, 0.0
          %506 = vadd.xlane.f32.xlu0 %v505
          %v507 = vpop.xlane.xlu0 %506
          %v508 = vrcp.pop %v507
          %v509 = vmul.f32 %v504, %v508
          %v511 = vsel %vm498, %v509, 0
          %513 = vmatprep.subr.mxu0 0.0
          %514 = vmatpush1.msra.mxu0 %v410
          %515 = vmatprep.subr.mxu0 0.0
          %516 = vmatpush1.msra.mxu0 0.0
          %517 = vmatprep.subr.mxu0 0.0
          %518 = vmatpush1.msra.mxu0 0.0
          %519 = vmatprep.subr.mxu0 0.0
          %520 = vmatpush1.msra.mxu0 0.0
          %521 = vmatprep.subr.mxu0 0.0
          %522 = vmatpush1.msra.mxu0 0.0
          %523 = vmatprep.subr.mxu0 0.0
          %524 = vmatpush1.msra.mxu0 0.0
          %525 = vmatprep.subr.mxu0 0.0
          %526 = vmatpush1.msra.mxu0 0.0
          %527 = vmatprep.subr.mxu0 0.0
          %528 = vmatpush1.msra.mxu0 0.0
          %529 = vmatprep.subr.mxu0 0.0
          %530 = vmatpush1.msra.mxu0 0.0
          %531 = vmatprep.subr.mxu0 0.0
          %532 = vmatpush1.msra.mxu0 0.0
          %533 = vmatprep.subr.mxu0 0.0
          %534 = vmatpush1.msra.mxu0 0.0
          %535 = vmatprep.subr.mxu0 0.0
          %536 = vmatpush1.msra.mxu0 0.0
          %537 = vmatprep.subr.mxu0 0.0
          %538 = vmatpush1.msra.mxu0 0.0
          %539 = vmatprep.subr.mxu0 0.0
          %540 = vmatpush1.msra.mxu0 0.0
          %541 = vmatprep.subr.mxu0 0.0
          %542 = vmatpush1.msra.mxu0 0.0
          %543 = vmatprep.subr.mxu0 0.0
          %544 = vmatpush1.msra.mxu0 0.0
          %545 = vmatprep.subr.mxu0 0.0
          %546 = vmatpush1.msra.mxu0 0.0
          %547 = vmatprep.subr.mxu0 0.0
          %548 = vmatpush1.msra.mxu0 0.0
          %549 = vmatprep.subr.mxu0 0.0
          %550 = vmatpush1.msra.mxu0 0.0
          %551 = vmatprep.subr.mxu0 0.0
          %552 = vmatpush1.msra.mxu0 0.0
          %553 = vmatprep.subr.mxu0 0.0
          %554 = vmatpush1.msra.mxu0 0.0
          %555 = vmatprep.subr.mxu0 0.0
          %556 = vmatpush1.msra.mxu0 0.0
          %557 = vmatprep.subr.mxu0 0.0
          %558 = vmatpush1.msra.mxu0 0.0
          %559 = vmatprep.subr.mxu0 0.0
          %560 = vmatpush1.msra.mxu0 0.0
          %561 = vmatprep.subr.mxu0 0.0
          %562 = vmatpush1.msra.mxu0 0.0
          %563 = vmatprep.subr.mxu0 0.0
          %564 = vmatpush1.msra.mxu0 0.0
          %565 = vmatprep.subr.mxu0 0.0
          %566 = vmatpush1.msra.mxu0 0.0
          %567 = vmatprep.subr.mxu0 0.0
          %568 = vmatpush1.msra.mxu0 0.0
          %569 = vmatprep.subr.mxu0 0.0
          %570 = vmatpush1.msra.mxu0 0.0
          %571 = vmatprep.subr.mxu0 0.0
          %572 = vmatpush1.msra.mxu0 0.0
          %573 = vmatprep.subr.mxu0 0.0
          %574 = vmatpush1.msra.mxu0 0.0
          %575 = vmatprep.subr.mxu0 0.0
          %576 = vmatpush1.msra.mxu0 0.0
          %577 = vmatprep.mubr.f32.mxu0 0.0
          %578 = vmatmul.mubr.f32.gmra.mrb[0].mxu0 %v511
          %v579 = vpop.f32.mrb[0].mxu0
          %v580 = vadd.f32 0.0, %v579
          %v581 = vpop.f32.mrb[0].mxu0
          %582 = vdwg.mxu0
          %583 = vrot.lane.b32.xlu0 %v418, 112
          %v584 = vpop.permute.xlu0 %583
          %585 = vrot.lane.b32.xlu0 %v408, 48
          %v586 = vpop.permute.xlu0 %585
          %v587 = vsel %vm422, %v584, 0
          %v589 = vsel %vm422, %v586, 0
          %591 = vmatprep.subr.mxu0 0.0
          %592 = vmatpush1.xpose.msra.mxu0 %v589
          %593 = vmatprep.subr.mxu0 0.0
          %594 = vmatpush1.xpose.msra.mxu0 0.0
          %595 = vmatprep.subr.mxu0 0.0
          %596 = vmatpush1.xpose.msra.mxu0 0.0
          %597 = vmatprep.subr.mxu0 0.0
          %598 = vmatpush1.xpose.msra.mxu0 0.0
          %599 = vmatprep.subr.mxu0 0.0
          %600 = vmatpush1.xpose.msra.mxu0 0.0
          %601 = vmatprep.subr.mxu0 0.0
          %602 = vmatpush1.xpose.msra.mxu0 0.0
          %603 = vmatprep.subr.mxu0 0.0
          %604 = vmatpush1.xpose.msra.mxu0 0.0
          %605 = vmatprep.subr.mxu0 0.0
          %606 = vmatpush1.xpose.msra.mxu0 0.0
          %607 = vmatprep.subr.mxu0 0.0
          %608 = vmatpush1.xpose.msra.mxu0 0.0
          %609 = vmatprep.subr.mxu0 0.0
          %610 = vmatpush1.xpose.msra.mxu0 0.0
          %611 = vmatprep.subr.mxu0 0.0
          %612 = vmatpush1.xpose.msra.mxu0 0.0
          %613 = vmatprep.subr.mxu0 0.0
          %614 = vmatpush1.xpose.msra.mxu0 0.0
          %615 = vmatprep.subr.mxu0 0.0
          %616 = vmatpush1.xpose.msra.mxu0 0.0
          %617 = vmatprep.subr.mxu0 0.0
          %618 = vmatpush1.xpose.msra.mxu0 0.0
          %619 = vmatprep.subr.mxu0 0.0
          %620 = vmatpush1.xpose.msra.mxu0 0.0
          %621 = vmatprep.subr.mxu0 0.0
          %622 = vmatpush1.xpose.msra.mxu0 0.0
          %623 = vmatprep.subr.mxu0 0.0
          %624 = vmatpush1.xpose.msra.mxu0 0.0
          %625 = vmatprep.subr.mxu0 0.0
          %626 = vmatpush1.xpose.msra.mxu0 0.0
          %627 = vmatprep.subr.mxu0 0.0
          %628 = vmatpush1.xpose.msra.mxu0 0.0
          %629 = vmatprep.subr.mxu0 0.0
          %630 = vmatpush1.xpose.msra.mxu0 0.0
          %631 = vmatprep.subr.mxu0 0.0
          %632 = vmatpush1.xpose.msra.mxu0 0.0
          %633 = vmatprep.subr.mxu0 0.0
          %634 = vmatpush1.xpose.msra.mxu0 0.0
          %635 = vmatprep.subr.mxu0 0.0
          %636 = vmatpush1.xpose.msra.mxu0 0.0
          %637 = vmatprep.subr.mxu0 0.0
          %638 = vmatpush1.xpose.msra.mxu0 0.0
          %639 = vmatprep.subr.mxu0 0.0
          %640 = vmatpush1.xpose.msra.mxu0 0.0
          %641 = vmatprep.subr.mxu0 0.0
          %642 = vmatpush1.xpose.msra.mxu0 0.0
          %643 = vmatprep.subr.mxu0 0.0
          %644 = vmatpush1.xpose.msra.mxu0 0.0
          %645 = vmatprep.subr.mxu0 0.0
          %646 = vmatpush1.xpose.msra.mxu0 0.0
          %647 = vmatprep.subr.mxu0 0.0
          %648 = vmatpush1.xpose.msra.mxu0 0.0
          %649 = vmatprep.subr.mxu0 0.0
          %650 = vmatpush1.xpose.msra.mxu0 0.0
          %651 = vmatprep.subr.mxu0 0.0
          %652 = vmatpush1.xpose.msra.mxu0 0.0
          %653 = vmatprep.subr.mxu0 0.0
          %654 = vmatpush1.xpose.msra.mxu0 0.0
          %655 = vmatprep.mubr.f32.mxu0 0.0
          %656 = vmatmul.mubr.f32.gmra.mrb[0].mxu0 %v587
          %v657 = vpop.f32.mrb[0].mxu0
          %v658 = vadd.f32 0.0, %v657
          %v659 = vpop.f32.mrb[0].mxu0
          %660 = vdwg.mxu0
          %v661 = vsel %vm498, %v658, -inf
          %662 = vmax.xlane.f32.xlu0 %v661
          %v663 = vpop.xlane.xlu0 %662
          %v664 = vsub.f32 %v658, %v663
          %v665 = vmul.f32 %v664, 1.442695
          %v666 = vpow.pop %v665
          %v667 = vsel %vm498, %v666, 0.0
          %668 = vadd.xlane.f32.xlu0 %v667
          %v669 = vpop.xlane.xlu0 %668
          %v670 = vrcp.pop %v669
          %v671 = vmul.f32 %v666, %v670
          %673 = vrot.lane.b32.xlu0 %v410, 112
          %v674 = vpop.permute.xlu0 %673
          %v677 = vsel %vm498, %v671, 0
          %679 = vmatprep.subr.mxu0 0.0
          %680 = vmatpush1.msra.mxu0 %v674
          %681 = vmatprep.subr.mxu0 0.0
          %682 = vmatpush1.msra.mxu0 0.0
          %683 = vmatprep.subr.mxu0 0.0
          %684 = vmatpush1.msra.mxu0 0.0
          %685 = vmatprep.subr.mxu0 0.0
          %686 = vmatpush1.msra.mxu0 0.0
          %687 = vmatprep.subr.mxu0 0.0
          %688 = vmatpush1.msra.mxu0 0.0
          %689 = vmatprep.subr.mxu0 0.0
          %690 = vmatpush1.msra.mxu0 0.0
          %691 = vmatprep.subr.mxu0 0.0
          %692 = vmatpush1.msra.mxu0 0.0
          %693 = vmatprep.subr.mxu0 0.0
          %694 = vmatpush1.msra.mxu0 0.0
          %695 = vmatprep.subr.mxu0 0.0
          %696 = vmatpush1.msra.mxu0 0.0
          %697 = vmatprep.subr.mxu0 0.0
          %698 = vmatpush1.msra.mxu0 0.0
          %699 = vmatprep.subr.mxu0 0.0
          %700 = vmatpush1.msra.mxu0 0.0
          %701 = vmatprep.subr.mxu0 0.0
          %702 = vmatpush1.msra.mxu0 0.0
          %703 = vmatprep.subr.mxu0 0.0
          %704 = vmatpush1.msra.mxu0 0.0
          %705 = vmatprep.subr.mxu0 0.0
          %706 = vmatpush1.msra.mxu0 0.0
          %707 = vmatprep.subr.mxu0 0.0
          %708 = vmatpush1.msra.mxu0 0.0
          %709 = vmatprep.subr.mxu0 0.0
          %710 = vmatpush1.msra.mxu0 0.0
          %711 = vmatprep.subr.mxu0 0.0
          %712 = vmatpush1.msra.mxu0 0.0
          %713 = vmatprep.subr.mxu0 0.0
          %714 = vmatpush1.msra.mxu0 0.0
          %715 = vmatprep.subr.mxu0 0.0
          %716 = vmatpush1.msra.mxu0 0.0
          %717 = vmatprep.subr.mxu0 0.0
          %718 = vmatpush1.msra.mxu0 0.0
          %719 = vmatprep.subr.mxu0 0.0
          %720 = vmatpush1.msra.mxu0 0.0
          %721 = vmatprep.subr.mxu0 0.0
          %722 = vmatpush1.msra.mxu0 0.0
          %723 = vmatprep.subr.mxu0 0.0
          %724 = vmatpush1.msra.mxu0 0.0
          %725 = vmatprep.subr.mxu0 0.0
          %726 = vmatpush1.msra.mxu0 0.0
          %727 = vmatprep.subr.mxu0 0.0
          %728 = vmatpush1.msra.mxu0 0.0
          %729 = vmatprep.subr.mxu0 0.0
          %730 = vmatpush1.msra.mxu0 0.0
          %731 = vmatprep.subr.mxu0 0.0
          %732 = vmatpush1.msra.mxu0 0.0
          %733 = vmatprep.subr.mxu0 0.0
          %734 = vmatpush1.msra.mxu0 0.0
          %735 = vmatprep.subr.mxu0 0.0
          %736 = vmatpush1.msra.mxu0 0.0
          %737 = vmatprep.subr.mxu0 0.0
          %738 = vmatpush1.msra.mxu0 0.0
          %739 = vmatprep.subr.mxu0 0.0
          %740 = vmatpush1.msra.mxu0 0.0
          %741 = vmatprep.subr.mxu0 0.0
          %742 = vmatpush1.msra.mxu0 0.0
          %743 = vmatprep.mubr.f32.mxu0 0.0
          %744 = vmatmul.mubr.f32.gmra.mrb[0].mxu0 %v677
          %v745 = vpop.f32.mrb[0].mxu0
          %v746 = vadd.f32 0.0, %v745
          %v747 = vpop.f32.mrb[0].mxu0
          %748 = vdwg.mxu0
          %vm752 = vcmask 1046528
          %v753 = vrot.slane %v293, 1
          %v754 = vrot.slane %v294, 1
          %v755 = vsel %vm752, %v753, %v754
          %v756 = vrot.slane %v295, 1
          %v757 = vsel %vm752, %v754, %v756
          %v761 = vsel %vm422, %v746, 0
          %763 = vmatprep.subr.mxu0 0.0
          %764 = vmatpush1.msra.mxu0 %v755
          %765 = vmatprep.subr.mxu0 0.0
          %766 = vmatpush1.msra.mxu0 %v757
          %767 = vmatprep.subr.mxu0 0.0
          %768 = vmatpush1.msra.mxu0 0.0
          %769 = vmatprep.subr.mxu0 0.0
          %770 = vmatpush1.msra.mxu0 0.0
          %771 = vmatprep.subr.mxu0 0.0
          %772 = vmatpush1.msra.mxu0 0.0
          %773 = vmatprep.subr.mxu0 0.0
          %774 = vmatpush1.msra.mxu0 0.0
          %775 = vmatprep.subr.mxu0 0.0
          %776 = vmatpush1.msra.mxu0 0.0
          %777 = vmatprep.subr.mxu0 0.0
          %778 = vmatpush1.msra.mxu0 0.0
          %779 = vmatprep.subr.mxu0 0.0
          %780 = vmatpush1.msra.mxu0 0.0
          %781 = vmatprep.subr.mxu0 0.0
          %782 = vmatpush1.msra.mxu0 0.0
          %783 = vmatprep.subr.mxu0 0.0
          %784 = vmatpush1.msra.mxu0 0.0
          %785 = vmatprep.subr.mxu0 0.0
          %786 = vmatpush1.msra.mxu0 0.0
          %787 = vmatprep.subr.mxu0 0.0
          %788 = vmatpush1.msra.mxu0 0.0
          %789 = vmatprep.subr.mxu0 0.0
          %790 = vmatpush1.msra.mxu0 0.0
          %791 = vmatprep.subr.mxu0 0.0
          %792 = vmatpush1.msra.mxu0 0.0
          %793 = vmatprep.subr.mxu0 0.0
          %794 = vmatpush1.msra.mxu0 0.0
          %795 = vmatprep.subr.mxu0 0.0
          %796 = vmatpush1.msra.mxu0 0.0
          %797 = vmatprep.subr.mxu0 0.0
          %798 = vmatpush1.msra.mxu0 0.0
          %799 = vmatprep.subr.mxu0 0.0
          %800 = vmatpush1.msra.mxu0 0.0
          %801 = vmatprep.subr.mxu0 0.0
          %802 = vmatpush1.msra.mxu0 0.0
          %803 = vmatprep.subr.mxu0 0.0
          %804 = vmatpush1.msra.mxu0 0.0
          %805 = vmatprep.subr.mxu0 0.0
          %806 = vmatpush1.msra.mxu0 0.0
          %807 = vmatprep.subr.mxu0 0.0
          %808 = vmatpush1.msra.mxu0 0.0
          %809 = vmatprep.subr.mxu0 0.0
          %810 = vmatpush1.msra.mxu0 0.0
          %811 = vmatprep.subr.mxu0 0.0
          %812 = vmatpush1.msra.mxu0 0.0
          %813 = vmatprep.subr.mxu0 0.0
          %814 = vmatpush1.msra.mxu0 0.0
          %815 = vmatprep.subr.mxu0 0.0
          %816 = vmatpush1.msra.mxu0 0.0
          %817 = vmatprep.subr.mxu0 0.0
          %818 = vmatpush1.msra.mxu0 0.0
          %819 = vmatprep.subr.mxu0 0.0
          %820 = vmatpush1.msra.mxu0 0.0
          %821 = vmatprep.subr.mxu0 0.0
          %822 = vmatpush1.msra.mxu0 0.0
          %823 = vmatprep.subr.mxu0 0.0
          %824 = vmatpush1.msra.mxu0 0.0
          %825 = vmatprep.subr.mxu0 0.0
          %826 = vmatpush1.msra.mxu0 0.0
          %827 = vmatprep.mubr.f32.mxu0 0.0
          %828 = vmatmul.mubr.f32.gmra.mrb[0].mxu0 %v761
          %v829 = vpop.f32.mrb[0].mxu0
          %v830 = vadd.f32 0.0, %v829
          %v831 = vpop.f32.mrb[0].mxu0
          %832 = vdwg.mxu0
          %v835 = vrot.slane %v291, 1
          %v836 = vrot.slane %v292, 1
          %v837 = vsel %vm752, %v835, %v836
          %v838 = vsel %vm752, %v836, %v753
          %v842 = vsel %vm422, %v580, 0
          %844 = vmatprep.subr.mxu0 0.0
          %845 = vmatpush1.msra.mxu0 %v837
          %846 = vmatprep.subr.mxu0 0.0
          %847 = vmatpush1.msra.mxu0 %v838
          %848 = vmatprep.subr.mxu0 0.0
          %849 = vmatpush1.msra.mxu0 0.0
          %850 = vmatprep.subr.mxu0 0.0
          %851 = vmatpush1.msra.mxu0 0.0
          %852 = vmatprep.subr.mxu0 0.0
          %853 = vmatpush1.msra.mxu0 0.0
          %854 = vmatprep.subr.mxu0 0.0
          %855 = vmatpush1.msra.mxu0 0.0
          %856 = vmatprep.subr.mxu0 0.0
          %857 = vmatpush1.msra.mxu0 0.0
          %858 = vmatprep.subr.mxu0 0.0
          %859 = vmatpush1.msra.mxu0 0.0
          %860 = vmatprep.subr.mxu0 0.0
          %861 = vmatpush1.msra.mxu0 0.0
          %862 = vmatprep.subr.mxu0 0.0
          %863 = vmatpush1.msra.mxu0 0.0
          %864 = vmatprep.subr.mxu0 0.0
          %865 = vmatpush1.msra.mxu0 0.0
          %866 = vmatprep.subr.mxu0 0.0
          %867 = vmatpush1.msra.mxu0 0.0
          %868 = vmatprep.subr.mxu0 0.0
          %869 = vmatpush1.msra.mxu0 0.0
          %870 = vmatprep.subr.mxu0 0.0
          %871 = vmatpush1.msra.mxu0 0.0
          %872 = vmatprep.subr.mxu0 0.0
          %873 = vmatpush1.msra.mxu0 0.0
          %874 = vmatprep.subr.mxu0 0.0
          %875 = vmatpush1.msra.mxu0 0.0
          %876 = vmatprep.subr.mxu0 0.0
          %877 = vmatpush1.msra.mxu0 0.0
          %878 = vmatprep.subr.mxu0 0.0
          %879 = vmatpush1.msra.mxu0 0.0
          %880 = vmatprep.subr.mxu0 0.0
          %881 = vmatpush1.msra.mxu0 0.0
          %882 = vmatprep.subr.mxu0 0.0
          %883 = vmatpush1.msra.mxu0 0.0
          %884 = vmatprep.subr.mxu0 0.0
          %885 = vmatpush1.msra.mxu0 0.0
          %886 = vmatprep.subr.mxu0 0.0
          %887 = vmatpush1.msra.mxu0 0.0
          %888 = vmatprep.subr.mxu0 0.0
          %889 = vmatpush1.msra.mxu0 0.0
          %890 = vmatprep.subr.mxu0 0.0
          %891 = vmatpush1.msra.mxu0 0.0
          %892 = vmatprep.subr.mxu0 0.0
          %893 = vmatpush1.msra.mxu0 0.0
          %894 = vmatprep.subr.mxu0 0.0
          %895 = vmatpush1.msra.mxu0 0.0
          %896 = vmatprep.subr.mxu0 0.0
          %897 = vmatpush1.msra.mxu0 0.0
          %898 = vmatprep.subr.mxu0 0.0
          %899 = vmatpush1.msra.mxu0 0.0
          %900 = vmatprep.subr.mxu0 0.0
          %901 = vmatpush1.msra.mxu0 0.0
          %902 = vmatprep.subr.mxu0 0.0
          %903 = vmatpush1.msra.mxu0 0.0
          %904 = vmatprep.subr.mxu0 0.0
          %905 = vmatpush1.msra.mxu0 0.0
          %906 = vmatprep.subr.mxu0 0.0
          %907 = vmatpush1.msra.mxu0 0.0
          %908 = vmatprep.mubr.f32.mxu0 0.0
          %909 = vmatmul.mubr.f32.gmra.mrb[0].mxu0 %v842
          %v910 = vpop.f32.mrb[0].mxu0
          %v911 = vadd.f32 %v830, %v910
          %v912 = vpop.f32.mrb[0].mxu0
          %913 = vdwg.mxu0
          %914 = vrot.lane.b32.xlu0 %v418, 96
          %v915 = vpop.permute.xlu0 %914
          %916 = vrot.lane.b32.xlu0 %v408, 32
          %v917 = vpop.permute.xlu0 %916
          %v918 = vsel %vm422, %v915, 0
          %v920 = vsel %vm422, %v917, 0
          %922 = vmatprep.subr.mxu0 0.0
          %923 = vmatpush1.xpose.msra.mxu0 %v920
          %924 = vmatprep.subr.mxu0 0.0
          %925 = vmatpush1.xpose.msra.mxu0 0.0
          %926 = vmatprep.subr.mxu0 0.0
          %927 = vmatpush1.xpose.msra.mxu0 0.0
          %928 = vmatprep.subr.mxu0 0.0
          %929 = vmatpush1.xpose.msra.mxu0 0.0
          %930 = vmatprep.subr.mxu0 0.0
          %931 = vmatpush1.xpose.msra.mxu0 0.0
          %932 = vmatprep.subr.mxu0 0.0
          %933 = vmatpush1.xpose.msra.mxu0 0.0
          %934 = vmatprep.subr.mxu0 0.0
          %935 = vmatpush1.xpose.msra.mxu0 0.0
          %936 = vmatprep.subr.mxu0 0.0
          %937 = vmatpush1.xpose.msra.mxu0 0.0
          %938 = vmatprep.subr.mxu0 0.0
          %939 = vmatpush1.xpose.msra.mxu0 0.0
          %940 = vmatprep.subr.mxu0 0.0
          %941 = vmatpush1.xpose.msra.mxu0 0.0
          %942 = vmatprep.subr.mxu0 0.0
          %943 = vmatpush1.xpose.msra.mxu0 0.0
          %944 = vmatprep.subr.mxu0 0.0
          %945 = vmatpush1.xpose.msra.mxu0 0.0
          %946 = vmatprep.subr.mxu0 0.0
          %947 = vmatpush1.xpose.msra.mxu0 0.0
          %948 = vmatprep.subr.mxu0 0.0
          %949 = vmatpush1.xpose.msra.mxu0 0.0
          %950 = vmatprep.subr.mxu0 0.0
          %951 = vmatpush1.xpose.msra.mxu0 0.0
          %952 = vmatprep.subr.mxu0 0.0
          %953 = vmatpush1.xpose.msra.mxu0 0.0
          %954 = vmatprep.subr.mxu0 0.0
          %955 = vmatpush1.xpose.msra.mxu0 0.0
          %956 = vmatprep.subr.mxu0 0.0
          %957 = vmatpush1.xpose.msra.mxu0 0.0
          %958 = vmatprep.subr.mxu0 0.0
          %959 = vmatpush1.xpose.msra.mxu0 0.0
          %960 = vmatprep.subr.mxu0 0.0
          %961 = vmatpush1.xpose.msra.mxu0 0.0
          %962 = vmatprep.subr.mxu0 0.0
          %963 = vmatpush1.xpose.msra.mxu0 0.0
          %964 = vmatprep.subr.mxu0 0.0
          %965 = vmatpush1.xpose.msra.mxu0 0.0
          %966 = vmatprep.subr.mxu0 0.0
          %967 = vmatpush1.xpose.msra.mxu0 0.0
          %968 = vmatprep.subr.mxu0 0.0
          %969 = vmatpush1.xpose.msra.mxu0 0.0
          %970 = vmatprep.subr.mxu0 0.0
          %971 = vmatpush1.xpose.msra.mxu0 0.0
          %972 = vmatprep.subr.mxu0 0.0
          %973 = vmatpush1.xpose.msra.mxu0 0.0
          %974 = vmatprep.subr.mxu0 0.0
          %975 = vmatpush1.xpose.msra.mxu0 0.0
          %976 = vmatprep.subr.mxu0 0.0
          %977 = vmatpush1.xpose.msra.mxu0 0.0
          %978 = vmatprep.subr.mxu0 0.0
          %979 = vmatpush1.xpose.msra.mxu0 0.0
          %980 = vmatprep.subr.mxu0 0.0
          %981 = vmatpush1.xpose.msra.mxu0 0.0
          %982 = vmatprep.subr.mxu0 0.0
          %983 = vmatpush1.xpose.msra.mxu0 0.0
          %984 = vmatprep.subr.mxu0 0.0
          %985 = vmatpush1.xpose.msra.mxu0 0.0
          %986 = vmatprep.mubr.f32.mxu0 0.0
          %987 = vmatmul.mubr.f32.gmra.mrb[0].mxu0 %v918
          %v988 = vpop.f32.mrb[0].mxu0
          %v989 = vadd.f32 0.0, %v988
          %v990 = vpop.f32.mrb[0].mxu0
          %991 = vdwg.mxu0
          %v992 = vsel %vm498, %v989, -inf
          %993 = vmax.xlane.f32.xlu0 %v992
          %v994 = vpop.xlane.xlu0 %993
          %v995 = vsub.f32 %v989, %v994
          %v996 = vmul.f32 %v995, 1.442695
          %v997 = vpow.pop %v996
          %v998 = vsel %vm498, %v997, 0.0
          %999 = vadd.xlane.f32.xlu0 %v998
          %v1000 = vpop.xlane.xlu0 %999
          %v1001 = vrcp.pop %v1000
          %v1002 = vmul.f32 %v997, %v1001
          %1003 = vrot.lane.b32.xlu0 %v410, 96
          %v1004 = vpop.permute.xlu0 %1003
          %v1007 = vsel %vm498, %v1002, 0
          %1009 = vmatprep.subr.mxu0 0.0
          %1010 = vmatpush1.msra.mxu0 %v1004
          %1011 = vmatprep.subr.mxu0 0.0
          %1012 = vmatpush1.msra.mxu0 0.0
          %1013 = vmatprep.subr.mxu0 0.0
          %1014 = vmatpush1.msra.mxu0 0.0
          %1015 = vmatprep.subr.mxu0 0.0
          %1016 = vmatpush1.msra.mxu0 0.0
          %1017 = vmatprep.subr.mxu0 0.0
          %1018 = vmatpush1.msra.mxu0 0.0
          %1019 = vmatprep.subr.mxu0 0.0
          %1020 = vmatpush1.msra.mxu0 0.0
          %1021 = vmatprep.subr.mxu0 0.0
          %1022 = vmatpush1.msra.mxu0 0.0
          %1023 = vmatprep.subr.mxu0 0.0
          %1024 = vmatpush1.msra.mxu0 0.0
          %1025 = vmatprep.subr.mxu0 0.0
          %1026 = vmatpush1.msra.mxu0 0.0
          %1027 = vmatprep.subr.mxu0 0.0
          %1028 = vmatpush1.msra.mxu0 0.0
          %1029 = vmatprep.subr.mxu0 0.0
          %1030 = vmatpush1.msra.mxu0 0.0
          %1031 = vmatprep.subr.mxu0 0.0
          %1032 = vmatpush1.msra.mxu0 0.0
          %1033 = vmatprep.subr.mxu0 0.0
          %1034 = vmatpush1.msra.mxu0 0.0
          %1035 = vmatprep.subr.mxu0 0.0
          %1036 = vmatpush1.msra.mxu0 0.0
          %1037 = vmatprep.subr.mxu0 0.0
          %1038 = vmatpush1.msra.mxu0 0.0
          %1039 = vmatprep.subr.mxu0 0.0
          %1040 = vmatpush1.msra.mxu0 0.0
          %1041 = vmatprep.subr.mxu0 0.0
          %1042 = vmatpush1.msra.mxu0 0.0
          %1043 = vmatprep.subr.mxu0 0.0
          %1044 = vmatpush1.msra.mxu0 0.0
          %1045 = vmatprep.subr.mxu0 0.0
          %1046 = vmatpush1.msra.mxu0 0.0
          %1047 = vmatprep.subr.mxu0 0.0
          %1048 = vmatpush1.msra.mxu0 0.0
          %1049 = vmatprep.subr.mxu0 0.0
          %1050 = vmatpush1.msra.mxu0 0.0
          %1051 = vmatprep.subr.mxu0 0.0
          %1052 = vmatpush1.msra.mxu0 0.0
          %1053 = vmatprep.subr.mxu0 0.0
          %1054 = vmatpush1.msra.mxu0 0.0
          %1055 = vmatprep.subr.mxu0 0.0
          %1056 = vmatpush1.msra.mxu0 0.0
          %1057 = vmatprep.subr.mxu0 0.0
          %1058 = vmatpush1.msra.mxu0 0.0
          %1059 = vmatprep.subr.mxu0 0.0
          %1060 = vmatpush1.msra.mxu0 0.0
          %1061 = vmatprep.subr.mxu0 0.0
          %1062 = vmatpush1.msra.mxu0 0.0
          %1063 = vmatprep.subr.mxu0 0.0
          %1064 = vmatpush1.msra.mxu0 0.0
          %1065 = vmatprep.subr.mxu0 0.0
          %1066 = vmatpush1.msra.mxu0 0.0
          %1067 = vmatprep.subr.mxu0 0.0
          %1068 = vmatpush1.msra.mxu0 0.0
          %1069 = vmatprep.subr.mxu0 0.0
          %1070 = vmatpush1.msra.mxu0 0.0
          %1071 = vmatprep.subr.mxu0 0.0
          %1072 = vmatpush1.msra.mxu0 0.0
          %1073 = vmatprep.mubr.f32.mxu0 0.0
          %1074 = vmatmul.mubr.f32.gmra.mrb[0].mxu0 %v1007
          %v1075 = vpop.f32.mrb[0].mxu0
          %v1076 = vadd.f32 0.0, %v1075
          %v1077 = vpop.f32.mrb[0].mxu0
          %1078 = vdwg.mxu0
          %v1081 = vrot.slane %v296, 1
          %v1082 = vsel %vm752, %v756, %v1081
          %v1083 = vrot.slane %v297, 1
          %v1084 = vsel %vm752, %v1081, %v1083
          %v1088 = vsel %vm422, %v1076, 0
          %1090 = vmatprep.subr.mxu0 0.0
          %1091 = vmatpush1.msra.mxu0 %v1082
          %1092 = vmatprep.subr.mxu0 0.0
          %1093 = vmatpush1.msra.mxu0 %v1084
          %1094 = vmatprep.subr.mxu0 0.0
          %1095 = vmatpush1.msra.mxu0 0.0
          %1096 = vmatprep.subr.mxu0 0.0
          %1097 = vmatpush1.msra.mxu0 0.0
          %1098 = vmatprep.subr.mxu0 0.0
          %1099 = vmatpush1.msra.mxu0 0.0
          %1100 = vmatprep.subr.mxu0 0.0
          %1101 = vmatpush1.msra.mxu0 0.0
          %1102 = vmatprep.subr.mxu0 0.0
          %1103 = vmatpush1.msra.mxu0 0.0
          %1104 = vmatprep.subr.mxu0 0.0
          %1105 = vmatpush1.msra.mxu0 0.0
          %1106 = vmatprep.subr.mxu0 0.0
          %1107 = vmatpush1.msra.mxu0 0.0
          %1108 = vmatprep.subr.mxu0 0.0
          %1109 = vmatpush1.msra.mxu0 0.0
          %1110 = vmatprep.subr.mxu0 0.0
          %1111 = vmatpush1.msra.mxu0 0.0
          %1112 = vmatprep.subr.mxu0 0.0
          %1113 = vmatpush1.msra.mxu0 0.0
          %1114 = vmatprep.subr.mxu0 0.0
          %1115 = vmatpush1.msra.mxu0 0.0
          %1116 = vmatprep.subr.mxu0 0.0
          %1117 = vmatpush1.msra.mxu0 0.0
          %1118 = vmatprep.subr.mxu0 0.0
          %1119 = vmatpush1.msra.mxu0 0.0
          %1120 = vmatprep.subr.mxu0 0.0
          %1121 = vmatpush1.msra.mxu0 0.0
          %1122 = vmatprep.subr.mxu0 0.0
          %1123 = vmatpush1.msra.mxu0 0.0
          %1124 = vmatprep.subr.mxu0 0.0
          %1125 = vmatpush1.msra.mxu0 0.0
          %1126 = vmatprep.subr.mxu0 0.0
          %1127 = vmatpush1.msra.mxu0 0.0
          %1128 = vmatprep.subr.mxu0 0.0
          %1129 = vmatpush1.msra.mxu0 0.0
          %1130 = vmatprep.subr.mxu0 0.0
          %1131 = vmatpush1.msra.mxu0 0.0
          %1132 = vmatprep.subr.mxu0 0.0
          %1133 = vmatpush1.msra.mxu0 0.0
          %1134 = vmatprep.subr.mxu0 0.0
          %1135 = vmatpush1.msra.mxu0 0.0
          %1136 = vmatprep.subr.mxu0 0.0
          %1137 = vmatpush1.msra.mxu0 0.0
          %1138 = vmatprep.subr.mxu0 0.0
          %1139 = vmatpush1.msra.mxu0 0.0
          %1140 = vmatprep.subr.mxu0 0.0
          %1141 = vmatpush1.msra.mxu0 0.0
          %1142 = vmatprep.subr.mxu0 0.0
          %1143 = vmatpush1.msra.mxu0 0.0
          %1144 = vmatprep.subr.mxu0 0.0
          %1145 = vmatpush1.msra.mxu0 0.0
          %1146 = vmatprep.subr.mxu0 0.0
          %1147 = vmatpush1.msra.mxu0 0.0
          %1148 = vmatprep.subr.mxu0 0.0
          %1149 = vmatpush1.msra.mxu0 0.0
          %1150 = vmatprep.subr.mxu0 0.0
          %1151 = vmatpush1.msra.mxu0 0.0
          %1152 = vmatprep.subr.mxu0 0.0
          %1153 = vmatpush1.msra.mxu0 0.0
          %1154 = vmatprep.mubr.f32.mxu0 0.0
          %1155 = vmatmul.mubr.f32.gmra.mrb[0].mxu0 %v1088
          %v1156 = vpop.f32.mrb[0].mxu0
          %v1157 = vadd.f32 0.0, %v1156
          %v1158 = vpop.f32.mrb[0].mxu0
          %1159 = vdwg.mxu0
          %v1160 = vadd.f32 %v911, %v1157
          %1161 = vrot.lane.b32.xlu0 %v418, 80
          %v1162 = vpop.permute.xlu0 %1161
          %1163 = vrot.lane.b32.xlu0 %v408, 16
          %v1164 = vpop.permute.xlu0 %1163
          %v1165 = vsel %vm422, %v1162, 0
          %v1167 = vsel %vm422, %v1164, 0
          %1169 = vmatprep.subr.mxu0 0.0
          %1170 = vmatpush1.xpose.msra.mxu0 %v1167
          %1171 = vmatprep.subr.mxu0 0.0
          %1172 = vmatpush1.xpose.msra.mxu0 0.0
          %1173 = vmatprep.subr.mxu0 0.0
          %1174 = vmatpush1.xpose.msra.mxu0 0.0
          %1175 = vmatprep.subr.mxu0 0.0
          %1176 = vmatpush1.xpose.msra.mxu0 0.0
          %1177 = vmatprep.subr.mxu0 0.0
          %1178 = vmatpush1.xpose.msra.mxu0 0.0
          %1179 = vmatprep.subr.mxu0 0.0
          %1180 = vmatpush1.xpose.msra.mxu0 0.0
          %1181 = vmatprep.subr.mxu0 0.0
          %1182 = vmatpush1.xpose.msra.mxu0 0.0
          %1183 = vmatprep.subr.mxu0 0.0
          %1184 = vmatpush1.xpose.msra.mxu0 0.0
          %1185 = vmatprep.subr.mxu0 0.0
          %1186 = vmatpush1.xpose.msra.mxu0 0.0
          %1187 = vmatprep.subr.mxu0 0.0
          %1188 = vmatpush1.xpose.msra.mxu0 0.0
          %1189 = vmatprep.subr.mxu0 0.0
          %1190 = vmatpush1.xpose.msra.mxu0 0.0
          %1191 = vmatprep.subr.mxu0 0.0
          %1192 = vmatpush1.xpose.msra.mxu0 0.0
          %1193 = vmatprep.subr.mxu0 0.0
          %1194 = vmatpush1.xpose.msra.mxu0 0.0
          %1195 = vmatprep.subr.mxu0 0.0
          %1196 = vmatpush1.xpose.msra.mxu0 0.0
          %1197 = vmatprep.subr.mxu0 0.0
          %1198 = vmatpush1.xpose.msra.mxu0 0.0
          %1199 = vmatprep.subr.mxu0 0.0
          %1200 = vmatpush1.xpose.msra.mxu0 0.0
          %1201 = vmatprep.subr.mxu0 0.0
          %1202 = vmatpush1.xpose.msra.mxu0 0.0
          %1203 = vmatprep.subr.mxu0 0.0
          %1204 = vmatpush1.xpose.msra.mxu0 0.0
          %1205 = vmatprep.subr.mxu0 0.0
          %1206 = vmatpush1.xpose.msra.mxu0 0.0
          %1207 = vmatprep.subr.mxu0 0.0
          %1208 = vmatpush1.xpose.msra.mxu0 0.0
          %1209 = vmatprep.subr.mxu0 0.0
          %1210 = vmatpush1.xpose.msra.mxu0 0.0
          %1211 = vmatprep.subr.mxu0 0.0
          %1212 = vmatpush1.xpose.msra.mxu0 0.0
          %1213 = vmatprep.subr.mxu0 0.0
          %1214 = vmatpush1.xpose.msra.mxu0 0.0
          %1215 = vmatprep.subr.mxu0 0.0
          %1216 = vmatpush1.xpose.msra.mxu0 0.0
          %1217 = vmatprep.subr.mxu0 0.0
          %1218 = vmatpush1.xpose.msra.mxu0 0.0
          %1219 = vmatprep.subr.mxu0 0.0
          %1220 = vmatpush1.xpose.msra.mxu0 0.0
          %1221 = vmatprep.subr.mxu0 0.0
          %1222 = vmatpush1.xpose.msra.mxu0 0.0
          %1223 = vmatprep.subr.mxu0 0.0
          %1224 = vmatpush1.xpose.msra.mxu0 0.0
          %1225 = vmatprep.subr.mxu0 0.0
          %1226 = vmatpush1.xpose.msra.mxu0 0.0
          %1227 = vmatprep.subr.mxu0 0.0
          %1228 = vmatpush1.xpose.msra.mxu0 0.0
          %1229 = vmatprep.subr.mxu0 0.0
          %1230 = vmatpush1.xpose.msra.mxu0 0.0
          %1231 = vmatprep.subr.mxu0 0.0
          %1232 = vmatpush1.xpose.msra.mxu0 0.0
          %1233 = vmatprep.mubr.f32.mxu0 0.0
          %1234 = vmatmul.mubr.f32.gmra.mrb[0].mxu0 %v1165
          %v1235 = vpop.f32.mrb[0].mxu0
          %v1236 = vadd.f32 0.0, %v1235
          %v1237 = vpop.f32.mrb[0].mxu0
          %1238 = vdwg.mxu0
          %v1239 = vsel %vm498, %v1236, -inf
          %1240 = vmax.xlane.f32.xlu0 %v1239
          %v1241 = vpop.xlane.xlu0 %1240
          %v1242 = vsub.f32 %v1236, %v1241
          %v1243 = vmul.f32 %v1242, 1.442695
          %v1244 = vpow.pop %v1243
          %v1245 = vsel %vm498, %v1244, 0.0
          %1246 = vadd.xlane.f32.xlu0 %v1245
          %v1247 = vpop.xlane.xlu0 %1246
          %v1248 = vrcp.pop %v1247
          %v1249 = vmul.f32 %v1244, %v1248
          %1250 = vrot.lane.b32.xlu0 %v410, 80
          %v1251 = vpop.permute.xlu0 %1250
          %v1254 = vsel %vm498, %v1249, 0
          %1256 = vmatprep.subr.mxu0 0.0
          %1257 = vmatpush1.msra.mxu0 %v1251
          %1258 = vmatprep.subr.mxu0 0.0
          %1259 = vmatpush1.msra.mxu0 0.0
          %1260 = vmatprep.subr.mxu0 0.0
          %1261 = vmatpush1.msra.mxu0 0.0
          %1262 = vmatprep.subr.mxu0 0.0
          %1263 = vmatpush1.msra.mxu0 0.0
          %1264 = vmatprep.subr.mxu0 0.0
          %1265 = vmatpush1.msra.mxu0 0.0
          %1266 = vmatprep.subr.mxu0 0.0
          %1267 = vmatpush1.msra.mxu0 0.0
          %1268 = vmatprep.subr.mxu0 0.0
          %1269 = vmatpush1.msra.mxu0 0.0
          %1270 = vmatprep.subr.mxu0 0.0
          %1271 = vmatpush1.msra.mxu0 0.0
          %1272 = vmatprep.subr.mxu0 0.0
          %1273 = vmatpush1.msra.mxu0 0.0
          %1274 = vmatprep.subr.mxu0 0.0
          %1275 = vmatpush1.msra.mxu0 0.0
          %1276 = vmatprep.subr.mxu0 0.0
          %1277 = vmatpush1.msra.mxu0 0.0
          %1278 = vmatprep.subr.mxu0 0.0
          %1279 = vmatpush1.msra.mxu0 0.0
          %1280 = vmatprep.subr.mxu0 0.0
          %1281 = vmatpush1.msra.mxu0 0.0
          %1282 = vmatprep.subr.mxu0 0.0
          %1283 = vmatpush1.msra.mxu0 0.0
          %1284 = vmatprep.subr.mxu0 0.0
          %1285 = vmatpush1.msra.mxu0 0.0
          %1286 = vmatprep.subr.mxu0 0.0
          %1287 = vmatpush1.msra.mxu0 0.0
          %1288 = vmatprep.subr.mxu0 0.0
          %1289 = vmatpush1.msra.mxu0 0.0
          %1290 = vmatprep.subr.mxu0 0.0
          %1291 = vmatpush1.msra.mxu0 0.0
          %1292 = vmatprep.subr.mxu0 0.0
          %1293 = vmatpush1.msra.mxu0 0.0
          %1294 = vmatprep.subr.mxu0 0.0
          %1295 = vmatpush1.msra.mxu0 0.0
          %1296 = vmatprep.subr.mxu0 0.0
          %1297 = vmatpush1.msra.mxu0 0.0
          %1298 = vmatprep.subr.mxu0 0.0
          %1299 = vmatpush1.msra.mxu0 0.0
          %1300 = vmatprep.subr.mxu0 0.0
          %1301 = vmatpush1.msra.mxu0 0.0
          %1302 = vmatprep.subr.mxu0 0.0
          %1303 = vmatpush1.msra.mxu0 0.0
          %1304 = vmatprep.subr.mxu0 0.0
          %1305 = vmatpush1.msra.mxu0 0.0
          %1306 = vmatprep.subr.mxu0 0.0
          %1307 = vmatpush1.msra.mxu0 0.0
          %1308 = vmatprep.subr.mxu0 0.0
          %1309 = vmatpush1.msra.mxu0 0.0
          %1310 = vmatprep.subr.mxu0 0.0
          %1311 = vmatpush1.msra.mxu0 0.0
          %1312 = vmatprep.subr.mxu0 0.0
          %1313 = vmatpush1.msra.mxu0 0.0
          %1314 = vmatprep.subr.mxu0 0.0
          %1315 = vmatpush1.msra.mxu0 0.0
          %1316 = vmatprep.subr.mxu0 0.0
          %1317 = vmatpush1.msra.mxu0 0.0
          %1318 = vmatprep.subr.mxu0 0.0
          %1319 = vmatpush1.msra.mxu0 0.0
          %1320 = vmatprep.mubr.f32.mxu0 0.0
          %1321 = vmatmul.mubr.f32.gmra.mrb[0].mxu0 %v1254
          %v1322 = vpop.f32.mrb[0].mxu0
          %v1323 = vadd.f32 0.0, %v1322
          %v1324 = vpop.f32.mrb[0].mxu0
          %1325 = vdwg.mxu0
          %v1328 = vrot.slane %v298, 1
          %v1329 = vsel %vm752, %v1083, %v1328
          %v1330 = vrot.slane %v299, 1
          %v1331 = vsel %vm752, %v1328, %v1330
          %v1335 = vsel %vm422, %v1323, 0
          %1337 = vmatprep.subr.mxu0 0.0
          %1338 = vmatpush1.msra.mxu0 %v1329
          %1339 = vmatprep.subr.mxu0 0.0
          %1340 = vmatpush1.msra.mxu0 %v1331
          %1341 = vmatprep.subr.mxu0 0.0
          %1342 = vmatpush1.msra.mxu0 0.0
          %1343 = vmatprep.subr.mxu0 0.0
          %1344 = vmatpush1.msra.mxu0 0.0
          %1345 = vmatprep.subr.mxu0 0.0
          %1346 = vmatpush1.msra.mxu0 0.0
          %1347 = vmatprep.subr.mxu0 0.0
          %1348 = vmatpush1.msra.mxu0 0.0
          %1349 = vmatprep.subr.mxu0 0.0
          %1350 = vmatpush1.msra.mxu0 0.0
          %1351 = vmatprep.subr.mxu0 0.0
          %1352 = vmatpush1.msra.mxu0 0.0
          %1353 = vmatprep.subr.mxu0 0.0
          %1354 = vmatpush1.msra.mxu0 0.0
          %1355 = vmatprep.subr.mxu0 0.0
          %1356 = vmatpush1.msra.mxu0 0.0
          %1357 = vmatprep.subr.mxu0 0.0
          %1358 = vmatpush1.msra.mxu0 0.0
          %1359 = vmatprep.subr.mxu0 0.0
          %1360 = vmatpush1.msra.mxu0 0.0
          %1361 = vmatprep.subr.mxu0 0.0
          %1362 = vmatpush1.msra.mxu0 0.0
          %1363 = vmatprep.subr.mxu0 0.0
          %1364 = vmatpush1.msra.mxu0 0.0
          %1365 = vmatprep.subr.mxu0 0.0
          %1366 = vmatpush1.msra.mxu0 0.0
          %1367 = vmatprep.subr.mxu0 0.0
          %1368 = vmatpush1.msra.mxu0 0.0
          %1369 = vmatprep.subr.mxu0 0.0
          %1370 = vmatpush1.msra.mxu0 0.0
          %1371 = vmatprep.subr.mxu0 0.0
          %1372 = vmatpush1.msra.mxu0 0.0
          %1373 = vmatprep.subr.mxu0 0.0
          %1374 = vmatpush1.msra.mxu0 0.0
          %1375 = vmatprep.subr.mxu0 0.0
          %1376 = vmatpush1.msra.mxu0 0.0
          %1377 = vmatprep.subr.mxu0 0.0
          %1378 = vmatpush1.msra.mxu0 0.0
          %1379 = vmatprep.subr.mxu0 0.0
          %1380 = vmatpush1.msra.mxu0 0.0
          %1381 = vmatprep.subr.mxu0 0.0
          %1382 = vmatpush1.msra.mxu0 0.0
          %1383 = vmatprep.subr.mxu0 0.0
          %1384 = vmatpush1.msra.mxu0 0.0
          %1385 = vmatprep.subr.mxu0 0.0
          %1386 = vmatpush1.msra.mxu0 0.0
          %1387 = vmatprep.subr.mxu0 0.0
          %1388 = vmatpush1.msra.mxu0 0.0
          %1389 = vmatprep.subr.mxu0 0.0
          %1390 = vmatpush1.msra.mxu0 0.0
          %1391 = vmatprep.subr.mxu0 0.0
          %1392 = vmatpush1.msra.mxu0 0.0
          %1393 = vmatprep.subr.mxu0 0.0
          %1394 = vmatpush1.msra.mxu0 0.0
          %1395 = vmatprep.subr.mxu0 0.0
          %1396 = vmatpush1.msra.mxu0 0.0
          %1397 = vmatprep.subr.mxu0 0.0
          %1398 = vmatpush1.msra.mxu0 0.0
          %1399 = vmatprep.subr.mxu0 0.0
          %1400 = vmatpush1.msra.mxu0 0.0
          %1401 = vmatprep.mubr.f32.mxu0 0.0
          %1402 = vmatmul.mubr.f32.gmra.mrb[0].mxu0 %v1335
          %v1403 = vpop.f32.mrb[0].mxu0
          %v1404 = vadd.f32 0.0, %v1403
          %v1405 = vpop.f32.mrb[0].mxu0
          %1406 = vdwg.mxu0
          %v1407 = vadd.f32 %v1160, %v1404
          %v1408 = vmul.f32 %v414, 0.25
          %1410 = vrot.lane.b32.xlu0 %v414, 64
          %v1411 = vpop.permute.xlu0 %1410
          %v1413 = vsel %vm422, %v1408, 0
          %v1415 = vsel %vm422, %v1411, 0
          %1417 = vmatprep.subr.mxu0 0.0
          %1418 = vmatpush1.xpose.msra.mxu0 %v1415
          %1419 = vmatprep.subr.mxu0 0.0
          %1420 = vmatpush1.xpose.msra.mxu0 0.0
          %1421 = vmatprep.subr.mxu0 0.0
          %1422 = vmatpush1.xpose.msra.mxu0 0.0
          %1423 = vmatprep.subr.mxu0 0.0
          %1424 = vmatpush1.xpose.msra.mxu0 0.0
          %1425 = vmatprep.subr.mxu0 0.0
          %1426 = vmatpush1.xpose.msra.mxu0 0.0
          %1427 = vmatprep.subr.mxu0 0.0
          %1428 = vmatpush1.xpose.msra.mxu0 0.0
          %1429 = vmatprep.subr.mxu0 0.0
          %1430 = vmatpush1.xpose.msra.mxu0 0.0
          %1431 = vmatprep.subr.mxu0 0.0
          %1432 = vmatpush1.xpose.msra.mxu0 0.0
          %1433 = vmatprep.subr.mxu0 0.0
          %1434 = vmatpush1.xpose.msra.mxu0 0.0
          %1435 = vmatprep.subr.mxu0 0.0
          %1436 = vmatpush1.xpose.msra.mxu0 0.0
          %1437 = vmatprep.subr.mxu0 0.0
          %1438 = vmatpush1.xpose.msra.mxu0 0.0
          %1439 = vmatprep.subr.mxu0 0.0
          %1440 = vmatpush1.xpose.msra.mxu0 0.0
          %1441 = vmatprep.subr.mxu0 0.0
          %1442 = vmatpush1.xpose.msra.mxu0 0.0
          %1443 = vmatprep.subr.mxu0 0.0
          %1444 = vmatpush1.xpose.msra.mxu0 0.0
          %1445 = vmatprep.subr.mxu0 0.0
          %1446 = vmatpush1.xpose.msra.mxu0 0.0
          %1447 = vmatprep.subr.mxu0 0.0
          %1448 = vmatpush1.xpose.msra.mxu0 0.0
          %1449 = vmatprep.subr.mxu0 0.0
          %1450 = vmatpush1.xpose.msra.mxu0 0.0
          %1451 = vmatprep.subr.mxu0 0.0
          %1452 = vmatpush1.xpose.msra.mxu0 0.0
          %1453 = vmatprep.subr.mxu0 0.0
          %1454 = vmatpush1.xpose.msra.mxu0 0.0
          %1455 = vmatprep.subr.mxu0 0.0
          %1456 = vmatpush1.xpose.msra.mxu0 0.0
          %1457 = vmatprep.subr.mxu0 0.0
          %1458 = vmatpush1.xpose.msra.mxu0 0.0
          %1459 = vmatprep.subr.mxu0 0.0
          %1460 = vmatpush1.xpose.msra.mxu0 0.0
          %1461 = vmatprep.subr.mxu0 0.0
          %1462 = vmatpush1.xpose.msra.mxu0 0.0
          %1463 = vmatprep.subr.mxu0 0.0
          %1464 = vmatpush1.xpose.msra.mxu0 0.0
          %1465 = vmatprep.subr.mxu0 0.0
          %1466 = vmatpush1.xpose.msra.mxu0 0.0
          %1467 = vmatprep.subr.mxu0 0.0
          %1468 = vmatpush1.xpose.msra.mxu0 0.0
          %1469 = vmatprep.subr.mxu0 0.0
          %1470 = vmatpush1.xpose.msra.mxu0 0.0
          %1471 = vmatprep.subr.mxu0 0.0
          %1472 = vmatpush1.xpose.msra.mxu0 0.0
          %1473 = vmatprep.subr.mxu0 0.0
          %1474 = vmatpush1.xpose.msra.mxu0 0.0
          %1475 = vmatprep.subr.mxu0 0.0
          %1476 = vmatpush1.xpose.msra.mxu0 0.0
          %1477 = vmatprep.subr.mxu0 0.0
          %1478 = vmatpush1.xpose.msra.mxu0 0.0
          %1479 = vmatprep.subr.mxu0 0.0
          %1480 = vmatpush1.xpose.msra.mxu0 0.0
          %1481 = vmatprep.mubr.f32.mxu0 0.0
          %1482 = vmatmul.mubr.f32.gmra.mrb[0].mxu0 %v1413
          %v1483 = vpop.f32.mrb[0].mxu0
          %v1484 = vadd.f32 0.0, %v1483
          %v1485 = vpop.f32.mrb[0].mxu0
          %1486 = vdwg.mxu0
          %v1487 = vsel %vm498, %v1484, -inf
          %1488 = vmax.xlane.f32.xlu0 %v1487
          %v1489 = vpop.xlane.xlu0 %1488
          %v1490 = vsub.f32 %v1484, %v1489
          %v1491 = vmul.f32 %v1490, 1.442695
          %v1492 = vpow.pop %v1491
          %v1493 = vsel %vm498, %v1492, 0.0
          %1494 = vadd.xlane.f32.xlu0 %v1493
          %v1495 = vpop.xlane.xlu0 %1494
          %v1496 = vrcp.pop %v1495
          %v1497 = vmul.f32 %v1492, %v1496
          %v1499 = vsel %vm498, %v1497, 0
          %1501 = vmatprep.subr.mxu0 0.0
          %1502 = vmatpush1.msra.mxu0 %v416
          %1503 = vmatprep.subr.mxu0 0.0
          %1504 = vmatpush1.msra.mxu0 0.0
          %1505 = vmatprep.subr.mxu0 0.0
          %1506 = vmatpush1.msra.mxu0 0.0
          %1507 = vmatprep.subr.mxu0 0.0
          %1508 = vmatpush1.msra.mxu0 0.0
          %1509 = vmatprep.subr.mxu0 0.0
          %1510 = vmatpush1.msra.mxu0 0.0
          %1511 = vmatprep.subr.mxu0 0.0
          %1512 = vmatpush1.msra.mxu0 0.0
          %1513 = vmatprep.subr.mxu0 0.0
          %1514 = vmatpush1.msra.mxu0 0.0
          %1515 = vmatprep.subr.mxu0 0.0
          %1516 = vmatpush1.msra.mxu0 0.0
          %1517 = vmatprep.subr.mxu0 0.0
          %1518 = vmatpush1.msra.mxu0 0.0
          %1519 = vmatprep.subr.mxu0 0.0
          %1520 = vmatpush1.msra.mxu0 0.0
          %1521 = vmatprep.subr.mxu0 0.0
          %1522 = vmatpush1.msra.mxu0 0.0
          %1523 = vmatprep.subr.mxu0 0.0
          %1524 = vmatpush1.msra.mxu0 0.0
          %1525 = vmatprep.subr.mxu0 0.0
          %1526 = vmatpush1.msra.mxu0 0.0
          %1527 = vmatprep.subr.mxu0 0.0
          %1528 = vmatpush1.msra.mxu0 0.0
          %1529 = vmatprep.subr.mxu0 0.0
          %1530 = vmatpush1.msra.mxu0 0.0
          %1531 = vmatprep.subr.mxu0 0.0
          %1532 = vmatpush1.msra.mxu0 0.0
          %1533 = vmatprep.subr.mxu0 0.0
          %1534 = vmatpush1.msra.mxu0 0.0
          %1535 = vmatprep.subr.mxu0 0.0
          %1536 = vmatpush1.msra.mxu0 0.0
          %1537 = vmatprep.subr.mxu0 0.0
          %1538 = vmatpush1.msra.mxu0 0.0
          %1539 = vmatprep.subr.mxu0 0.0
          %1540 = vmatpush1.msra.mxu0 0.0
          %1541 = vmatprep.subr.mxu0 0.0
          %1542 = vmatpush1.msra.mxu0 0.0
          %1543 = vmatprep.subr.mxu0 0.0
          %1544 = vmatpush1.msra.mxu0 0.0
          %1545 = vmatprep.subr.mxu0 0.0
          %1546 = vmatpush1.msra.mxu0 0.0
          %1547 = vmatprep.subr.mxu0 0.0
          %1548 = vmatpush1.msra.mxu0 0.0
          %1549 = vmatprep.subr.mxu0 0.0
          %1550 = vmatpush1.msra.mxu0 0.0
          %1551 = vmatprep.subr.mxu0 0.0
          %1552 = vmatpush1.msra.mxu0 0.0
          %1553 = vmatprep.subr.mxu0 0.0
          %1554 = vmatpush1.msra.mxu0 0.0
          %1555 = vmatprep.subr.mxu0 0.0
          %1556 = vmatpush1.msra.mxu0 0.0
          %1557 = vmatprep.subr.mxu0 0.0
          %1558 = vmatpush1.msra.mxu0 0.0
          %1559 = vmatprep.subr.mxu0 0.0
          %1560 = vmatpush1.msra.mxu0 0.0
          %1561 = vmatprep.subr.mxu0 0.0
          %1562 = vmatpush1.msra.mxu0 0.0
          %1563 = vmatprep.subr.mxu0 0.0
          %1564 = vmatpush1.msra.mxu0 0.0
          %1565 = vmatprep.mubr.f32.mxu0 0.0
          %1566 = vmatmul.mubr.f32.gmra.mrb[0].mxu0 %v1499
          %v1567 = vpop.f32.mrb[0].mxu0
          %v1568 = vadd.f32 0.0, %v1567
          %v1569 = vpop.f32.mrb[0].mxu0
          %1570 = vdwg.mxu0
          %1571 = vrot.lane.b32.xlu0 %v1408, 112
          %v1572 = vpop.permute.xlu0 %1571
          %1573 = vrot.lane.b32.xlu0 %v414, 48
          %v1574 = vpop.permute.xlu0 %1573
          %v1575 = vsel %vm422, %v1572, 0
          %v1577 = vsel %vm422, %v1574, 0
          %1579 = vmatprep.subr.mxu0 0.0
          %1580 = vmatpush1.xpose.msra.mxu0 %v1577
          %1581 = vmatprep.subr.mxu0 0.0
          %1582 = vmatpush1.xpose.msra.mxu0 0.0
          %1583 = vmatprep.subr.mxu0 0.0
          %1584 = vmatpush1.xpose.msra.mxu0 0.0
          %1585 = vmatprep.subr.mxu0 0.0
          %1586 = vmatpush1.xpose.msra.mxu0 0.0
          %1587 = vmatprep.subr.mxu0 0.0
          %1588 = vmatpush1.xpose.msra.mxu0 0.0
          %1589 = vmatprep.subr.mxu0 0.0
          %1590 = vmatpush1.xpose.msra.mxu0 0.0
          %1591 = vmatprep.subr.mxu0 0.0
          %1592 = vmatpush1.xpose.msra.mxu0 0.0
          %1593 = vmatprep.subr.mxu0 0.0
          %1594 = vmatpush1.xpose.msra.mxu0 0.0
          %1595 = vmatprep.subr.mxu0 0.0
          %1596 = vmatpush1.xpose.msra.mxu0 0.0
          %1597 = vmatprep.subr.mxu0 0.0
          %1598 = vmatpush1.xpose.msra.mxu0 0.0
          %1599 = vmatprep.subr.mxu0 0.0
          %1600 = vmatpush1.xpose.msra.mxu0 0.0
          %1601 = vmatprep.subr.mxu0 0.0
          %1602 = vmatpush1.xpose.msra.mxu0 0.0
          %1603 = vmatprep.subr.mxu0 0.0
          %1604 = vmatpush1.xpose.msra.mxu0 0.0
          %1605 = vmatprep.subr.mxu0 0.0
          %1606 = vmatpush1.xpose.msra.mxu0 0.0
          %1607 = vmatprep.subr.mxu0 0.0
          %1608 = vmatpush1.xpose.msra.mxu0 0.0
          %1609 = vmatprep.subr.mxu0 0.0
          %1610 = vmatpush1.xpose.msra.mxu0 0.0
          %1611 = vmatprep.subr.mxu0 0.0
          %1612 = vmatpush1.xpose.msra.mxu0 0.0
          %1613 = vmatprep.subr.mxu0 0.0
          %1614 = vmatpush1.xpose.msra.mxu0 0.0
          %1615 = vmatprep.subr.mxu0 0.0
          %1616 = vmatpush1.xpose.msra.mxu0 0.0
          %1617 = vmatprep.subr.mxu0 0.0
          %1618 = vmatpush1.xpose.msra.mxu0 0.0
          %1619 = vmatprep.subr.mxu0 0.0
          %1620 = vmatpush1.xpose.msra.mxu0 0.0
          %1621 = vmatprep.subr.mxu0 0.0
          %1622 = vmatpush1.xpose.msra.mxu0 0.0
          %1623 = vmatprep.subr.mxu0 0.0
          %1624 = vmatpush1.xpose.msra.mxu0 0.0
          %1625 = vmatprep.subr.mxu0 0.0
          %1626 = vmatpush1.xpose.msra.mxu0 0.0
          %1627 = vmatprep.subr.mxu0 0.0
          %1628 = vmatpush1.xpose.msra.mxu0 0.0
          %1629 = vmatprep.subr.mxu0 0.0
          %1630 = vmatpush1.xpose.msra.mxu0 0.0
          %1631 = vmatprep.subr.mxu0 0.0
          %1632 = vmatpush1.xpose.msra.mxu0 0.0
          %1633 = vmatprep.subr.mxu0 0.0
          %1634 = vmatpush1.xpose.msra.mxu0 0.0
          %1635 = vmatprep.subr.mxu0 0.0
          %1636 = vmatpush1.xpose.msra.mxu0 0.0
          %1637 = vmatprep.subr.mxu0 0.0
          %1638 = vmatpush1.xpose.msra.mxu0 0.0
          %1639 = vmatprep.subr.mxu0 0.0
          %1640 = vmatpush1.xpose.msra.mxu0 0.0
          %1641 = vmatprep.subr.mxu0 0.0
          %1642 = vmatpush1.xpose.msra.mxu0 0.0
          %1643 = vmatprep.mubr.f32.mxu0 0.0
          %1644 = vmatmul.mubr.f32.gmra.mrb[0].mxu0 %v1575
          %v1645 = vpop.f32.mrb[0].mxu0
          %v1646 = vadd.f32 0.0, %v1645
          %v1647 = vpop.f32.mrb[0].mxu0
          %1648 = vdwg.mxu0
          %v1649 = vsel %vm498, %v1646, -inf
          %1650 = vmax.xlane.f32.xlu0 %v1649
          %v1651 = vpop.xlane.xlu0 %1650
          %v1652 = vsub.f32 %v1646, %v1651
          %v1653 = vmul.f32 %v1652, 1.442695
          %v1654 = vpow.pop %v1653
          %v1655 = vsel %vm498, %v1654, 0.0
          %1656 = vadd.xlane.f32.xlu0 %v1655
          %v1657 = vpop.xlane.xlu0 %1656
          %v1658 = vrcp.pop %v1657
          %v1659 = vmul.f32 %v1654, %v1658
          %1661 = vrot.lane.b32.xlu0 %v416, 112
          %v1662 = vpop.permute.xlu0 %1661
          %v1665 = vsel %vm498, %v1659, 0
          %1667 = vmatprep.subr.mxu0 0.0
          %1668 = vmatpush1.msra.mxu0 %v1662
          %1669 = vmatprep.subr.mxu0 0.0
          %1670 = vmatpush1.msra.mxu0 0.0
          %1671 = vmatprep.subr.mxu0 0.0
          %1672 = vmatpush1.msra.mxu0 0.0
          %1673 = vmatprep.subr.mxu0 0.0
          %1674 = vmatpush1.msra.mxu0 0.0
          %1675 = vmatprep.subr.mxu0 0.0
          %1676 = vmatpush1.msra.mxu0 0.0
          %1677 = vmatprep.subr.mxu0 0.0
          %1678 = vmatpush1.msra.mxu0 0.0
          %1679 = vmatprep.subr.mxu0 0.0
          %1680 = vmatpush1.msra.mxu0 0.0
          %1681 = vmatprep.subr.mxu0 0.0
          %1682 = vmatpush1.msra.mxu0 0.0
          %1683 = vmatprep.subr.mxu0 0.0
          %1684 = vmatpush1.msra.mxu0 0.0
          %1685 = vmatprep.subr.mxu0 0.0
          %1686 = vmatpush1.msra.mxu0 0.0
          %1687 = vmatprep.subr.mxu0 0.0
          %1688 = vmatpush1.msra.mxu0 0.0
          %1689 = vmatprep.subr.mxu0 0.0
          %1690 = vmatpush1.msra.mxu0 0.0
          %1691 = vmatprep.subr.mxu0 0.0
          %1692 = vmatpush1.msra.mxu0 0.0
          %1693 = vmatprep.subr.mxu0 0.0
          %1694 = vmatpush1.msra.mxu0 0.0
          %1695 = vmatprep.subr.mxu0 0.0
          %1696 = vmatpush1.msra.mxu0 0.0
          %1697 = vmatprep.subr.mxu0 0.0
          %1698 = vmatpush1.msra.mxu0 0.0
          %1699 = vmatprep.subr.mxu0 0.0
          %1700 = vmatpush1.msra.mxu0 0.0
          %1701 = vmatprep.subr.mxu0 0.0
          %1702 = vmatpush1.msra.mxu0 0.0
          %1703 = vmatprep.subr.mxu0 0.0
          %1704 = vmatpush1.msra.mxu0 0.0
          %1705 = vmatprep.subr.mxu0 0.0
          %1706 = vmatpush1.msra.mxu0 0.0
          %1707 = vmatprep.subr.mxu0 0.0
          %1708 = vmatpush1.msra.mxu0 0.0
          %1709 = vmatprep.subr.mxu0 0.0
          %1710 = vmatpush1.msra.mxu0 0.0
          %1711 = vmatprep.subr.mxu0 0.0
          %1712 = vmatpush1.msra.mxu0 0.0
          %1713 = vmatprep.subr.mxu0 0.0
          %1714 = vmatpush1.msra.mxu0 0.0
          %1715 = vmatprep.subr.mxu0 0.0
          %1716 = vmatpush1.msra.mxu0 0.0
          %1717 = vmatprep.subr.mxu0 0.0
          %1718 = vmatpush1.msra.mxu0 0.0
          %1719 = vmatprep.subr.mxu0 0.0
          %1720 = vmatpush1.msra.mxu0 0.0
          %1721 = vmatprep.subr.mxu0 0.0
          %1722 = vmatpush1.msra.mxu0 0.0
          %1723 = vmatprep.subr.mxu0 0.0
          %1724 = vmatpush1.msra.mxu0 0.0
          %1725 = vmatprep.subr.mxu0 0.0
          %1726 = vmatpush1.msra.mxu0 0.0
          %1727 = vmatprep.subr.mxu0 0.0
          %1728 = vmatpush1.msra.mxu0 0.0
          %1729 = vmatprep.subr.mxu0 0.0
          %1730 = vmatpush1.msra.mxu0 0.0
          %1731 = vmatprep.mubr.f32.mxu0 0.0
          %1732 = vmatmul.mubr.f32.gmra.mrb[0].mxu0 %v1665
          %v1733 = vpop.f32.mrb[0].mxu0
          %v1734 = vadd.f32 0.0, %v1733
          %v1735 = vpop.f32.mrb[0].mxu0
          %1736 = vdwg.mxu0
          %v1738 = vsel %vm422, %v1734, 0
          %1740 = vmatprep.subr.mxu0 0.0
          %1741 = vmatpush1.msra.mxu0 %v755
          %1742 = vmatprep.subr.mxu0 0.0
          %1743 = vmatpush1.msra.mxu0 %v757
          %1744 = vmatprep.subr.mxu0 0.0
          %1745 = vmatpush1.msra.mxu0 0.0
          %1746 = vmatprep.subr.mxu0 0.0
          %1747 = vmatpush1.msra.mxu0 0.0
          %1748 = vmatprep.subr.mxu0 0.0
          %1749 = vmatpush1.msra.mxu0 0.0
          %1750 = vmatprep.subr.mxu0 0.0
          %1751 = vmatpush1.msra.mxu0 0.0
          %1752 = vmatprep.subr.mxu0 0.0
          %1753 = vmatpush1.msra.mxu0 0.0
          %1754 = vmatprep.subr.mxu0 0.0
          %1755 = vmatpush1.msra.mxu0 0.0
          %1756 = vmatprep.subr.mxu0 0.0
          %1757 = vmatpush1.msra.mxu0 0.0
          %1758 = vmatprep.subr.mxu0 0.0
          %1759 = vmatpush1.msra.mxu0 0.0
          %1760 = vmatprep.subr.mxu0 0.0
          %1761 = vmatpush1.msra.mxu0 0.0
          %1762 = vmatprep.subr.mxu0 0.0
          %1763 = vmatpush1.msra.mxu0 0.0
          %1764 = vmatprep.subr.mxu0 0.0
          %1765 = vmatpush1.msra.mxu0 0.0
          %1766 = vmatprep.subr.mxu0 0.0
          %1767 = vmatpush1.msra.mxu0 0.0
          %1768 = vmatprep.subr.mxu0 0.0
          %1769 = vmatpush1.msra.mxu0 0.0
          %1770 = vmatprep.subr.mxu0 0.0
          %1771 = vmatpush1.msra.mxu0 0.0
          %1772 = vmatprep.subr.mxu0 0.0
          %1773 = vmatpush1.msra.mxu0 0.0
          %1774 = vmatprep.subr.mxu0 0.0
          %1775 = vmatpush1.msra.mxu0 0.0
          %1776 = vmatprep.subr.mxu0 0.0
          %1777 = vmatpush1.msra.mxu0 0.0
          %1778 = vmatprep.subr.mxu0 0.0
          %1779 = vmatpush1.msra.mxu0 0.0
          %1780 = vmatprep.subr.mxu0 0.0
          %1781 = vmatpush1.msra.mxu0 0.0
          %1782 = vmatprep.subr.mxu0 0.0
          %1783 = vmatpush1.msra.mxu0 0.0
          %1784 = vmatprep.subr.mxu0 0.0
          %1785 = vmatpush1.msra.mxu0 0.0
          %1786 = vmatprep.subr.mxu0 0.0
          %1787 = vmatpush1.msra.mxu0 0.0
          %1788 = vmatprep.subr.mxu0 0.0
          %1789 = vmatpush1.msra.mxu0 0.0
          %1790 = vmatprep.subr.mxu0 0.0
          %1791 = vmatpush1.msra.mxu0 0.0
          %1792 = vmatprep.subr.mxu0 0.0
          %1793 = vmatpush1.msra.mxu0 0.0
          %1794 = vmatprep.subr.mxu0 0.0
          %1795 = vmatpush1.msra.mxu0 0.0
          %1796 = vmatprep.subr.mxu0 0.0
          %1797 = vmatpush1.msra.mxu0 0.0
          %1798 = vmatprep.subr.mxu0 0.0
          %1799 = vmatpush1.msra.mxu0 0.0
          %1800 = vmatprep.subr.mxu0 0.0
          %1801 = vmatpush1.msra.mxu0 0.0
          %1802 = vmatprep.subr.mxu0 0.0
          %1803 = vmatpush1.msra.mxu0 0.0
          %1804 = vmatprep.mubr.f32.mxu0 0.0
          %1805 = vmatmul.mubr.f32.gmra.mrb[0].mxu0 %v1738
          %v1806 = vpop.f32.mrb[0].mxu0
          %v1807 = vadd.f32 0.0, %v1806
          %v1808 = vpop.f32.mrb[0].mxu0
          %1809 = vdwg.mxu0
          %v1811 = vsel %vm422, %v1568, 0
          %1813 = vmatprep.subr.mxu0 0.0
          %1814 = vmatpush1.msra.mxu0 %v837
          %1815 = vmatprep.subr.mxu0 0.0
          %1816 = vmatpush1.msra.mxu0 %v838
          %1817 = vmatprep.subr.mxu0 0.0
          %1818 = vmatpush1.msra.mxu0 0.0
          %1819 = vmatprep.subr.mxu0 0.0
          %1820 = vmatpush1.msra.mxu0 0.0
          %1821 = vmatprep.subr.mxu0 0.0
          %1822 = vmatpush1.msra.mxu0 0.0
          %1823 = vmatprep.subr.mxu0 0.0
          %1824 = vmatpush1.msra.mxu0 0.0
          %1825 = vmatprep.subr.mxu0 0.0
          %1826 = vmatpush1.msra.mxu0 0.0
          %1827 = vmatprep.subr.mxu0 0.0
          %1828 = vmatpush1.msra.mxu0 0.0
          %1829 = vmatprep.subr.mxu0 0.0
          %1830 = vmatpush1.msra.mxu0 0.0
          %1831 = vmatprep.subr.mxu0 0.0
          %1832 = vmatpush1.msra.mxu0 0.0
          %1833 = vmatprep.subr.mxu0 0.0
          %1834 = vmatpush1.msra.mxu0 0.0
          %1835 = vmatprep.subr.mxu0 0.0
          %1836 = vmatpush1.msra.mxu0 0.0
          %1837 = vmatprep.subr.mxu0 0.0
          %1838 = vmatpush1.msra.mxu0 0.0
          %1839 = vmatprep.subr.mxu0 0.0
          %1840 = vmatpush1.msra.mxu0 0.0
          %1841 = vmatprep.subr.mxu0 0.0
          %1842 = vmatpush1.msra.mxu0 0.0
          %1843 = vmatprep.subr.mxu0 0.0
          %1844 = vmatpush1.msra.mxu0 0.0
          %1845 = vmatprep.subr.mxu0 0.0
          %1846 = vmatpush1.msra.mxu0 0.0
          %1847 = vmatprep.subr.mxu0 0.0
          %1848 = vmatpush1.msra.mxu0 0.0
          %1849 = vmatprep.subr.mxu0 0.0
          %1850 = vmatpush1.msra.mxu0 0.0
          %1851 = vmatprep.subr.mxu0 0.0
          %1852 = vmatpush1.msra.mxu0 0.0
          %1853 = vmatprep.subr.mxu0 0.0
          %1854 = vmatpush1.msra.mxu0 0.0
          %1855 = vmatprep.subr.mxu0 0.0
          %1856 = vmatpush1.msra.mxu0 0.0
          %1857 = vmatprep.subr.mxu0 0.0
          %1858 = vmatpush1.msra.mxu0 0.0
          %1859 = vmatprep.subr.mxu0 0.0
          %1860 = vmatpush1.msra.mxu0 0.0
          %1861 = vmatprep.subr.mxu0 0.0
          %1862 = vmatpush1.msra.mxu0 0.0
          %1863 = vmatprep.subr.mxu0 0.0
          %1864 = vmatpush1.msra.mxu0 0.0
          %1865 = vmatprep.subr.mxu0 0.0
          %1866 = vmatpush1.msra.mxu0 0.0
          %1867 = vmatprep.subr.mxu0 0.0
          %1868 = vmatpush1.msra.mxu0 0.0
          %1869 = vmatprep.subr.mxu0 0.0
          %1870 = vmatpush1.msra.mxu0 0.0
          %1871 = vmatprep.subr.mxu0 0.0
          %1872 = vmatpush1.msra.mxu0 0.0
          %1873 = vmatprep.subr.mxu0 0.0
          %1874 = vmatpush1.msra.mxu0 0.0
          %1875 = vmatprep.subr.mxu0 0.0
          %1876 = vmatpush1.msra.mxu0 0.0
          %1877 = vmatprep.mubr.f32.mxu0 0.0
          %1878 = vmatmul.mubr.f32.gmra.mrb[0].mxu0 %v1811
          %v1879 = vpop.f32.mrb[0].mxu0
          %v1880 = vadd.f32 %v1807, %v1879
          %v1881 = vpop.f32.mrb[0].mxu0
          %1882 = vdwg.mxu0
          %1883 = vrot.lane.b32.xlu0 %v1408, 96
          %v1884 = vpop.permute.xlu0 %1883
          %1885 = vrot.lane.b32.xlu0 %v414, 32
          %v1886 = vpop.permute.xlu0 %1885
          %v1887 = vsel %vm422, %v1884, 0
          %v1889 = vsel %vm422, %v1886, 0
          %1891 = vmatprep.subr.mxu0 0.0
          %1892 = vmatpush1.xpose.msra.mxu0 %v1889
          %1893 = vmatprep.subr.mxu0 0.0
          %1894 = vmatpush1.xpose.msra.mxu0 0.0
          %1895 = vmatprep.subr.mxu0 0.0
          %1896 = vmatpush1.xpose.msra.mxu0 0.0
          %1897 = vmatprep.subr.mxu0 0.0
          %1898 = vmatpush1.xpose.msra.mxu0 0.0
          %1899 = vmatprep.subr.mxu0 0.0
          %1900 = vmatpush1.xpose.msra.mxu0 0.0
          %1901 = vmatprep.subr.mxu0 0.0
          %1902 = vmatpush1.xpose.msra.mxu0 0.0
          %1903 = vmatprep.subr.mxu0 0.0
          %1904 = vmatpush1.xpose.msra.mxu0 0.0
          %1905 = vmatprep.subr.mxu0 0.0
          %1906 = vmatpush1.xpose.msra.mxu0 0.0
          %1907 = vmatprep.subr.mxu0 0.0
          %1908 = vmatpush1.xpose.msra.mxu0 0.0
          %1909 = vmatprep.subr.mxu0 0.0
          %1910 = vmatpush1.xpose.msra.mxu0 0.0
          %1911 = vmatprep.subr.mxu0 0.0
          %1912 = vmatpush1.xpose.msra.mxu0 0.0
          %1913 = vmatprep.subr.mxu0 0.0
          %1914 = vmatpush1.xpose.msra.mxu0 0.0
          %1915 = vmatprep.subr.mxu0 0.0
          %1916 = vmatpush1.xpose.msra.mxu0 0.0
          %1917 = vmatprep.subr.mxu0 0.0
          %1918 = vmatpush1.xpose.msra.mxu0 0.0
          %1919 = vmatprep.subr.mxu0 0.0
          %1920 = vmatpush1.xpose.msra.mxu0 0.0
          %1921 = vmatprep.subr.mxu0 0.0
          %1922 = vmatpush1.xpose.msra.mxu0 0.0
          %1923 = vmatprep.subr.mxu0 0.0
          %1924 = vmatpush1.xpose.msra.mxu0 0.0
          %1925 = vmatprep.subr.mxu0 0.0
          %1926 = vmatpush1.xpose.msra.mxu0 0.0
          %1927 = vmatprep.subr.mxu0 0.0
          %1928 = vmatpush1.xpose.msra.mxu0 0.0
          %1929 = vmatprep.subr.mxu0 0.0
          %1930 = vmatpush1.xpose.msra.mxu0 0.0
          %1931 = vmatprep.subr.mxu0 0.0
          %1932 = vmatpush1.xpose.msra.mxu0 0.0
          %1933 = vmatprep.subr.mxu0 0.0
          %1934 = vmatpush1.xpose.msra.mxu0 0.0
          %1935 = vmatprep.subr.mxu0 0.0
          %1936 = vmatpush1.xpose.msra.mxu0 0.0
          %1937 = vmatprep.subr.mxu0 0.0
          %1938 = vmatpush1.xpose.msra.mxu0 0.0
          %1939 = vmatprep.subr.mxu0 0.0
          %1940 = vmatpush1.xpose.msra.mxu0 0.0
          %1941 = vmatprep.subr.mxu0 0.0
          %1942 = vmatpush1.xpose.msra.mxu0 0.0
          %1943 = vmatprep.subr.mxu0 0.0
          %1944 = vmatpush1.xpose.msra.mxu0 0.0
          %1945 = vmatprep.subr.mxu0 0.0
          %1946 = vmatpush1.xpose.msra.mxu0 0.0
          %1947 = vmatprep.subr.mxu0 0.0
          %1948 = vmatpush1.xpose.msra.mxu0 0.0
          %1949 = vmatprep.subr.mxu0 0.0
          %1950 = vmatpush1.xpose.msra.mxu0 0.0
          %1951 = vmatprep.subr.mxu0 0.0
          %1952 = vmatpush1.xpose.msra.mxu0 0.0
          %1953 = vmatprep.subr.mxu0 0.0
          %1954 = vmatpush1.xpose.msra.mxu0 0.0
          %1955 = vmatprep.mubr.f32.mxu0 0.0
          %1956 = vmatmul.mubr.f32.gmra.mrb[0].mxu0 %v1887
          %v1957 = vpop.f32.mrb[0].mxu0
          %v1958 = vadd.f32 0.0, %v1957
          %v1959 = vpop.f32.mrb[0].mxu0
          %1960 = vdwg.mxu0
          %v1961 = vsel %vm498, %v1958, -inf
          %1962 = vmax.xlane.f32.xlu0 %v1961
          %v1963 = vpop.xlane.xlu0 %1962
          %v1964 = vsub.f32 %v1958, %v1963
          %v1965 = vmul.f32 %v1964, 1.442695
          %v1966 = vpow.pop %v1965
          %v1967 = vsel %vm498, %v1966, 0.0
          %1968 = vadd.xlane.f32.xlu0 %v1967
          %v1969 = vpop.xlane.xlu0 %1968
          %v1970 = vrcp.pop %v1969
          %v1971 = vmul.f32 %v1966, %v1970
          %1972 = vrot.lane.b32.xlu0 %v416, 96
          %v1973 = vpop.permute.xlu0 %1972
          %v1976 = vsel %vm498, %v1971, 0
          %1978 = vmatprep.subr.mxu0 0.0
          %1979 = vmatpush1.msra.mxu0 %v1973
          %1980 = vmatprep.subr.mxu0 0.0
          %1981 = vmatpush1.msra.mxu0 0.0
          %1982 = vmatprep.subr.mxu0 0.0
          %1983 = vmatpush1.msra.mxu0 0.0
          %1984 = vmatprep.subr.mxu0 0.0
          %1985 = vmatpush1.msra.mxu0 0.0
          %1986 = vmatprep.subr.mxu0 0.0
          %1987 = vmatpush1.msra.mxu0 0.0
          %1988 = vmatprep.subr.mxu0 0.0
          %1989 = vmatpush1.msra.mxu0 0.0
          %1990 = vmatprep.subr.mxu0 0.0
          %1991 = vmatpush1.msra.mxu0 0.0
          %1992 = vmatprep.subr.mxu0 0.0
          %1993 = vmatpush1.msra.mxu0 0.0
          %1994 = vmatprep.subr.mxu0 0.0
          %1995 = vmatpush1.msra.mxu0 0.0
          %1996 = vmatprep.subr.mxu0 0.0
          %1997 = vmatpush1.msra.mxu0 0.0
          %1998 = vmatprep.subr.mxu0 0.0
          %1999 = vmatpush1.msra.mxu0 0.0
          %2000 = vmatprep.subr.mxu0 0.0
          %2001 = vmatpush1.msra.mxu0 0.0
          %2002 = vmatprep.subr.mxu0 0.0
          %2003 = vmatpush1.msra.mxu0 0.0
          %2004 = vmatprep.subr.mxu0 0.0
          %2005 = vmatpush1.msra.mxu0 0.0
          %2006 = vmatprep.subr.mxu0 0.0
          %2007 = vmatpush1.msra.mxu0 0.0
          %2008 = vmatprep.subr.mxu0 0.0
          %2009 = vmatpush1.msra.mxu0 0.0
          %2010 = vmatprep.subr.mxu0 0.0
          %2011 = vmatpush1.msra.mxu0 0.0
          %2012 = vmatprep.subr.mxu0 0.0
          %2013 = vmatpush1.msra.mxu0 0.0
          %2014 = vmatprep.subr.mxu0 0.0
          %2015 = vmatpush1.msra.mxu0 0.0
          %2016 = vmatprep.subr.mxu0 0.0
          %2017 = vmatpush1.msra.mxu0 0.0
          %2018 = vmatprep.subr.mxu0 0.0
          %2019 = vmatpush1.msra.mxu0 0.0
          %2020 = vmatprep.subr.mxu0 0.0
          %2021 = vmatpush1.msra.mxu0 0.0
          %2022 = vmatprep.subr.mxu0 0.0
          %2023 = vmatpush1.msra.mxu0 0.0
          %2024 = vmatprep.subr.mxu0 0.0
          %2025 = vmatpush1.msra.mxu0 0.0
          %2026 = vmatprep.subr.mxu0 0.0
          %2027 = vmatpush1.msra.mxu0 0.0
          %2028 = vmatprep.subr.mxu0 0.0
          %2029 = vmatpush1.msra.mxu0 0.0
          %2030 = vmatprep.subr.mxu0 0.0
          %2031 = vmatpush1.msra.mxu0 0.0
          %2032 = vmatprep.subr.mxu0 0.0
          %2033 = vmatpush1.msra.mxu0 0.0
          %2034 = vmatprep.subr.mxu0 0.0
          %2035 = vmatpush1.msra.mxu0 0.0
          %2036 = vmatprep.subr.mxu0 0.0
          %2037 = vmatpush1.msra.mxu0 0.0
          %2038 = vmatprep.subr.mxu0 0.0
          %2039 = vmatpush1.msra.mxu0 0.0
          %2040 = vmatprep.subr.mxu0 0.0
          %2041 = vmatpush1.msra.mxu0 0.0
          %2042 = vmatprep.mubr.f32.mxu0 0.0
          %2043 = vmatmul.mubr.f32.gmra.mrb[0].mxu0 %v1976
          %v2044 = vpop.f32.mrb[0].mxu0
          %v2045 = vadd.f32 0.0, %v2044
          %v2046 = vpop.f32.mrb[0].mxu0
          %2047 = vdwg.mxu0
          %v2049 = vsel %vm422, %v2045, 0
          %2051 = vmatprep.subr.mxu0 0.0
          %2052 = vmatpush1.msra.mxu0 %v1082
          %2053 = vmatprep.subr.mxu0 0.0
          %2054 = vmatpush1.msra.mxu0 %v1084
          %2055 = vmatprep.subr.mxu0 0.0
          %2056 = vmatpush1.msra.mxu0 0.0
          %2057 = vmatprep.subr.mxu0 0.0
          %2058 = vmatpush1.msra.mxu0 0.0
          %2059 = vmatprep.subr.mxu0 0.0
          %2060 = vmatpush1.msra.mxu0 0.0
          %2061 = vmatprep.subr.mxu0 0.0
          %2062 = vmatpush1.msra.mxu0 0.0
          %2063 = vmatprep.subr.mxu0 0.0
          %2064 = vmatpush1.msra.mxu0 0.0
          %2065 = vmatprep.subr.mxu0 0.0
          %2066 = vmatpush1.msra.mxu0 0.0
          %2067 = vmatprep.subr.mxu0 0.0
          %2068 = vmatpush1.msra.mxu0 0.0
          %2069 = vmatprep.subr.mxu0 0.0
          %2070 = vmatpush1.msra.mxu0 0.0
          %2071 = vmatprep.subr.mxu0 0.0
          %2072 = vmatpush1.msra.mxu0 0.0
          %2073 = vmatprep.subr.mxu0 0.0
          %2074 = vmatpush1.msra.mxu0 0.0
          %2075 = vmatprep.subr.mxu0 0.0
          %2076 = vmatpush1.msra.mxu0 0.0
          %2077 = vmatprep.subr.mxu0 0.0
          %2078 = vmatpush1.msra.mxu0 0.0
          %2079 = vmatprep.subr.mxu0 0.0
          %2080 = vmatpush1.msra.mxu0 0.0
          %2081 = vmatprep.subr.mxu0 0.0
          %2082 = vmatpush1.msra.mxu0 0.0
          %2083 = vmatprep.subr.mxu0 0.0
          %2084 = vmatpush1.msra.mxu0 0.0
          %2085 = vmatprep.subr.mxu0 0.0
          %2086 = vmatpush1.msra.mxu0 0.0
          %2087 = vmatprep.subr.mxu0 0.0
          %2088 = vmatpush1.msra.mxu0 0.0
          %2089 = vmatprep.subr.mxu0 0.0
          %2090 = vmatpush1.msra.mxu0 0.0
          %2091 = vmatprep.subr.mxu0 0.0
          %2092 = vmatpush1.msra.mxu0 0.0
          %2093 = vmatprep.subr.mxu0 0.0
          %2094 = vmatpush1.msra.mxu0 0.0
          %2095 = vmatprep.subr.mxu0 0.0
          %2096 = vmatpush1.msra.mxu0 0.0
          %2097 = vmatprep.subr.mxu0 0.0
          %2098 = vmatpush1.msra.mxu0 0.0
          %2099 = vmatprep.subr.mxu0 0.0
          %2100 = vmatpush1.msra.mxu0 0.0
          %2101 = vmatprep.subr.mxu0 0.0
          %2102 = vmatpush1.msra.mxu0 0.0
          %2103 = vmatprep.subr.mxu0 0.0
          %2104 = vmatpush1.msra.mxu0 0.0
          %2105 = vmatprep.subr.mxu0 0.0
          %2106 = vmatpush1.msra.mxu0 0.0
          %2107 = vmatprep.subr.mxu0 0.0
          %2108 = vmatpush1.msra.mxu0 0.0
          %2109 = vmatprep.subr.mxu0 0.0
          %2110 = vmatpush1.msra.mxu0 0.0
          %2111 = vmatprep.subr.mxu0 0.0
          %2112 = vmatpush1.msra.mxu0 0.0
          %2113 = vmatprep.subr.mxu0 0.0
          %2114 = vmatpush1.msra.mxu0 0.0
          %2115 = vmatprep.mubr.f32.mxu0 0.0
          %2116 = vmatmul.mubr.f32.gmra.mrb[0].mxu0 %v2049
          %v2117 = vpop.f32.mrb[0].mxu0
          %v2118 = vadd.f32 0.0, %v2117
          %v2119 = vpop.f32.mrb[0].mxu0
          %2120 = vdwg.mxu0
          %v2121 = vadd.f32 %v1880, %v2118
          %2122 = vrot.lane.b32.xlu0 %v1408, 80
          %v2123 = vpop.permute.xlu0 %2122
          %2124 = vrot.lane.b32.xlu0 %v414, 16
          %v2125 = vpop.permute.xlu0 %2124
          %v2126 = vsel %vm422, %v2123, 0
          %v2128 = vsel %vm422, %v2125, 0
          %2130 = vmatprep.subr.mxu0 0.0
          %2131 = vmatpush1.xpose.msra.mxu0 %v2128
          %2132 = vmatprep.subr.mxu0 0.0
          %2133 = vmatpush1.xpose.msra.mxu0 0.0
          %2134 = vmatprep.subr.mxu0 0.0
          %2135 = vmatpush1.xpose.msra.mxu0 0.0
          %2136 = vmatprep.subr.mxu0 0.0
          %2137 = vmatpush1.xpose.msra.mxu0 0.0
          %2138 = vmatprep.subr.mxu0 0.0
          %2139 = vmatpush1.xpose.msra.mxu0 0.0
          %2140 = vmatprep.subr.mxu0 0.0
          %2141 = vmatpush1.xpose.msra.mxu0 0.0
          %2142 = vmatprep.subr.mxu0 0.0
          %2143 = vmatpush1.xpose.msra.mxu0 0.0
          %2144 = vmatprep.subr.mxu0 0.0
          %2145 = vmatpush1.xpose.msra.mxu0 0.0
          %2146 = vmatprep.subr.mxu0 0.0
          %2147 = vmatpush1.xpose.msra.mxu0 0.0
          %2148 = vmatprep.subr.mxu0 0.0
          %2149 = vmatpush1.xpose.msra.mxu0 0.0
          %2150 = vmatprep.subr.mxu0 0.0
          %2151 = vmatpush1.xpose.msra.mxu0 0.0
          %2152 = vmatprep.subr.mxu0 0.0
          %2153 = vmatpush1.xpose.msra.mxu0 0.0
          %2154 = vmatprep.subr.mxu0 0.0
          %2155 = vmatpush1.xpose.msra.mxu0 0.0
          %2156 = vmatprep.subr.mxu0 0.0
          %2157 = vmatpush1.xpose.msra.mxu0 0.0
          %2158 = vmatprep.subr.mxu0 0.0
          %2159 = vmatpush1.xpose.msra.mxu0 0.0
          %2160 = vmatprep.subr.mxu0 0.0
          %2161 = vmatpush1.xpose.msra.mxu0 0.0
          %2162 = vmatprep.subr.mxu0 0.0
          %2163 = vmatpush1.xpose.msra.mxu0 0.0
          %2164 = vmatprep.subr.mxu0 0.0
          %2165 = vmatpush1.xpose.msra.mxu0 0.0
          %2166 = vmatprep.subr.mxu0 0.0
          %2167 = vmatpush1.xpose.msra.mxu0 0.0
          %2168 = vmatprep.subr.mxu0 0.0
          %2169 = vmatpush1.xpose.msra.mxu0 0.0
          %2170 = vmatprep.subr.mxu0 0.0
          %2171 = vmatpush1.xpose.msra.mxu0 0.0
          %2172 = vmatprep.subr.mxu0 0.0
          %2173 = vmatpush1.xpose.msra.mxu0 0.0
          %2174 = vmatprep.subr.mxu0 0.0
          %2175 = vmatpush1.xpose.msra.mxu0 0.0
          %2176 = vmatprep.subr.mxu0 0.0
          %2177 = vmatpush1.xpose.msra.mxu0 0.0
          %2178 = vmatprep.subr.mxu0 0.0
          %2179 = vmatpush1.xpose.msra.mxu0 0.0
          %2180 = vmatprep.subr.mxu0 0.0
          %2181 = vmatpush1.xpose.msra.mxu0 0.0
          %2182 = vmatprep.subr.mxu0 0.0
          %2183 = vmatpush1.xpose.msra.mxu0 0.0
          %2184 = vmatprep.subr.mxu0 0.0
          %2185 = vmatpush1.xpose.msra.mxu0 0.0
          %2186 = vmatprep.subr.mxu0 0.0
          %2187 = vmatpush1.xpose.msra.mxu0 0.0
          %2188 = vmatprep.subr.mxu0 0.0
          %2189 = vmatpush1.xpose.msra.mxu0 0.0
          %2190 = vmatprep.subr.mxu0 0.0
          %2191 = vmatpush1.xpose.msra.mxu0 0.0
          %2192 = vmatprep.subr.mxu0 0.0
          %2193 = vmatpush1.xpose.msra.mxu0 0.0
          %2194 = vmatprep.mubr.f32.mxu0 0.0
          %2195 = vmatmul.mubr.f32.gmra.mrb[0].mxu0 %v2126
          %v2196 = vpop.f32.mrb[0].mxu0
          %v2197 = vadd.f32 0.0, %v2196
          %v2198 = vpop.f32.mrb[0].mxu0
          %2199 = vdwg.mxu0
          %v2200 = vsel %vm498, %v2197, -inf
          %2201 = vmax.xlane.f32.xlu0 %v2200
          %v2202 = vpop.xlane.xlu0 %2201
          %v2203 = vsub.f32 %v2197, %v2202
          %v2204 = vmul.f32 %v2203, 1.442695
          %v2205 = vpow.pop %v2204
          %v2206 = vsel %vm498, %v2205, 0.0
          %2207 = vadd.xlane.f32.xlu0 %v2206
          %v2208 = vpop.xlane.xlu0 %2207
          %v2209 = vrcp.pop %v2208
          %v2210 = vmul.f32 %v2205, %v2209
          %2211 = vrot.lane.b32.xlu0 %v416, 80
          %v2212 = vpop.permute.xlu0 %2211
          %v2215 = vsel %vm498, %v2210, 0
          %2217 = vmatprep.subr.mxu0 0.0
          %2218 = vmatpush1.msra.mxu0 %v2212
          %2219 = vmatprep.subr.mxu0 0.0
          %2220 = vmatpush1.msra.mxu0 0.0
          %2221 = vmatprep.subr.mxu0 0.0
          %2222 = vmatpush1.msra.mxu0 0.0
          %2223 = vmatprep.subr.mxu0 0.0
          %2224 = vmatpush1.msra.mxu0 0.0
          %2225 = vmatprep.subr.mxu0 0.0
          %2226 = vmatpush1.msra.mxu0 0.0
          %2227 = vmatprep.subr.mxu0 0.0
          %2228 = vmatpush1.msra.mxu0 0.0
          %2229 = vmatprep.subr.mxu0 0.0
          %2230 = vmatpush1.msra.mxu0 0.0
          %2231 = vmatprep.subr.mxu0 0.0
          %2232 = vmatpush1.msra.mxu0 0.0
          %2233 = vmatprep.subr.mxu0 0.0
          %2234 = vmatpush1.msra.mxu0 0.0
          %2235 = vmatprep.subr.mxu0 0.0
          %2236 = vmatpush1.msra.mxu0 0.0
          %2237 = vmatprep.subr.mxu0 0.0
          %2238 = vmatpush1.msra.mxu0 0.0
          %2239 = vmatprep.subr.mxu0 0.0
          %2240 = vmatpush1.msra.mxu0 0.0
          %2241 = vmatprep.subr.mxu0 0.0
          %2242 = vmatpush1.msra.mxu0 0.0
          %2243 = vmatprep.subr.mxu0 0.0
          %2244 = vmatpush1.msra.mxu0 0.0
          %2245 = vmatprep.subr.mxu0 0.0
          %2246 = vmatpush1.msra.mxu0 0.0
          %2247 = vmatprep.subr.mxu0 0.0
          %2248 = vmatpush1.msra.mxu0 0.0
          %2249 = vmatprep.subr.mxu0 0.0
          %2250 = vmatpush1.msra.mxu0 0.0
          %2251 = vmatprep.subr.mxu0 0.0
          %2252 = vmatpush1.msra.mxu0 0.0
          %2253 = vmatprep.subr.mxu0 0.0
          %2254 = vmatpush1.msra.mxu0 0.0
          %2255 = vmatprep.subr.mxu0 0.0
          %2256 = vmatpush1.msra.mxu0 0.0
          %2257 = vmatprep.subr.mxu0 0.0
          %2258 = vmatpush1.msra.mxu0 0.0
          %2259 = vmatprep.subr.mxu0 0.0
          %2260 = vmatpush1.msra.mxu0 0.0
          %2261 = vmatprep.subr.mxu0 0.0
          %2262 = vmatpush1.msra.mxu0 0.0
          %2263 = vmatprep.subr.mxu0 0.0
          %2264 = vmatpush1.msra.mxu0 0.0
          %2265 = vmatprep.subr.mxu0 0.0
          %2266 = vmatpush1.msra.mxu0 0.0
          %2267 = vmatprep.subr.mxu0 0.0
          %2268 = vmatpush1.msra.mxu0 0.0
          %2269 = vmatprep.subr.mxu0 0.0
          %2270 = vmatpush1.msra.mxu0 0.0
          %2271 = vmatprep.subr.mxu0 0.0
          %2272 = vmatpush1.msra.mxu0 0.0
          %2273 = vmatprep.subr.mxu0 0.0
          %2274 = vmatpush1.msra.mxu0 0.0
          %2275 = vmatprep.subr.mxu0 0.0
          %2276 = vmatpush1.msra.mxu0 0.0
          %2277 = vmatprep.subr.mxu0 0.0
          %2278 = vmatpush1.msra.mxu0 0.0
          %2279 = vmatprep.subr.mxu0 0.0
          %2280 = vmatpush1.msra.mxu0 0.0
          %2281 = vmatprep.mubr.f32.mxu0 0.0
          %2282 = vmatmul.mubr.f32.gmra.mrb[0].mxu0 %v2215
          %v2283 = vpop.f32.mrb[0].mxu0
          %v2284 = vadd.f32 0.0, %v2283
          %v2285 = vpop.f32.mrb[0].mxu0
          %2286 = vdwg.mxu0
          %v2288 = vsel %vm422, %v2284, 0
          %2290 = vmatprep.subr.mxu0 0.0
          %2291 = vmatpush1.msra.mxu0 %v1329
          %2292 = vmatprep.subr.mxu0 0.0
          %2293 = vmatpush1.msra.mxu0 %v1331
          %2294 = vmatprep.subr.mxu0 0.0
          %2295 = vmatpush1.msra.mxu0 0.0
          %2296 = vmatprep.subr.mxu0 0.0
          %2297 = vmatpush1.msra.mxu0 0.0
          %2298 = vmatprep.subr.mxu0 0.0
          %2299 = vmatpush1.msra.mxu0 0.0
          %2300 = vmatprep.subr.mxu0 0.0
          %2301 = vmatpush1.msra.mxu0 0.0
          %2302 = vmatprep.subr.mxu0 0.0
          %2303 = vmatpush1.msra.mxu0 0.0
          %2304 = vmatprep.subr.mxu0 0.0
          %2305 = vmatpush1.msra.mxu0 0.0
          %2306 = vmatprep.subr.mxu0 0.0
          %2307 = vmatpush1.msra.mxu0 0.0
          %2308 = vmatprep.subr.mxu0 0.0
          %2309 = vmatpush1.msra.mxu0 0.0
          %2310 = vmatprep.subr.mxu0 0.0
          %2311 = vmatpush1.msra.mxu0 0.0
          %2312 = vmatprep.subr.mxu0 0.0
          %2313 = vmatpush1.msra.mxu0 0.0
          %2314 = vmatprep.subr.mxu0 0.0
          %2315 = vmatpush1.msra.mxu0 0.0
          %2316 = vmatprep.subr.mxu0 0.0
          %2317 = vmatpush1.msra.mxu0 0.0
          %2318 = vmatprep.subr.mxu0 0.0
          %2319 = vmatpush1.msra.mxu0 0.0
          %2320 = vmatprep.subr.mxu0 0.0
          %2321 = vmatpush1.msra.mxu0 0.0
          %2322 = vmatprep.subr.mxu0 0.0
          %2323 = vmatpush1.msra.mxu0 0.0
          %2324 = vmatprep.subr.mxu0 0.0
          %2325 = vmatpush1.msra.mxu0 0.0
          %2326 = vmatprep.subr.mxu0 0.0
          %2327 = vmatpush1.msra.mxu0 0.0
          %2328 = vmatprep.subr.mxu0 0.0
          %2329 = vmatpush1.msra.mxu0 0.0
          %2330 = vmatprep.subr.mxu0 0.0
          %2331 = vmatpush1.msra.mxu0 0.0
          %2332 = vmatprep.subr.mxu0 0.0
          %2333 = vmatpush1.msra.mxu0 0.0
          %2334 = vmatprep.subr.mxu0 0.0
          %2335 = vmatpush1.msra.mxu0 0.0
          %2336 = vmatprep.subr.mxu0 0.0
          %2337 = vmatpush1.msra.mxu0 0.0
          %2338 = vmatprep.subr.mxu0 0.0
          %2339 = vmatpush1.msra.mxu0 0.0
          %2340 = vmatprep.subr.mxu0 0.0
          %2341 = vmatpush1.msra.mxu0 0.0
          %2342 = vmatprep.subr.mxu0 0.0
          %2343 = vmatpush1.msra.mxu0 0.0
          %2344 = vmatprep.subr.mxu0 0.0
          %2345 = vmatpush1.msra.mxu0 0.0
          %2346 = vmatprep.subr.mxu0 0.0
          %2347 = vmatpush1.msra.mxu0 0.0
          %2348 = vmatprep.subr.mxu0 0.0
          %2349 = vmatpush1.msra.mxu0 0.0
          %2350 = vmatprep.subr.mxu0 0.0
          %2351 = vmatpush1.msra.mxu0 0.0
          %2352 = vmatprep.subr.mxu0 0.0
          %2353 = vmatpush1.msra.mxu0 0.0
          %2354 = vmatprep.mubr.f32.mxu0 0.0
          %2355 = vmatmul.mubr.f32.gmra.mrb[0].mxu0 %v2288
          %v2356 = vpop.f32.mrb[0].mxu0
          %v2357 = vadd.f32 0.0, %v2356
          %v2358 = vpop.f32.mrb[0].mxu0
          %2359 = vdwg.mxu0
          %v2360 = vadd.f32 %v2121, %v2357
          %v2361 = vadd.f32 %v1407, %v300
          %v2362 = vadd.f32 %v2360, %v300
          %v2363 = vadd.f32 %v321, %v2361
          %v2364 = vadd.f32 %v322, %v2362
          %v2365 = vsel %vm334, %v2363, 0.0
          %2366 = vadd.xlane.f32.xlu0 %v2365
          %v2367 = vpop.xlane.xlu0 %2366
          %v2368 = vsel %vm334, %v2364, 0.0
          %2369 = vadd.xlane.f32.xlu0 %v2368
          %v2370 = vpop.xlane.xlu0 %2369
          %v2371 = vrcp.pop 64.0
          %v2372 = vmul.f32 %v2367, %v2371
          %v2373 = vmul.f32 %v2370, %v2371
          %v2374 = vsub.f32 %v2363, %v2372
          %v2375 = vsub.f32 %v2364, %v2373
          %v2376 = vmul.f32 %v2374, %v2374
          %v2377 = vmul.f32 %v2375, %v2375
          %v2378 = vsel %vm334, %v2376, 0.0
          %2379 = vadd.xlane.f32.xlu0 %v2378
          %v2380 = vpop.xlane.xlu0 %2379
          %v2381 = vsel %vm334, %v2377, 0.0
          %2382 = vadd.xlane.f32.xlu0 %v2381
          %v2383 = vpop.xlane.xlu0 %2382
          %v2384 = vmul.f32 %v2380, %v2371
          %v2385 = vmul.f32 %v2383, %v2371
          %v2386 = vadd.f32 %v2384, 1e-05
          %v2387 = vadd.f32 %v2385, 1e-05
          %v2388 = vrsqrt.pop %v2386
          %v2389 = vrsqrt.pop %v2387
          %v2390 = vmul.f32 %v2374, %v2388
          %v2391 = vmul.f32 %v2375, %v2389
          %v2392 = vmul.f32 %v2390, %v301
          %v2393 = vmul.f32 %v2391, %v301
          %v2394 = vadd.f32 %v2392, %v302
          %v2395 = vadd.f32 %v2393, %v302
          %vm2405 = vcmask 1043456
          %v2406 = vrot.slane %v303, 4
          %v2407 = vrot.slane %v304, 4
          %v2408 = vsel %vm2405, %v2406, %v2407
          %v2409 = vrot.slane %v305, 4
          %v2410 = vsel %vm2405, %v2407, %v2409
          %v2411 = vrot.slane %v306, 4
          %v2412 = vsel %vm2405, %v2409, %v2411
          %v2413 = vrot.slane %v307, 4
          %v2414 = vsel %vm2405, %v2411, %v2413
          %v2415 = vrot.slane %v308, 4
          %v2416 = vsel %vm2405, %v2413, %v2415
          %v2417 = vrot.slane %v309, 4
          %v2418 = vsel %vm2405, %v2415, %v2417
          %v2419 = vrot.slane %v310, 4
          %v2420 = vsel %vm2405, %v2417, %v2419
          %v2421 = vrot.slane %v311, 4
          %v2422 = vsel %vm2405, %v2419, %v2421
          %v2432 = vsel %vm334, %v2394, 0
          %v2435 = vsel %vm334, %v2395, 0
          %2437 = vmatprep.subr.mxu0 0.0
          %2438 = vmatpush1.msra.mxu0 %v2408
          %2439 = vmatprep.subr.mxu0 0.0
          %2440 = vmatpush1.msra.mxu0 %v2410
          %2441 = vmatprep.subr.mxu0 0.0
          %2442 = vmatpush1.msra.mxu0 %v2412
          %2443 = vmatprep.subr.mxu0 0.0
          %2444 = vmatpush1.msra.mxu0 %v2414
          %2445 = vmatprep.subr.mxu0 0.0
          %2446 = vmatpush1.msra.mxu0 %v2416
          %2447 = vmatprep.subr.mxu0 0.0
          %2448 = vmatpush1.msra.mxu0 %v2418
          %2449 = vmatprep.subr.mxu0 0.0
          %2450 = vmatpush1.msra.mxu0 %v2420
          %2451 = vmatprep.subr.mxu0 0.0
          %2452 = vmatpush1.msra.mxu0 %v2422
          %2453 = vmatprep.subr.mxu0 0.0
          %2454 = vmatpush1.msra.mxu0 0.0
          %2455 = vmatprep.subr.mxu0 0.0
          %2456 = vmatpush1.msra.mxu0 0.0
          %2457 = vmatprep.subr.mxu0 0.0
          %2458 = vmatpush1.msra.mxu0 0.0
          %2459 = vmatprep.subr.mxu0 0.0
          %2460 = vmatpush1.msra.mxu0 0.0
          %2461 = vmatprep.subr.mxu0 0.0
          %2462 = vmatpush1.msra.mxu0 0.0
          %2463 = vmatprep.subr.mxu0 0.0
          %2464 = vmatpush1.msra.mxu0 0.0
          %2465 = vmatprep.subr.mxu0 0.0
          %2466 = vmatpush1.msra.mxu0 0.0
          %2467 = vmatprep.subr.mxu0 0.0
          %2468 = vmatpush1.msra.mxu0 0.0
          %2469 = vmatprep.subr.mxu0 0.0
          %2470 = vmatpush1.msra.mxu0 0.0
          %2471 = vmatprep.subr.mxu0 0.0
          %2472 = vmatpush1.msra.mxu0 0.0
          %2473 = vmatprep.subr.mxu0 0.0
          %2474 = vmatpush1.msra.mxu0 0.0
          %2475 = vmatprep.subr.mxu0 0.0
          %2476 = vmatpush1.msra.mxu0 0.0
          %2477 = vmatprep.subr.mxu0 0.0
          %2478 = vmatpush1.msra.mxu0 0.0
          %2479 = vmatprep.subr.mxu0 0.0
          %2480 = vmatpush1.msra.mxu0 0.0
          %2481 = vmatprep.subr.mxu0 0.0
          %2482 = vmatpush1.msra.mxu0 0.0
          %2483 = vmatprep.subr.mxu0 0.0
          %2484 = vmatpush1.msra.mxu0 0.0
          %2485 = vmatprep.subr.mxu0 0.0
          %2486 = vmatpush1.msra.mxu0 0.0
          %2487 = vmatprep.subr.mxu0 0.0
          %2488 = vmatpush1.msra.mxu0 0.0
          %2489 = vmatprep.subr.mxu0 0.0
          %2490 = vmatpush1.msra.mxu0 0.0
          %2491 = vmatprep.subr.mxu0 0.0
          %2492 = vmatpush1.msra.mxu0 0.0
          %2493 = vmatprep.subr.mxu0 0.0
          %2494 = vmatpush1.msra.mxu0 0.0
          %2495 = vmatprep.subr.mxu0 0.0
          %2496 = vmatpush1.msra.mxu0 0.0
          %2497 = vmatprep.subr.mxu0 0.0
          %2498 = vmatpush1.msra.mxu0 0.0
          %2499 = vmatprep.subr.mxu0 0.0
          %2500 = vmatpush1.msra.mxu0 0.0
          %2501 = vmatprep.mubr.f32.mxu0 0.0
          %2502 = vmatmul.mubr.f32.gmra.mrb[0].mxu0 %v2432
          %v2503 = vpop.f32.mrb[0].mxu0
          %v2504 = vadd.f32 %v312, %v2503
          %v2505 = vpop.f32.mrb[0].mxu0
          %2506 = vmatprep.mubr.f32.mxu0 0.0
          %2507 = vmatmul.mubr.f32.gmra.mrb[0].mxu0 %v2435
          %v2508 = vpop.f32.mrb[0].mxu0
          %v2509 = vadd.f32 %v312, %v2508
          %v2510 = vpop.f32.mrb[0].mxu0
          %2511 = vdwg.mxu0
          %v2512 = vmax.f32 %v2504, 0.0
          %v2513 = vmax.f32 %v2509, 0.0
          %vm2519 = vcmask 1042432
          %v2520 = vrot.slane %v313, 5
          %v2521 = vrot.slane %v314, 5
          %v2522 = vsel %vm2519, %v2520, %v2521
          %v2523 = vrot.slane %v315, 5
          %v2524 = vsel %vm2519, %v2521, %v2523
          %v2525 = vrot.slane %v316, 5
          %v2526 = vsel %vm2519, %v2523, %v2525
          %v2527 = vrot.slane %v317, 5
          %v2528 = vsel %vm2519, %v2525, %v2527
          %vm2533 = vcmask 261120
          %v2535 = vsel %vm2533, %v2512, 0
          %v2538 = vsel %vm2533, %v2513, 0
          %2540 = vmatprep.subr.mxu0 0.0
          %2541 = vmatpush1.msra.mxu0 %v2522
          %2542 = vmatprep.subr.mxu0 0.0
          %2543 = vmatpush1.msra.mxu0 %v2524
          %2544 = vmatprep.subr.mxu0 0.0
          %2545 = vmatpush1.msra.mxu0 %v2526
          %2546 = vmatprep.subr.mxu0 0.0
          %2547 = vmatpush1.msra.mxu0 %v2528
          %2548 = vmatprep.subr.mxu0 0.0
          %2549 = vmatpush1.msra.mxu0 0.0
          %2550 = vmatprep.subr.mxu0 0.0
          %2551 = vmatpush1.msra.mxu0 0.0
          %2552 = vmatprep.subr.mxu0 0.0
          %2553 = vmatpush1.msra.mxu0 0.0
          %2554 = vmatprep.subr.mxu0 0.0
          %2555 = vmatpush1.msra.mxu0 0.0
          %2556 = vmatprep.subr.mxu0 0.0
          %2557 = vmatpush1.msra.mxu0 0.0
          %2558 = vmatprep.subr.mxu0 0.0
          %2559 = vmatpush1.msra.mxu0 0.0
          %2560 = vmatprep.subr.mxu0 0.0
          %2561 = vmatpush1.msra.mxu0 0.0
          %2562 = vmatprep.subr.mxu0 0.0
          %2563 = vmatpush1.msra.mxu0 0.0
          %2564 = vmatprep.subr.mxu0 0.0
          %2565 = vmatpush1.msra.mxu0 0.0
          %2566 = vmatprep.subr.mxu0 0.0
          %2567 = vmatpush1.msra.mxu0 0.0
          %2568 = vmatprep.subr.mxu0 0.0
          %2569 = vmatpush1.msra.mxu0 0.0
          %2570 = vmatprep.subr.mxu0 0.0
          %2571 = vmatpush1.msra.mxu0 0.0
          %2572 = vmatprep.subr.mxu0 0.0
          %2573 = vmatpush1.msra.mxu0 0.0
          %2574 = vmatprep.subr.mxu0 0.0
          %2575 = vmatpush1.msra.mxu0 0.0
          %2576 = vmatprep.subr.mxu0 0.0
          %2577 = vmatpush1.msra.mxu0 0.0
          %2578 = vmatprep.subr.mxu0 0.0
          %2579 = vmatpush1.msra.mxu0 0.0
          %2580 = vmatprep.subr.mxu0 0.0
          %2581 = vmatpush1.msra.mxu0 0.0
          %2582 = vmatprep.subr.mxu0 0.0
          %2583 = vmatpush1.msra.mxu0 0.0
          %2584 = vmatprep.subr.mxu0 0.0
          %2585 = vmatpush1.msra.mxu0 0.0
          %2586 = vmatprep.subr.mxu0 0.0
          %2587 = vmatpush1.msra.mxu0 0.0
          %2588 = vmatprep.subr.mxu0 0.0
          %2589 = vmatpush1.msra.mxu0 0.0
          %2590 = vmatprep.subr.mxu0 0.0
          %2591 = vmatpush1.msra.mxu0 0.0
          %2592 = vmatprep.subr.mxu0 0.0
          %2593 = vmatpush1.msra.mxu0 0.0
          %2594 = vmatprep.subr.mxu0 0.0
          %2595 = vmatpush1.msra.mxu0 0.0
          %2596 = vmatprep.subr.mxu0 0.0
          %2597 = vmatpush1.msra.mxu0 0.0
          %2598 = vmatprep.subr.mxu0 0.0
          %2599 = vmatpush1.msra.mxu0 0.0
          %2600 = vmatprep.subr.mxu0 0.0
          %2601 = vmatpush1.msra.mxu0 0.0
          %2602 = vmatprep.subr.mxu0 0.0
          %2603 = vmatpush1.msra.mxu0 0.0
          %2604 = vmatprep.mubr.f32.mxu0 0.0
          %2605 = vmatmul.mubr.f32.gmra.mrb[0].mxu0 %v2535
          %v2606 = vpop.f32.mrb[0].mxu0
          %v2607 = vadd.f32 %v318, %v2606
          %v2608 = vpop.f32.mrb[0].mxu0
          %2609 = vmatprep.mubr.f32.mxu0 0.0
          %2610 = vmatmul.mubr.f32.gmra.mrb[0].mxu0 %v2538
          %v2611 = vpop.f32.mrb[0].mxu0
          %v2612 = vadd.f32 %v318, %v2611
          %v2613 = vpop.f32.mrb[0].mxu0
          %2614 = vdwg.mxu0
          %v2615 = vadd.f32 %v2394, %v2607
          %v2616 = vadd.f32 %v2395, %v2612
          %v2617 = vsel %vm334, %v2615, 0.0
          %2618 = vadd.xlane.f32.xlu0 %v2617
          %v2619 = vpop.xlane.xlu0 %2618
          %v2620 = vsel %vm334, %v2616, 0.0
          %2621 = vadd.xlane.f32.xlu0 %v2620
          %v2622 = vpop.xlane.xlu0 %2621
          %v2623 = vmul.f32 %v2619, %v2371
          %v2624 = vmul.f32 %v2622, %v2371
          %v2625 = vsub.f32 %v2615, %v2623
          %v2626 = vsub.f32 %v2616, %v2624
          %v2627 = vmul.f32 %v2625, %v2625
          %v2628 = vmul.f32 %v2626, %v2626
          %v2629 = vsel %vm334, %v2627, 0.0
          %2630 = vadd.xlane.f32.xlu0 %v2629
          %v2631 = vpop.xlane.xlu0 %2630
          %v2632 = vsel %vm334, %v2628, 0.0
          %2633 = vadd.xlane.f32.xlu0 %v2632
          %v2634 = vpop.xlane.xlu0 %2633
          %v2635 = vmul.f32 %v2631, %v2371
          %v2636 = vmul.f32 %v2634, %v2371
          %v2637 = vadd.f32 %v2635, 1e-05
          %v2638 = vadd.f32 %v2636, 1e-05
          %v2639 = vrsqrt.pop %v2637
          %v2640 = vrsqrt.pop %v2638
          %v2641 = vmul.f32 %v2625, %v2639
          %v2642 = vmul.f32 %v2626, %v2640
          %v2643 = vmul.f32 %v2641, %v319
          %v2644 = vmul.f32 %v2642, %v319
          %v2645 = vadd.f32 %v2643, %v320
          %v2646 = vadd.f32 %v2644, %v320
          %2647 = vst.msk [vmem:[#allocation2] sm:$0xff] %vm334, %v2645
          %2648 = vst.msk [vmem:[#allocation2 + $0x8] sm:$0xff] %vm334, %v2646
        $region52: #{tpu_custom_call.1} parent=35 // pred_fallthru
          _
        %v2649 = vld [vmem:[#allocation2] sm:$0xff]
        %v2650 = vld [vmem:[#allocation2 + $0x8] sm:$0xff]
        %v2652 = vrot.slane %v2650, 7
        %vm2654 = vcmask 1040384
        %v2655 = vsel %vm2654, %v2649, %v2652
        %v2656 = vld [vmem:[%s227] sm:$0xff]
        %v2657 = vld [vmem:[%s227 + $0x8] sm:$0xff]
        %v2658 = vld [vmem:[%s227 + $0x10] sm:$0xff]
        %v2659 = vld [vmem:[%s227 + $0x18] sm:$0xff]
        %v2660 = vld [vmem:[%s227 + $0x20] sm:$0xff]
        %v2661 = vld [vmem:[%s227 + $0x28] sm:$0xff]
        %v2662 = vld [vmem:[%s227 + $0x30] sm:$0xff]
        %v2663 = vld [vmem:[%s227 + $0x38] sm:$0xff]
        %v2664 = vld [vmem:[%s227 + $0x40] sm:$0xff]
        %v2665 = vld [vmem:[%s227 + $0x48] sm:$0xff]
        %v2666 = vld [vmem:[%s227 + $0x50] sm:$0xff]
        %v2667 = vld [vmem:[%s227 + $0x58] sm:$0xff]
        %v2668 = vld [vmem:[%s227 + $0x60] sm:$0xff]
        %v2669 = vld [vmem:[%s227 + $0x68] sm:$0xff]
        %v2670 = vld [vmem:[%s227 + $0x70] sm:$0xff]
        %v2671 = vld [vmem:[%s227 + $0x78] sm:$0xff]
        %v2672 = vld [vmem:[%s227 + $0x80] sm:$0xff]
        %v2673 = vld [vmem:[%s227 + $0x88] sm:$0xff]
        %v2674 = vld [vmem:[%s227 + $0x90] sm:$0xff]
        %v2675 = vld [vmem:[%s227 + $0x98] sm:$0xff]
        %v2676 = vld [vmem:[%s227 + $0xa0] sm:$0xff]
        %v2677 = vld [vmem:[%s227 + $0xa8] sm:$0xff]
        %v2678 = vld [vmem:[%s227 + $0xb0] sm:$0xff]
        %v2679 = vld [vmem:[%s227 + $0xb8] sm:$0xff]
        %v2680 = vld [vmem:[%s227 + $0xc0] sm:$0xff]
        %v2681 = vld [vmem:[%s227 + $0xc8] sm:$0xff]
        %v2682 = vld [vmem:[%s227 + $0xd0] sm:$0xff]
        %v2683 = vld [vmem:[%s227 + $0xd8] sm:$0xff]
        %v2684 = vld [vmem:[%s227 + $0xe0] sm:$0xff]
        %v2685 = vld [vmem:[%s227 + $0xe8] sm:$0xff]
        %v2686 = vld [vmem:[%s227 + $0xf0] sm:$0xff]
        %v2687 = vld [vmem:[%s227 + $0xf8] sm:$0xff]
        %v2689 = vrot.slane %v2649, 1
        %v2691 = vsel %vm2654, %v2689, %v2650
        %v2692 = vld [vmem:[%s227 + $0x100] sm:$0xff]
        %v2693 = vld [vmem:[%s227 + $0x108] sm:$0xff]
        %v2694 = vld [vmem:[%s227 + $0x110] sm:$0xff]
        %v2695 = vld [vmem:[%s227 + $0x118] sm:$0xff]
        %v2696 = vld [vmem:[%s227 + $0x120] sm:$0xff]
        %v2697 = vld [vmem:[%s227 + $0x128] sm:$0xff]
        %v2698 = vld [vmem:[%s227 + $0x130] sm:$0xff]
        %v2699 = vld [vmem:[%s227 + $0x138] sm:$0xff]
        %v2700 = vld [vmem:[%s227 + $0x140] sm:$0xff]
        %v2701 = vld [vmem:[%s227 + $0x148] sm:$0xff]
        %v2702 = vld [vmem:[%s227 + $0x150] sm:$0xff]
        %v2703 = vld [vmem:[%s227 + $0x158] sm:$0xff]
        %v2704 = vld [vmem:[%s227 + $0x160] sm:$0xff]
        %v2705 = vld [vmem:[%s227 + $0x168] sm:$0xff]
        %v2706 = vld [vmem:[%s227 + $0x170] sm:$0xff]
        %v2707 = vld [vmem:[%s227 + $0x178] sm:$0xff]
        %v2708 = vld [vmem:[%s227 + $0x180] sm:$0xff]
        %v2709 = vld [vmem:[%s227 + $0x188] sm:$0xff]
        %v2710 = vld [vmem:[%s227 + $0x190] sm:$0xff]
        %v2711 = vld [vmem:[%s227 + $0x198] sm:$0xff]
        %v2712 = vld [vmem:[%s227 + $0x1a0] sm:$0xff]
        %v2713 = vld [vmem:[%s227 + $0x1a8] sm:$0xff]
        %v2714 = vld [vmem:[%s227 + $0x1b0] sm:$0xff]
        %v2715 = vld [vmem:[%s227 + $0x1b8] sm:$0xff]
        %v2716 = vld [vmem:[%s227 + $0x1c0] sm:$0xff]
        %v2717 = vld [vmem:[%s227 + $0x1c8] sm:$0xff]
        %v2718 = vld [vmem:[%s227 + $0x1d0] sm:$0xff]
        %v2719 = vld [vmem:[%s227 + $0x1d8] sm:$0xff]
        %v2720 = vld [vmem:[%s227 + $0x1e0] sm:$0xff]
        %v2721 = vld [vmem:[%s227 + $0x1e8] sm:$0xff]
        %v2722 = vld [vmem:[%s227 + $0x1f0] sm:$0xff]
        %v2723 = vld [vmem:[%s227 + $0x1f8] sm:$0xff]
        %vm2724 = vcmask 523264
        %v2726 = vsel %vm2724, %v2691, 0
        %2728 = vmatprep.subr.mxu0 %v2693
        %2729 = vmatpush1.msra.mxu0 %v2692
        %2730 = vmatprep.subr.mxu0 %v2697
        %2731 = vmatpush1.msra.mxu0 %v2696
        %2732 = vmatprep.subr.mxu0 %v2701
        %2733 = vmatpush1.msra.mxu0 %v2700
        %2734 = vmatprep.subr.mxu0 %v2705
        %2735 = vmatpush1.msra.mxu0 %v2704
        %2736 = vmatprep.subr.mxu0 %v2709
        %2737 = vmatpush1.msra.mxu0 %v2708
        %2738 = vmatprep.subr.mxu0 %v2713
        %2739 = vmatpush1.msra.mxu0 %v2712
        %2740 = vmatprep.subr.mxu0 %v2717
        %2741 = vmatpush1.msra.mxu0 %v2716
        %2742 = vmatprep.subr.mxu0 %v2721
        %2743 = vmatpush1.msra.mxu0 %v2720
        %2744 = vmatprep.subr.mxu0 0.0
        %2745 = vmatpush1.msra.mxu0 0.0
        %2746 = vmatprep.subr.mxu0 0.0
        %2747 = vmatpush1.msra.mxu0 0.0
        %2748 = vmatprep.subr.mxu0 0.0
        %2749 = vmatpush1.msra.mxu0 0.0
        %2750 = vmatprep.subr.mxu0 0.0
        %2751 = vmatpush1.msra.mxu0 0.0
        %2752 = vmatprep.subr.mxu0 0.0
        %2753 = vmatpush1.msra.mxu0 0.0
        %2754 = vmatprep.subr.mxu0 0.0
        %2755 = vmatpush1.msra.mxu0 0.0
        %2756 = vmatprep.subr.mxu0 0.0
        %2757 = vmatpush1.msra.mxu0 0.0
        %2758 = vmatprep.subr.mxu0 0.0
        %2759 = vmatpush1.msra.mxu0 0.0
        %2760 = vmatprep.subr.mxu0 0.0
        %2761 = vmatpush1.msra.mxu0 0.0
        %2762 = vmatprep.subr.mxu0 0.0
        %2763 = vmatpush1.msra.mxu0 0.0
        %2764 = vmatprep.subr.mxu0 0.0
        %2765 = vmatpush1.msra.mxu0 0.0
        %2766 = vmatprep.subr.mxu0 0.0
        %2767 = vmatpush1.msra.mxu0 0.0
        %2768 = vmatprep.subr.mxu0 0.0
        %2769 = vmatpush1.msra.mxu0 0.0
        %2770 = vmatprep.subr.mxu0 0.0
        %2771 = vmatpush1.msra.mxu0 0.0
        %2772 = vmatprep.subr.mxu0 0.0
        %2773 = vmatpush1.msra.mxu0 0.0
        %2774 = vmatprep.subr.mxu0 0.0
        %2775 = vmatpush1.msra.mxu0 0.0
        %2776 = vmatprep.subr.mxu0 0.0
        %2777 = vmatpush1.msra.mxu0 0.0
        %2778 = vmatprep.subr.mxu0 0.0
        %2779 = vmatpush1.msra.mxu0 0.0
        %2780 = vmatprep.subr.mxu0 0.0
        %2781 = vmatpush1.msra.mxu0 0.0
        %2782 = vmatprep.subr.mxu0 0.0
        %2783 = vmatpush1.msra.mxu0 0.0
        %2784 = vmatprep.subr.mxu0 0.0
        %2785 = vmatpush1.msra.mxu0 0.0
        %2786 = vmatprep.subr.mxu0 0.0
        %2787 = vmatpush1.msra.mxu0 0.0
        %2788 = vmatprep.subr.mxu0 0.0
        %2789 = vmatpush1.msra.mxu0 0.0
        %2790 = vmatprep.subr.mxu0 0.0
        %2791 = vmatpush1.msra.mxu0 0.0
        %2792 = vmatprep.mubr.f32.mxu0 0.0
        %2793 = vmatmul.mubr.f32.gmra.mrb[0].mxu0 %v2726
        %v2794 = vpop.f32.mrb[0].mxu0
        %v2795 = vadd.f32 0.0, %v2794
        %v2796 = vpop.f32.mrb[0].mxu0
        %v2797 = vadd.f32 0.0, %v2796
        %2798 = vdwg.mxu0
        %2799 = vmatprep.subr.mxu0 %v2695
        %2800 = vmatpush1.msra.mxu0 %v2694
        %2801 = vmatprep.subr.mxu0 %v2699
        %2802 = vmatpush1.msra.mxu0 %v2698
        %2803 = vmatprep.subr.mxu0 %v2703
        %2804 = vmatpush1.msra.mxu0 %v2702
        %2805 = vmatprep.subr.mxu0 %v2707
        %2806 = vmatpush1.msra.mxu0 %v2706
        %2807 = vmatprep.subr.mxu0 %v2711
        %2808 = vmatpush1.msra.mxu0 %v2710
        %2809 = vmatprep.subr.mxu0 %v2715
        %2810 = vmatpush1.msra.mxu0 %v2714
        %2811 = vmatprep.subr.mxu0 %v2719
        %2812 = vmatpush1.msra.mxu0 %v2718
        %2813 = vmatprep.subr.mxu0 %v2723
        %2814 = vmatpush1.msra.mxu0 %v2722
        %2815 = vmatprep.subr.mxu0 0.0
        %2816 = vmatpush1.msra.mxu0 0.0
        %2817 = vmatprep.subr.mxu0 0.0
        %2818 = vmatpush1.msra.mxu0 0.0
        %2819 = vmatprep.subr.mxu0 0.0
        %2820 = vmatpush1.msra.mxu0 0.0
        %2821 = vmatprep.subr.mxu0 0.0
        %2822 = vmatpush1.msra.mxu0 0.0
        %2823 = vmatprep.subr.mxu0 0.0
        %2824 = vmatpush1.msra.mxu0 0.0
        %2825 = vmatprep.subr.mxu0 0.0
        %2826 = vmatpush1.msra.mxu0 0.0
        %2827 = vmatprep.subr.mxu0 0.0
        %2828 = vmatpush1.msra.mxu0 0.0
        %2829 = vmatprep.subr.mxu0 0.0
        %2830 = vmatpush1.msra.mxu0 0.0
        %2831 = vmatprep.subr.mxu0 0.0
        %2832 = vmatpush1.msra.mxu0 0.0
        %2833 = vmatprep.subr.mxu0 0.0
        %2834 = vmatpush1.msra.mxu0 0.0
        %2835 = vmatprep.subr.mxu0 0.0
        %2836 = vmatpush1.msra.mxu0 0.0
        %2837 = vmatprep.subr.mxu0 0.0
        %2838 = vmatpush1.msra.mxu0 0.0
        %2839 = vmatprep.subr.mxu0 0.0
        %2840 = vmatpush1.msra.mxu0 0.0
        %2841 = vmatprep.subr.mxu0 0.0
        %2842 = vmatpush1.msra.mxu0 0.0
        %2843 = vmatprep.subr.mxu0 0.0
        %2844 = vmatpush1.msra.mxu0 0.0
        %2845 = vmatprep.subr.mxu0 0.0
        %2846 = vmatpush1.msra.mxu0 0.0
        %2847 = vmatprep.subr.mxu0 0.0
        %2848 = vmatpush1.msra.mxu0 0.0
        %2849 = vmatprep.subr.mxu0 0.0
        %2850 = vmatpush1.msra.mxu0 0.0
        %2851 = vmatprep.subr.mxu0 0.0
        %2852 = vmatpush1.msra.mxu0 0.0
        %2853 = vmatprep.subr.mxu0 0.0
        %2854 = vmatpush1.msra.mxu0 0.0
        %2855 = vmatprep.subr.mxu0 0.0
        %2856 = vmatpush1.msra.mxu0 0.0
        %2857 = vmatprep.subr.mxu0 0.0
        %2858 = vmatpush1.msra.mxu0 0.0
        %2859 = vmatprep.subr.mxu0 0.0
        %2860 = vmatpush1.msra.mxu0 0.0
        %2861 = vmatprep.subr.mxu0 0.0
        %2862 = vmatpush1.msra.mxu0 0.0
        %2863 = vmatprep.mubr.f32.mxu0 0.0
        %2864 = vmatmul.mubr.f32.gmra.mrb[0].mxu0 %v2726
        %v2865 = vpop.f32.mrb[0].mxu0
        %v2866 = vadd.f32 0.0, %v2865
        %v2867 = vpop.f32.mrb[0].mxu0
        %v2868 = vadd.f32 0.0, %v2867
        %2869 = vdwg.mxu0
        %v2871 = vsel %vm2724, %v2655, 0
        %2873 = vmatprep.subr.mxu0 %v2657
        %2874 = vmatpush1.msra.mxu0 %v2656
        %2875 = vmatprep.subr.mxu0 %v2661
        %2876 = vmatpush1.msra.mxu0 %v2660
        %2877 = vmatprep.subr.mxu0 %v2665
        %2878 = vmatpush1.msra.mxu0 %v2664
        %2879 = vmatprep.subr.mxu0 %v2669
        %2880 = vmatpush1.msra.mxu0 %v2668
        %2881 = vmatprep.subr.mxu0 %v2673
        %2882 = vmatpush1.msra.mxu0 %v2672
        %2883 = vmatprep.subr.mxu0 %v2677
        %2884 = vmatpush1.msra.mxu0 %v2676
        %2885 = vmatprep.subr.mxu0 %v2681
        %2886 = vmatpush1.msra.mxu0 %v2680
        %2887 = vmatprep.subr.mxu0 %v2685
        %2888 = vmatpush1.msra.mxu0 %v2684
        %2889 = vmatprep.subr.mxu0 0.0
        %2890 = vmatpush1.msra.mxu0 0.0
        %2891 = vmatprep.subr.mxu0 0.0
        %2892 = vmatpush1.msra.mxu0 0.0
        %2893 = vmatprep.subr.mxu0 0.0
        %2894 = vmatpush1.msra.mxu0 0.0
        %2895 = vmatprep.subr.mxu0 0.0
        %2896 = vmatpush1.msra.mxu0 0.0
        %2897 = vmatprep.subr.mxu0 0.0
        %2898 = vmatpush1.msra.mxu0 0.0
        %2899 = vmatprep.subr.mxu0 0.0
        %2900 = vmatpush1.msra.mxu0 0.0
        %2901 = vmatprep.subr.mxu0 0.0
        %2902 = vmatpush1.msra.mxu0 0.0
        %2903 = vmatprep.subr.mxu0 0.0
        %2904 = vmatpush1.msra.mxu0 0.0
        %2905 = vmatprep.subr.mxu0 0.0
        %2906 = vmatpush1.msra.mxu0 0.0
        %2907 = vmatprep.subr.mxu0 0.0
        %2908 = vmatpush1.msra.mxu0 0.0
        %2909 = vmatprep.subr.mxu0 0.0
        %2910 = vmatpush1.msra.mxu0 0.0
        %2911 = vmatprep.subr.mxu0 0.0
        %2912 = vmatpush1.msra.mxu0 0.0
        %2913 = vmatprep.subr.mxu0 0.0
        %2914 = vmatpush1.msra.mxu0 0.0
        %2915 = vmatprep.subr.mxu0 0.0
        %2916 = vmatpush1.msra.mxu0 0.0
        %2917 = vmatprep.subr.mxu0 0.0
        %2918 = vmatpush1.msra.mxu0 0.0
        %2919 = vmatprep.subr.mxu0 0.0
        %2920 = vmatpush1.msra.mxu0 0.0
        %2921 = vmatprep.subr.mxu0 0.0
        %2922 = vmatpush1.msra.mxu0 0.0
        %2923 = vmatprep.subr.mxu0 0.0
        %2924 = vmatpush1.msra.mxu0 0.0
        %2925 = vmatprep.subr.mxu0 0.0
        %2926 = vmatpush1.msra.mxu0 0.0
        %2927 = vmatprep.subr.mxu0 0.0
        %2928 = vmatpush1.msra.mxu0 0.0
        %2929 = vmatprep.subr.mxu0 0.0
        %2930 = vmatpush1.msra.mxu0 0.0
        %2931 = vmatprep.subr.mxu0 0.0
        %2932 = vmatpush1.msra.mxu0 0.0
        %2933 = vmatprep.subr.mxu0 0.0
        %2934 = vmatpush1.msra.mxu0 0.0
        %2935 = vmatprep.subr.mxu0 0.0
        %2936 = vmatpush1.msra.mxu0 0.0
        %2937 = vmatprep.mubr.f32.mxu0 0.0
        %2938 = vmatmul.mubr.f32.gmra.mrb[0].mxu0 %v2871
        %v2939 = vpop.f32.mrb[0].mxu0
        %v2940 = vadd.f32 %v2795, %v2939
        %v2941 = vpop.f32.mrb[0].mxu0
        %v2942 = vadd.f32 %v2797, %v2941
        %2943 = vdwg.mxu0
        %2944 = vmatprep.subr.mxu0 %v2659
        %2945 = vmatpush1.msra.mxu0 %v2658
        %2946 = vmatprep.subr.mxu0 %v2663
        %2947 = vmatpush1.msra.mxu0 %v2662
        %2948 = vmatprep.subr.mxu0 %v2667
        %2949 = vmatpush1.msra.mxu0 %v2666
        %2950 = vmatprep.subr.mxu0 %v2671
        %2951 = vmatpush1.msra.mxu0 %v2670
        %2952 = vmatprep.subr.mxu0 %v2675
        %2953 = vmatpush1.msra.mxu0 %v2674
        %2954 = vmatprep.subr.mxu0 %v2679
        %2955 = vmatpush1.msra.mxu0 %v2678
        %2956 = vmatprep.subr.mxu0 %v2683
        %2957 = vmatpush1.msra.mxu0 %v2682
        %2958 = vmatprep.subr.mxu0 %v2687
        %2959 = vmatpush1.msra.mxu0 %v2686
        %2960 = vmatprep.subr.mxu0 0.0
        %2961 = vmatpush1.msra.mxu0 0.0
        %2962 = vmatprep.subr.mxu0 0.0
        %2963 = vmatpush1.msra.mxu0 0.0
        %2964 = vmatprep.subr.mxu0 0.0
        %2965 = vmatpush1.msra.mxu0 0.0
        %2966 = vmatprep.subr.mxu0 0.0
        %2967 = vmatpush1.msra.mxu0 0.0
        %2968 = vmatprep.subr.mxu0 0.0
        %2969 = vmatpush1.msra.mxu0 0.0
        %2970 = vmatprep.subr.mxu0 0.0
        %2971 = vmatpush1.msra.mxu0 0.0
        %2972 = vmatprep.subr.mxu0 0.0
        %2973 = vmatpush1.msra.mxu0 0.0
        %2974 = vmatprep.subr.mxu0 0.0
        %2975 = vmatpush1.msra.mxu0 0.0
        %2976 = vmatprep.subr.mxu0 0.0
        %2977 = vmatpush1.msra.mxu0 0.0
        %2978 = vmatprep.subr.mxu0 0.0
        %2979 = vmatpush1.msra.mxu0 0.0
        %2980 = vmatprep.subr.mxu0 0.0
        %2981 = vmatpush1.msra.mxu0 0.0
        %2982 = vmatprep.subr.mxu0 0.0
        %2983 = vmatpush1.msra.mxu0 0.0
        %2984 = vmatprep.subr.mxu0 0.0
        %2985 = vmatpush1.msra.mxu0 0.0
        %2986 = vmatprep.subr.mxu0 0.0
        %2987 = vmatpush1.msra.mxu0 0.0
        %2988 = vmatprep.subr.mxu0 0.0
        %2989 = vmatpush1.msra.mxu0 0.0
        %2990 = vmatprep.subr.mxu0 0.0
        %2991 = vmatpush1.msra.mxu0 0.0
        %2992 = vmatprep.subr.mxu0 0.0
        %2993 = vmatpush1.msra.mxu0 0.0
        %2994 = vmatprep.subr.mxu0 0.0
        %2995 = vmatpush1.msra.mxu0 0.0
        %2996 = vmatprep.subr.mxu0 0.0
        %2997 = vmatpush1.msra.mxu0 0.0
        %2998 = vmatprep.subr.mxu0 0.0
        %2999 = vmatpush1.msra.mxu0 0.0
        %3000 = vmatprep.subr.mxu0 0.0
        %3001 = vmatpush1.msra.mxu0 0.0
        %3002 = vmatprep.subr.mxu0 0.0
        %3003 = vmatpush1.msra.mxu0 0.0
        %3004 = vmatprep.subr.mxu0 0.0
        %3005 = vmatpush1.msra.mxu0 0.0
        %3006 = vmatprep.subr.mxu0 0.0
        %3007 = vmatpush1.msra.mxu0 0.0
        %3008 = vmatprep.mubr.f32.mxu0 0.0
        %3009 = vmatmul.mubr.f32.gmra.mrb[0].mxu0 %v2871
        %v3010 = vpop.f32.mrb[0].mxu0
        %v3011 = vadd.f32 %v2866, %v3010
        %v3012 = vpop.f32.mrb[0].mxu0
        %v3013 = vadd.f32 %v2868, %v3012
        %3014 = vdwg.mxu0
        %v3015 = vrot.slane %v2649, 2
        %v3017 = vrot.slane %v2650, 1
        %v3019 = vsel %vm2654, %v3015, %v3017
        %v3020 = vld [vmem:[%s227 + $0x200] sm:$0xff]
        %v3021 = vld [vmem:[%s227 + $0x208] sm:$0xff]
        %v3022 = vld [vmem:[%s227 + $0x210] sm:$0xff]
        %v3023 = vld [vmem:[%s227 + $0x218] sm:$0xff]
        %v3024 = vld [vmem:[%s227 + $0x220] sm:$0xff]
        %v3025 = vld [vmem:[%s227 + $0x228] sm:$0xff]
        %v3026 = vld [vmem:[%s227 + $0x230] sm:$0xff]
        %v3027 = vld [vmem:[%s227 + $0x238] sm:$0xff]
        %v3028 = vld [vmem:[%s227 + $0x240] sm:$0xff]
        %v3029 = vld [vmem:[%s227 + $0x248] sm:$0xff]
        %v3030 = vld [vmem:[%s227 + $0x250] sm:$0xff]
        %v3031 = vld [vmem:[%s227 + $0x258] sm:$0xff]
        %v3032 = vld [vmem:[%s227 + $0x260] sm:$0xff]
        %v3033 = vld [vmem:[%s227 + $0x268] sm:$0xff]
        %v3034 = vld [vmem:[%s227 + $0x270] sm:$0xff]
        %v3035 = vld [vmem:[%s227 + $0x278] sm:$0xff]
        %v3036 = vld [vmem:[%s227 + $0x280] sm:$0xff]
        %v3037 = vld [vmem:[%s227 + $0x288] sm:$0xff]
        %v3038 = vld [vmem:[%s227 + $0x290] sm:$0xff]
        %v3039 = vld [vmem:[%s227 + $0x298] sm:$0xff]
        %v3040 = vld [vmem:[%s227 + $0x2a0] sm:$0xff]
        %v3041 = vld [vmem:[%s227 + $0x2a8] sm:$0xff]
        %v3042 = vld [vmem:[%s227 + $0x2b0] sm:$0xff]
        %v3043 = vld [vmem:[%s227 + $0x2b8] sm:$0xff]
        %v3044 = vld [vmem:[%s227 + $0x2c0] sm:$0xff]
        %v3045 = vld [vmem:[%s227 + $0x2c8] sm:$0xff]
        %v3046 = vld [vmem:[%s227 + $0x2d0] sm:$0xff]
        %v3047 = vld [vmem:[%s227 + $0x2d8] sm:$0xff]
        %v3048 = vld [vmem:[%s227 + $0x2e0] sm:$0xff]
        %v3049 = vld [vmem:[%s227 + $0x2e8] sm:$0xff]
        %v3050 = vld [vmem:[%s227 + $0x2f0] sm:$0xff]
        %v3051 = vld [vmem:[%s227 + $0x2f8] sm:$0xff]
        %v3053 = vsel %vm2724, %v3019, 0
        %3055 = vmatprep.subr.mxu0 %v3021
        %3056 = vmatpush1.msra.mxu0 %v3020
        %3057 = vmatprep.subr.mxu0 %v3025
        %3058 = vmatpush1.msra.mxu0 %v3024
        %3059 = vmatprep.subr.mxu0 %v3029
        %3060 = vmatpush1.msra.mxu0 %v3028
        %3061 = vmatprep.subr.mxu0 %v3033
        %3062 = vmatpush1.msra.mxu0 %v3032
        %3063 = vmatprep.subr.mxu0 %v3037
        %3064 = vmatpush1.msra.mxu0 %v3036
        %3065 = vmatprep.subr.mxu0 %v3041
        %3066 = vmatpush1.msra.mxu0 %v3040
        %3067 = vmatprep.subr.mxu0 %v3045
        %3068 = vmatpush1.msra.mxu0 %v3044
        %3069 = vmatprep.subr.mxu0 %v3049
        %3070 = vmatpush1.msra.mxu0 %v3048
        %3071 = vmatprep.subr.mxu0 0.0
        %3072 = vmatpush1.msra.mxu0 0.0
        %3073 = vmatprep.subr.mxu0 0.0
        %3074 = vmatpush1.msra.mxu0 0.0
        %3075 = vmatprep.subr.mxu0 0.0
        %3076 = vmatpush1.msra.mxu0 0.0
        %3077 = vmatprep.subr.mxu0 0.0
        %3078 = vmatpush1.msra.mxu0 0.0
        %3079 = vmatprep.subr.mxu0 0.0
        %3080 = vmatpush1.msra.mxu0 0.0
        %3081 = vmatprep.subr.mxu0 0.0
        %3082 = vmatpush1.msra.mxu0 0.0
        %3083 = vmatprep.subr.mxu0 0.0
        %3084 = vmatpush1.msra.mxu0 0.0
        %3085 = vmatprep.subr.mxu0 0.0
        %3086 = vmatpush1.msra.mxu0 0.0
        %3087 = vmatprep.subr.mxu0 0.0
        %3088 = vmatpush1.msra.mxu0 0.0
        %3089 = vmatprep.subr.mxu0 0.0
        %3090 = vmatpush1.msra.mxu0 0.0
        %3091 = vmatprep.subr.mxu0 0.0
        %3092 = vmatpush1.msra.mxu0 0.0
        %3093 = vmatprep.subr.mxu0 0.0
        %3094 = vmatpush1.msra.mxu0 0.0
        %3095 = vmatprep.subr.mxu0 0.0
        %3096 = vmatpush1.msra.mxu0 0.0
        %3097 = vmatprep.subr.mxu0 0.0
        %3098 = vmatpush1.msra.mxu0 0.0
        %3099 = vmatprep.subr.mxu0 0.0
        %3100 = vmatpush1.msra.mxu0 0.0
        %3101 = vmatprep.subr.mxu0 0.0
        %3102 = vmatpush1.msra.mxu0 0.0
        %3103 = vmatprep.subr.mxu0 0.0
        %3104 = vmatpush1.msra.mxu0 0.0
        %3105 = vmatprep.subr.mxu0 0.0
        %3106 = vmatpush1.msra.mxu0 0.0
        %3107 = vmatprep.subr.mxu0 0.0
        %3108 = vmatpush1.msra.mxu0 0.0
        %3109 = vmatprep.subr.mxu0 0.0
        %3110 = vmatpush1.msra.mxu0 0.0
        %3111 = vmatprep.subr.mxu0 0.0
        %3112 = vmatpush1.msra.mxu0 0.0
        %3113 = vmatprep.subr.mxu0 0.0
        %3114 = vmatpush1.msra.mxu0 0.0
        %3115 = vmatprep.subr.mxu0 0.0
        %3116 = vmatpush1.msra.mxu0 0.0
        %3117 = vmatprep.subr.mxu0 0.0
        %3118 = vmatpush1.msra.mxu0 0.0
        %3119 = vmatprep.mubr.f32.mxu0 0.0
        %3120 = vmatmul.mubr.f32.gmra.mrb[0].mxu0 %v3053
        %v3121 = vpop.f32.mrb[0].mxu0
        %v3122 = vadd.f32 0.0, %v3121
        %v3123 = vpop.f32.mrb[0].mxu0
        %v3124 = vadd.f32 0.0, %v3123
        %3125 = vdwg.mxu0
        %3126 = vmatprep.subr.mxu0 %v3023
        %3127 = vmatpush1.msra.mxu0 %v3022
        %3128 = vmatprep.subr.mxu0 %v3027
        %3129 = vmatpush1.msra.mxu0 %v3026
        %3130 = vmatprep.subr.mxu0 %v3031
        %3131 = vmatpush1.msra.mxu0 %v3030
        %3132 = vmatprep.subr.mxu0 %v3035
        %3133 = vmatpush1.msra.mxu0 %v3034
        %3134 = vmatprep.subr.mxu0 %v3039
        %3135 = vmatpush1.msra.mxu0 %v3038
        %3136 = vmatprep.subr.mxu0 %v3043
        %3137 = vmatpush1.msra.mxu0 %v3042
        %3138 = vmatprep.subr.mxu0 %v3047
        %3139 = vmatpush1.msra.mxu0 %v3046
        %3140 = vmatprep.subr.mxu0 %v3051
        %3141 = vmatpush1.msra.mxu0 %v3050
        %3142 = vmatprep.subr.mxu0 0.0
        %3143 = vmatpush1.msra.mxu0 0.0
        %3144 = vmatprep.subr.mxu0 0.0
        %3145 = vmatpush1.msra.mxu0 0.0
        %3146 = vmatprep.subr.mxu0 0.0
        %3147 = vmatpush1.msra.mxu0 0.0
        %3148 = vmatprep.subr.mxu0 0.0
        %3149 = vmatpush1.msra.mxu0 0.0
        %3150 = vmatprep.subr.mxu0 0.0
        %3151 = vmatpush1.msra.mxu0 0.0
        %3152 = vmatprep.subr.mxu0 0.0
        %3153 = vmatpush1.msra.mxu0 0.0
        %3154 = vmatprep.subr.mxu0 0.0
        %3155 = vmatpush1.msra.mxu0 0.0
        %3156 = vmatprep.subr.mxu0 0.0
        %3157 = vmatpush1.msra.mxu0 0.0
        %3158 = vmatprep.subr.mxu0 0.0
        %3159 = vmatpush1.msra.mxu0 0.0
        %3160 = vmatprep.subr.mxu0 0.0
        %3161 = vmatpush1.msra.mxu0 0.0
        %3162 = vmatprep.subr.mxu0 0.0
        %3163 = vmatpush1.msra.mxu0 0.0
        %3164 = vmatprep.subr.mxu0 0.0
        %3165 = vmatpush1.msra.mxu0 0.0
        %3166 = vmatprep.subr.mxu0 0.0
        %3167 = vmatpush1.msra.mxu0 0.0
        %3168 = vmatprep.subr.mxu0 0.0
        %3169 = vmatpush1.msra.mxu0 0.0
        %3170 = vmatprep.subr.mxu0 0.0
        %3171 = vmatpush1.msra.mxu0 0.0
        %3172 = vmatprep.subr.mxu0 0.0
        %3173 = vmatpush1.msra.mxu0 0.0
        %3174 = vmatprep.subr.mxu0 0.0
        %3175 = vmatpush1.msra.mxu0 0.0
        %3176 = vmatprep.subr.mxu0 0.0
        %3177 = vmatpush1.msra.mxu0 0.0
        %3178 = vmatprep.subr.mxu0 0.0
        %3179 = vmatpush1.msra.mxu0 0.0
        %3180 = vmatprep.subr.mxu0 0.0
        %3181 = vmatpush1.msra.mxu0 0.0
        %3182 = vmatprep.subr.mxu0 0.0
        %3183 = vmatpush1.msra.mxu0 0.0
        %3184 = vmatprep.subr.mxu0 0.0
        %3185 = vmatpush1.msra.mxu0 0.0
        %3186 = vmatprep.subr.mxu0 0.0
        %3187 = vmatpush1.msra.mxu0 0.0
        %3188 = vmatprep.subr.mxu0 0.0
        %3189 = vmatpush1.msra.mxu0 0.0
        %3190 = vmatprep.mubr.f32.mxu0 0.0
        %3191 = vmatmul.mubr.f32.gmra.mrb[0].mxu0 %v3053
        %v3192 = vpop.f32.mrb[0].mxu0
        %v3193 = vadd.f32 0.0, %v3192
        %v3194 = vpop.f32.mrb[0].mxu0
        %v3195 = vadd.f32 0.0, %v3194
        %3196 = vdwg.mxu0
        %v3197 = vadd.f32 %v2940, %v3122
        %v3198 = vadd.f32 %v2942, %v3124
        %v3199 = vadd.f32 %v3011, %v3193
        %v3200 = vadd.f32 %v3013, %v3195
        %v3201 = vrot.slane %v2649, 3
        %v3203 = vrot.slane %v2650, 2
        %v3205 = vsel %vm2654, %v3201, %v3203
        %v3206 = vld [vmem:[%s227 + $0x300] sm:$0xff]
        %v3207 = vld [vmem:[%s227 + $0x308] sm:$0xff]
        %v3208 = vld [vmem:[%s227 + $0x310] sm:$0xff]
        %v3209 = vld [vmem:[%s227 + $0x318] sm:$0xff]
        %v3210 = vld [vmem:[%s227 + $0x320] sm:$0xff]
        %v3211 = vld [vmem:[%s227 + $0x328] sm:$0xff]
        %v3212 = vld [vmem:[%s227 + $0x330] sm:$0xff]
        %v3213 = vld [vmem:[%s227 + $0x338] sm:$0xff]
        %v3214 = vld [vmem:[%s227 + $0x340] sm:$0xff]
        %v3215 = vld [vmem:[%s227 + $0x348] sm:$0xff]
        %v3216 = vld [vmem:[%s227 + $0x350] sm:$0xff]
        %v3217 = vld [vmem:[%s227 + $0x358] sm:$0xff]
        %v3218 = vld [vmem:[%s227 + $0x360] sm:$0xff]
        %v3219 = vld [vmem:[%s227 + $0x368] sm:$0xff]
        %v3220 = vld [vmem:[%s227 + $0x370] sm:$0xff]
        %v3221 = vld [vmem:[%s227 + $0x378] sm:$0xff]
        %v3222 = vld [vmem:[%s227 + $0x380] sm:$0xff]
        %v3223 = vld [vmem:[%s227 + $0x388] sm:$0xff]
        %v3224 = vld [vmem:[%s227 + $0x390] sm:$0xff]
        %v3225 = vld [vmem:[%s227 + $0x398] sm:$0xff]
        %v3226 = vld [vmem:[%s227 + $0x3a0] sm:$0xff]
        %v3227 = vld [vmem:[%s227 + $0x3a8] sm:$0xff]
        %v3228 = vld [vmem:[%s227 + $0x3b0] sm:$0xff]
        %v3229 = vld [vmem:[%s227 + $0x3b8] sm:$0xff]
        %v3230 = vld [vmem:[%s227 + $0x3c0] sm:$0xff]
        %v3231 = vld [vmem:[%s227 + $0x3c8] sm:$0xff]
        %v3232 = vld [vmem:[%s227 + $0x3d0] sm:$0xff]
        %v3233 = vld [vmem:[%s227 + $0x3d8] sm:$0xff]
        %v3234 = vld [vmem:[%s227 + $0x3e0] sm:$0xff]
        %v3235 = vld [vmem:[%s227 + $0x3e8] sm:$0xff]
        %v3236 = vld [vmem:[%s227 + $0x3f0] sm:$0xff]
        %v3237 = vld [vmem:[%s227 + $0x3f8] sm:$0xff]
        %v3239 = vsel %vm2724, %v3205, 0
        %3241 = vmatprep.subr.mxu0 %v3207
        %3242 = vmatpush1.msra.mxu0 %v3206
        %3243 = vmatprep.subr.mxu0 %v3211
        %3244 = vmatpush1.msra.mxu0 %v3210
        %3245 = vmatprep.subr.mxu0 %v3215
        %3246 = vmatpush1.msra.mxu0 %v3214
        %3247 = vmatprep.subr.mxu0 %v3219
        %3248 = vmatpush1.msra.mxu0 %v3218
        %3249 = vmatprep.subr.mxu0 %v3223
        %3250 = vmatpush1.msra.mxu0 %v3222
        %3251 = vmatprep.subr.mxu0 %v3227
        %3252 = vmatpush1.msra.mxu0 %v3226
        %3253 = vmatprep.subr.mxu0 %v3231
        %3254 = vmatpush1.msra.mxu0 %v3230
        %3255 = vmatprep.subr.mxu0 %v3235
        %3256 = vmatpush1.msra.mxu0 %v3234
        %3257 = vmatprep.subr.mxu0 0.0
        %3258 = vmatpush1.msra.mxu0 0.0
        %3259 = vmatprep.subr.mxu0 0.0
        %3260 = vmatpush1.msra.mxu0 0.0
        %3261 = vmatprep.subr.mxu0 0.0
        %3262 = vmatpush1.msra.mxu0 0.0
        %3263 = vmatprep.subr.mxu0 0.0
        %3264 = vmatpush1.msra.mxu0 0.0
        %3265 = vmatprep.subr.mxu0 0.0
        %3266 = vmatpush1.msra.mxu0 0.0
        %3267 = vmatprep.subr.mxu0 0.0
        %3268 = vmatpush1.msra.mxu0 0.0
        %3269 = vmatprep.subr.mxu0 0.0
        %3270 = vmatpush1.msra.mxu0 0.0
        %3271 = vmatprep.subr.mxu0 0.0
        %3272 = vmatpush1.msra.mxu0 0.0
        %3273 = vmatprep.subr.mxu0 0.0
        %3274 = vmatpush1.msra.mxu0 0.0
        %3275 = vmatprep.subr.mxu0 0.0
        %3276 = vmatpush1.msra.mxu0 0.0
        %3277 = vmatprep.subr.mxu0 0.0
        %3278 = vmatpush1.msra.mxu0 0.0
        %3279 = vmatprep.subr.mxu0 0.0
        %3280 = vmatpush1.msra.mxu0 0.0
        %3281 = vmatprep.subr.mxu0 0.0
        %3282 = vmatpush1.msra.mxu0 0.0
        %3283 = vmatprep.subr.mxu0 0.0
        %3284 = vmatpush1.msra.mxu0 0.0
        %3285 = vmatprep.subr.mxu0 0.0
        %3286 = vmatpush1.msra.mxu0 0.0
        %3287 = vmatprep.subr.mxu0 0.0
        %3288 = vmatpush1.msra.mxu0 0.0
        %3289 = vmatprep.subr.mxu0 0.0
        %3290 = vmatpush1.msra.mxu0 0.0
        %3291 = vmatprep.subr.mxu0 0.0
        %3292 = vmatpush1.msra.mxu0 0.0
        %3293 = vmatprep.subr.mxu0 0.0
        %3294 = vmatpush1.msra.mxu0 0.0
        %3295 = vmatprep.subr.mxu0 0.0
        %3296 = vmatpush1.msra.mxu0 0.0
        %3297 = vmatprep.subr.mxu0 0.0
        %3298 = vmatpush1.msra.mxu0 0.0
        %3299 = vmatprep.subr.mxu0 0.0
        %3300 = vmatpush1.msra.mxu0 0.0
        %3301 = vmatprep.subr.mxu0 0.0
        %3302 = vmatpush1.msra.mxu0 0.0
        %3303 = vmatprep.subr.mxu0 0.0
        %3304 = vmatpush1.msra.mxu0 0.0
        %3305 = vmatprep.mubr.f32.mxu0 0.0
        %3306 = vmatmul.mubr.f32.gmra.mrb[0].mxu0 %v3239
        %v3307 = vpop.f32.mrb[0].mxu0
        %v3308 = vadd.f32 0.0, %v3307
        %v3309 = vpop.f32.mrb[0].mxu0
        %v3310 = vadd.f32 0.0, %v3309
        %3311 = vdwg.mxu0
        %3312 = vmatprep.subr.mxu0 %v3209
        %3313 = vmatpush1.msra.mxu0 %v3208
        %3314 = vmatprep.subr.mxu0 %v3213
        %3315 = vmatpush1.msra.mxu0 %v3212
        %3316 = vmatprep.subr.mxu0 %v3217
        %3317 = vmatpush1.msra.mxu0 %v3216
        %3318 = vmatprep.subr.mxu0 %v3221
        %3319 = vmatpush1.msra.mxu0 %v3220
        %3320 = vmatprep.subr.mxu0 %v3225
        %3321 = vmatpush1.msra.mxu0 %v3224
        %3322 = vmatprep.subr.mxu0 %v3229
        %3323 = vmatpush1.msra.mxu0 %v3228
        %3324 = vmatprep.subr.mxu0 %v3233
        %3325 = vmatpush1.msra.mxu0 %v3232
        %3326 = vmatprep.subr.mxu0 %v3237
        %3327 = vmatpush1.msra.mxu0 %v3236
        %3328 = vmatprep.subr.mxu0 0.0
        %3329 = vmatpush1.msra.mxu0 0.0
        %3330 = vmatprep.subr.mxu0 0.0
        %3331 = vmatpush1.msra.mxu0 0.0
        %3332 = vmatprep.subr.mxu0 0.0
        %3333 = vmatpush1.msra.mxu0 0.0
        %3334 = vmatprep.subr.mxu0 0.0
        %3335 = vmatpush1.msra.mxu0 0.0
        %3336 = vmatprep.subr.mxu0 0.0
        %3337 = vmatpush1.msra.mxu0 0.0
        %3338 = vmatprep.subr.mxu0 0.0
        %3339 = vmatpush1.msra.mxu0 0.0
        %3340 = vmatprep.subr.mxu0 0.0
        %3341 = vmatpush1.msra.mxu0 0.0
        %3342 = vmatprep.subr.mxu0 0.0
        %3343 = vmatpush1.msra.mxu0 0.0
        %3344 = vmatprep.subr.mxu0 0.0
        %3345 = vmatpush1.msra.mxu0 0.0
        %3346 = vmatprep.subr.mxu0 0.0
        %3347 = vmatpush1.msra.mxu0 0.0
        %3348 = vmatprep.subr.mxu0 0.0
        %3349 = vmatpush1.msra.mxu0 0.0
        %3350 = vmatprep.subr.mxu0 0.0
        %3351 = vmatpush1.msra.mxu0 0.0
        %3352 = vmatprep.subr.mxu0 0.0
        %3353 = vmatpush1.msra.mxu0 0.0
        %3354 = vmatprep.subr.mxu0 0.0
        %3355 = vmatpush1.msra.mxu0 0.0
        %3356 = vmatprep.subr.mxu0 0.0
        %3357 = vmatpush1.msra.mxu0 0.0
        %3358 = vmatprep.subr.mxu0 0.0
        %3359 = vmatpush1.msra.mxu0 0.0
        %3360 = vmatprep.subr.mxu0 0.0
        %3361 = vmatpush1.msra.mxu0 0.0
        %3362 = vmatprep.subr.mxu0 0.0
        %3363 = vmatpush1.msra.mxu0 0.0
        %3364 = vmatprep.subr.mxu0 0.0
        %3365 = vmatpush1.msra.mxu0 0.0
        %3366 = vmatprep.subr.mxu0 0.0
        %3367 = vmatpush1.msra.mxu0 0.0
        %3368 = vmatprep.subr.mxu0 0.0
        %3369 = vmatpush1.msra.mxu0 0.0
        %3370 = vmatprep.subr.mxu0 0.0
        %3371 = vmatpush1.msra.mxu0 0.0
        %3372 = vmatprep.subr.mxu0 0.0
        %3373 = vmatpush1.msra.mxu0 0.0
        %3374 = vmatprep.subr.mxu0 0.0
        %3375 = vmatpush1.msra.mxu0 0.0
        %3376 = vmatprep.mubr.f32.mxu0 0.0
        %3377 = vmatmul.mubr.f32.gmra.mrb[0].mxu0 %v3239
        %v3378 = vpop.f32.mrb[0].mxu0
        %v3379 = vadd.f32 0.0, %v3378
        %v3380 = vpop.f32.mrb[0].mxu0
        %v3381 = vadd.f32 0.0, %v3380
        %3382 = vdwg.mxu0
        %v3383 = vadd.f32 %v3197, %v3308
        %v3384 = vadd.f32 %v3198, %v3310
        %v3385 = vadd.f32 %v3199, %v3379
        %v3386 = vadd.f32 %v3200, %v3381
        %v3387 = vrot.slane %v2649, 4
        %v3389 = vrot.slane %v2650, 3
        %v3391 = vsel %vm2654, %v3387, %v3389
        %v3392 = vld [vmem:[%s227 + $0x400] sm:$0xff]
        %v3393 = vld [vmem:[%s227 + $0x408] sm:$0xff]
        %v3394 = vld [vmem:[%s227 + $0x410] sm:$0xff]
        %v3395 = vld [vmem:[%s227 + $0x418] sm:$0xff]
        %v3396 = vld [vmem:[%s227 + $0x420] sm:$0xff]
        %v3397 = vld [vmem:[%s227 + $0x428] sm:$0xff]
        %v3398 = vld [vmem:[%s227 + $0x430] sm:$0xff]
        %v3399 = vld [vmem:[%s227 + $0x438] sm:$0xff]
        %v3400 = vld [vmem:[%s227 + $0x440] sm:$0xff]
        %v3401 = vld [vmem:[%s227 + $0x448] sm:$0xff]
        %v3402 = vld [vmem:[%s227 + $0x450] sm:$0xff]
        %v3403 = vld [vmem:[%s227 + $0x458] sm:$0xff]
        %v3404 = vld [vmem:[%s227 + $0x460] sm:$0xff]
        %v3405 = vld [vmem:[%s227 + $0x468] sm:$0xff]
        %v3406 = vld [vmem:[%s227 + $0x470] sm:$0xff]
        %v3407 = vld [vmem:[%s227 + $0x478] sm:$0xff]
        %v3408 = vld [vmem:[%s227 + $0x480] sm:$0xff]
        %v3409 = vld [vmem:[%s227 + $0x488] sm:$0xff]
        %v3410 = vld [vmem:[%s227 + $0x490] sm:$0xff]
        %v3411 = vld [vmem:[%s227 + $0x498] sm:$0xff]
        %v3412 = vld [vmem:[%s227 + $0x4a0] sm:$0xff]
        %v3413 = vld [vmem:[%s227 + $0x4a8] sm:$0xff]
        %v3414 = vld [vmem:[%s227 + $0x4b0] sm:$0xff]
        %v3415 = vld [vmem:[%s227 + $0x4b8] sm:$0xff]
        %v3416 = vld [vmem:[%s227 + $0x4c0] sm:$0xff]
        %v3417 = vld [vmem:[%s227 + $0x4c8] sm:$0xff]
        %v3418 = vld [vmem:[%s227 + $0x4d0] sm:$0xff]
        %v3419 = vld [vmem:[%s227 + $0x4d8] sm:$0xff]
        %v3420 = vld [vmem:[%s227 + $0x4e0] sm:$0xff]
        %v3421 = vld [vmem:[%s227 + $0x4e8] sm:$0xff]
        %v3422 = vld [vmem:[%s227 + $0x4f0] sm:$0xff]
        %v3423 = vld [vmem:[%s227 + $0x4f8] sm:$0xff]
        %v3425 = vsel %vm2724, %v3391, 0
        %3427 = vmatprep.subr.mxu0 %v3393
        %3428 = vmatpush1.msra.mxu0 %v3392
        %3429 = vmatprep.subr.mxu0 %v3397
        %3430 = vmatpush1.msra.mxu0 %v3396
        %3431 = vmatprep.subr.mxu0 %v3401
        %3432 = vmatpush1.msra.mxu0 %v3400
        %3433 = vmatprep.subr.mxu0 %v3405
        %3434 = vmatpush1.msra.mxu0 %v3404
        %3435 = vmatprep.subr.mxu0 %v3409
        %3436 = vmatpush1.msra.mxu0 %v3408
        %3437 = vmatprep.subr.mxu0 %v3413
        %3438 = vmatpush1.msra.mxu0 %v3412
        %3439 = vmatprep.subr.mxu0 %v3417
        %3440 = vmatpush1.msra.mxu0 %v3416
        %3441 = vmatprep.subr.mxu0 %v3421
        %3442 = vmatpush1.msra.mxu0 %v3420
        %3443 = vmatprep.subr.mxu0 0.0
        %3444 = vmatpush1.msra.mxu0 0.0
        %3445 = vmatprep.subr.mxu0 0.0
        %3446 = vmatpush1.msra.mxu0 0.0
        %3447 = vmatprep.subr.mxu0 0.0
        %3448 = vmatpush1.msra.mxu0 0.0
        %3449 = vmatprep.subr.mxu0 0.0
        %3450 = vmatpush1.msra.mxu0 0.0
        %3451 = vmatprep.subr.mxu0 0.0
        %3452 = vmatpush1.msra.mxu0 0.0
        %3453 = vmatprep.subr.mxu0 0.0
        %3454 = vmatpush1.msra.mxu0 0.0
        %3455 = vmatprep.subr.mxu0 0.0
        %3456 = vmatpush1.msra.mxu0 0.0
        %3457 = vmatprep.subr.mxu0 0.0
        %3458 = vmatpush1.msra.mxu0 0.0
        %3459 = vmatprep.subr.mxu0 0.0
        %3460 = vmatpush1.msra.mxu0 0.0
        %3461 = vmatprep.subr.mxu0 0.0
        %3462 = vmatpush1.msra.mxu0 0.0
        %3463 = vmatprep.subr.mxu0 0.0
        %3464 = vmatpush1.msra.mxu0 0.0
        %3465 = vmatprep.subr.mxu0 0.0
        %3466 = vmatpush1.msra.mxu0 0.0
        %3467 = vmatprep.subr.mxu0 0.0
        %3468 = vmatpush1.msra.mxu0 0.0
        %3469 = vmatprep.subr.mxu0 0.0
        %3470 = vmatpush1.msra.mxu0 0.0
        %3471 = vmatprep.subr.mxu0 0.0
        %3472 = vmatpush1.msra.mxu0 0.0
        %3473 = vmatprep.subr.mxu0 0.0
        %3474 = vmatpush1.msra.mxu0 0.0
        %3475 = vmatprep.subr.mxu0 0.0
        %3476 = vmatpush1.msra.mxu0 0.0
        %3477 = vmatprep.subr.mxu0 0.0
        %3478 = vmatpush1.msra.mxu0 0.0
        %3479 = vmatprep.subr.mxu0 0.0
        %3480 = vmatpush1.msra.mxu0 0.0
        %3481 = vmatprep.subr.mxu0 0.0
        %3482 = vmatpush1.msra.mxu0 0.0
        %3483 = vmatprep.subr.mxu0 0.0
        %3484 = vmatpush1.msra.mxu0 0.0
        %3485 = vmatprep.subr.mxu0 0.0
        %3486 = vmatpush1.msra.mxu0 0.0
        %3487 = vmatprep.subr.mxu0 0.0
        %3488 = vmatpush1.msra.mxu0 0.0
        %3489 = vmatprep.subr.mxu0 0.0
        %3490 = vmatpush1.msra.mxu0 0.0
        %3491 = vmatprep.mubr.f32.mxu0 0.0
        %3492 = vmatmul.mubr.f32.gmra.mrb[0].mxu0 %v3425
        %v3493 = vpop.f32.mrb[0].mxu0
        %v3494 = vadd.f32 0.0, %v3493
        %v3495 = vpop.f32.mrb[0].mxu0
        %v3496 = vadd.f32 0.0, %v3495
        %3497 = vdwg.mxu0
        %3498 = vmatprep.subr.mxu0 %v3395
        %3499 = vmatpush1.msra.mxu0 %v3394
        %3500 = vmatprep.subr.mxu0 %v3399
        %3501 = vmatpush1.msra.mxu0 %v3398
        %3502 = vmatprep.subr.mxu0 %v3403
        %3503 = vmatpush1.msra.mxu0 %v3402
        %3504 = vmatprep.subr.mxu0 %v3407
        %3505 = vmatpush1.msra.mxu0 %v3406
        %3506 = vmatprep.subr.mxu0 %v3411
        %3507 = vmatpush1.msra.mxu0 %v3410
        %3508 = vmatprep.subr.mxu0 %v3415
        %3509 = vmatpush1.msra.mxu0 %v3414
        %3510 = vmatprep.subr.mxu0 %v3419
        %3511 = vmatpush1.msra.mxu0 %v3418
        %3512 = vmatprep.subr.mxu0 %v3423
        %3513 = vmatpush1.msra.mxu0 %v3422
        %3514 = vmatprep.subr.mxu0 0.0
        %3515 = vmatpush1.msra.mxu0 0.0
        %3516 = vmatprep.subr.mxu0 0.0
        %3517 = vmatpush1.msra.mxu0 0.0
        %3518 = vmatprep.subr.mxu0 0.0
        %3519 = vmatpush1.msra.mxu0 0.0
        %3520 = vmatprep.subr.mxu0 0.0
        %3521 = vmatpush1.msra.mxu0 0.0
        %3522 = vmatprep.subr.mxu0 0.0
        %3523 = vmatpush1.msra.mxu0 0.0
        %3524 = vmatprep.subr.mxu0 0.0
        %3525 = vmatpush1.msra.mxu0 0.0
        %3526 = vmatprep.subr.mxu0 0.0
        %3527 = vmatpush1.msra.mxu0 0.0
        %3528 = vmatprep.subr.mxu0 0.0
        %3529 = vmatpush1.msra.mxu0 0.0
        %3530 = vmatprep.subr.mxu0 0.0
        %3531 = vmatpush1.msra.mxu0 0.0
        %3532 = vmatprep.subr.mxu0 0.0
        %3533 = vmatpush1.msra.mxu0 0.0
        %3534 = vmatprep.subr.mxu0 0.0
        %3535 = vmatpush1.msra.mxu0 0.0
        %3536 = vmatprep.subr.mxu0 0.0
        %3537 = vmatpush1.msra.mxu0 0.0
        %3538 = vmatprep.subr.mxu0 0.0
        %3539 = vmatpush1.msra.mxu0 0.0
        %3540 = vmatprep.subr.mxu0 0.0
        %3541 = vmatpush1.msra.mxu0 0.0
        %3542 = vmatprep.subr.mxu0 0.0
        %3543 = vmatpush1.msra.mxu0 0.0
        %3544 = vmatprep.subr.mxu0 0.0
        %3545 = vmatpush1.msra.mxu0 0.0
        %3546 = vmatprep.subr.mxu0 0.0
        %3547 = vmatpush1.msra.mxu0 0.0
        %3548 = vmatprep.subr.mxu0 0.0
        %3549 = vmatpush1.msra.mxu0 0.0
        %3550 = vmatprep.subr.mxu0 0.0
        %3551 = vmatpush1.msra.mxu0 0.0
        %3552 = vmatprep.subr.mxu0 0.0
        %3553 = vmatpush1.msra.mxu0 0.0
        %3554 = vmatprep.subr.mxu0 0.0
        %3555 = vmatpush1.msra.mxu0 0.0
        %3556 = vmatprep.subr.mxu0 0.0
        %3557 = vmatpush1.msra.mxu0 0.0
        %3558 = vmatprep.subr.mxu0 0.0
        %3559 = vmatpush1.msra.mxu0 0.0
        %3560 = vmatprep.subr.mxu0 0.0
        %3561 = vmatpush1.msra.mxu0 0.0
        %3562 = vmatprep.mubr.f32.mxu0 0.0
        %3563 = vmatmul.mubr.f32.gmra.mrb[0].mxu0 %v3425
        %v3564 = vpop.f32.mrb[0].mxu0
        %v3565 = vadd.f32 0.0, %v3564
        %v3566 = vpop.f32.mrb[0].mxu0
        %v3567 = vadd.f32 0.0, %v3566
        %3568 = vdwg.mxu0
        %v3569 = vadd.f32 %v3383, %v3494
        %v3570 = vadd.f32 %v3384, %v3496
        %v3571 = vadd.f32 %v3385, %v3565
        %v3572 = vadd.f32 %v3386, %v3567
        %v3573 = vrot.slane %v2649, 5
        %v3575 = vrot.slane %v2650, 4
        %v3577 = vsel %vm2654, %v3573, %v3575
        %v3578 = vld [vmem:[%s227 + $0x500] sm:$0xff]
        %v3579 = vld [vmem:[%s227 + $0x508] sm:$0xff]
        %v3580 = vld [vmem:[%s227 + $0x510] sm:$0xff]
        %v3581 = vld [vmem:[%s227 + $0x518] sm:$0xff]
        %v3582 = vld [vmem:[%s227 + $0x520] sm:$0xff]
        %v3583 = vld [vmem:[%s227 + $0x528] sm:$0xff]
        %v3584 = vld [vmem:[%s227 + $0x530] sm:$0xff]
        %v3585 = vld [vmem:[%s227 + $0x538] sm:$0xff]
        %v3586 = vld [vmem:[%s227 + $0x540] sm:$0xff]
        %v3587 = vld [vmem:[%s227 + $0x548] sm:$0xff]
        %v3588 = vld [vmem:[%s227 + $0x550] sm:$0xff]
        %v3589 = vld [vmem:[%s227 + $0x558] sm:$0xff]
        %v3590 = vld [vmem:[%s227 + $0x560] sm:$0xff]
        %v3591 = vld [vmem:[%s227 + $0x568] sm:$0xff]
        %v3592 = vld [vmem:[%s227 + $0x570] sm:$0xff]
        %v3593 = vld [vmem:[%s227 + $0x578] sm:$0xff]
        %v3594 = vld [vmem:[%s227 + $0x580] sm:$0xff]
        %v3595 = vld [vmem:[%s227 + $0x588] sm:$0xff]
        %v3596 = vld [vmem:[%s227 + $0x590] sm:$0xff]
        %v3597 = vld [vmem:[%s227 + $0x598] sm:$0xff]
        %v3598 = vld [vmem:[%s227 + $0x5a0] sm:$0xff]
        %v3599 = vld [vmem:[%s227 + $0x5a8] sm:$0xff]
        %v3600 = vld [vmem:[%s227 + $0x5b0] sm:$0xff]
        %v3601 = vld [vmem:[%s227 + $0x5b8] sm:$0xff]
        %v3602 = vld [vmem:[%s227 + $0x5c0] sm:$0xff]
        %v3603 = vld [vmem:[%s227 + $0x5c8] sm:$0xff]
        %v3604 = vld [vmem:[%s227 + $0x5d0] sm:$0xff]
        %v3605 = vld [vmem:[%s227 + $0x5d8] sm:$0xff]
        %v3606 = vld [vmem:[%s227 + $0x5e0] sm:$0xff]
        %v3607 = vld [vmem:[%s227 + $0x5e8] sm:$0xff]
        %v3608 = vld [vmem:[%s227 + $0x5f0] sm:$0xff]
        %v3609 = vld [vmem:[%s227 + $0x5f8] sm:$0xff]
        %v3611 = vsel %vm2724, %v3577, 0
        %3613 = vmatprep.subr.mxu0 %v3579
        %3614 = vmatpush1.msra.mxu0 %v3578
        %3615 = vmatprep.subr.mxu0 %v3583
        %3616 = vmatpush1.msra.mxu0 %v3582
        %3617 = vmatprep.subr.mxu0 %v3587
        %3618 = vmatpush1.msra.mxu0 %v3586
        %3619 = vmatprep.subr.mxu0 %v3591
        %3620 = vmatpush1.msra.mxu0 %v3590
        %3621 = vmatprep.subr.mxu0 %v3595
        %3622 = vmatpush1.msra.mxu0 %v3594
        %3623 = vmatprep.subr.mxu0 %v3599
        %3624 = vmatpush1.msra.mxu0 %v3598
        %3625 = vmatprep.subr.mxu0 %v3603
        %3626 = vmatpush1.msra.mxu0 %v3602
        %3627 = vmatprep.subr.mxu0 %v3607
        %3628 = vmatpush1.msra.mxu0 %v3606
        %3629 = vmatprep.subr.mxu0 0.0
        %3630 = vmatpush1.msra.mxu0 0.0
        %3631 = vmatprep.subr.mxu0 0.0
        %3632 = vmatpush1.msra.mxu0 0.0
        %3633 = vmatprep.subr.mxu0 0.0
        %3634 = vmatpush1.msra.mxu0 0.0
        %3635 = vmatprep.subr.mxu0 0.0
        %3636 = vmatpush1.msra.mxu0 0.0
        %3637 = vmatprep.subr.mxu0 0.0
        %3638 = vmatpush1.msra.mxu0 0.0
        %3639 = vmatprep.subr.mxu0 0.0
        %3640 = vmatpush1.msra.mxu0 0.0
        %3641 = vmatprep.subr.mxu0 0.0
        %3642 = vmatpush1.msra.mxu0 0.0
        %3643 = vmatprep.subr.mxu0 0.0
        %3644 = vmatpush1.msra.mxu0 0.0
        %3645 = vmatprep.subr.mxu0 0.0
        %3646 = vmatpush1.msra.mxu0 0.0
        %3647 = vmatprep.subr.mxu0 0.0
        %3648 = vmatpush1.msra.mxu0 0.0
        %3649 = vmatprep.subr.mxu0 0.0
        %3650 = vmatpush1.msra.mxu0 0.0
        %3651 = vmatprep.subr.mxu0 0.0
        %3652 = vmatpush1.msra.mxu0 0.0
        %3653 = vmatprep.subr.mxu0 0.0
        %3654 = vmatpush1.msra.mxu0 0.0
        %3655 = vmatprep.subr.mxu0 0.0
        %3656 = vmatpush1.msra.mxu0 0.0
        %3657 = vmatprep.subr.mxu0 0.0
        %3658 = vmatpush1.msra.mxu0 0.0
        %3659 = vmatprep.subr.mxu0 0.0
        %3660 = vmatpush1.msra.mxu0 0.0
        %3661 = vmatprep.subr.mxu0 0.0
        %3662 = vmatpush1.msra.mxu0 0.0
        %3663 = vmatprep.subr.mxu0 0.0
        %3664 = vmatpush1.msra.mxu0 0.0
        %3665 = vmatprep.subr.mxu0 0.0
        %3666 = vmatpush1.msra.mxu0 0.0
        %3667 = vmatprep.subr.mxu0 0.0
        %3668 = vmatpush1.msra.mxu0 0.0
        %3669 = vmatprep.subr.mxu0 0.0
        %3670 = vmatpush1.msra.mxu0 0.0
        %3671 = vmatprep.subr.mxu0 0.0
        %3672 = vmatpush1.msra.mxu0 0.0
        %3673 = vmatprep.subr.mxu0 0.0
        %3674 = vmatpush1.msra.mxu0 0.0
        %3675 = vmatprep.subr.mxu0 0.0
        %3676 = vmatpush1.msra.mxu0 0.0
        %3677 = vmatprep.mubr.f32.mxu0 0.0
        %3678 = vmatmul.mubr.f32.gmra.mrb[0].mxu0 %v3611
        %v3679 = vpop.f32.mrb[0].mxu0
        %v3680 = vadd.f32 0.0, %v3679
        %v3681 = vpop.f32.mrb[0].mxu0
        %v3682 = vadd.f32 0.0, %v3681
        %3683 = vdwg.mxu0
        %3684 = vmatprep.subr.mxu0 %v3581
        %3685 = vmatpush1.msra.mxu0 %v3580
        %3686 = vmatprep.subr.mxu0 %v3585
        %3687 = vmatpush1.msra.mxu0 %v3584
        %3688 = vmatprep.subr.mxu0 %v3589
        %3689 = vmatpush1.msra.mxu0 %v3588
        %3690 = vmatprep.subr.mxu0 %v3593
        %3691 = vmatpush1.msra.mxu0 %v3592
        %3692 = vmatprep.subr.mxu0 %v3597
        %3693 = vmatpush1.msra.mxu0 %v3596
        %3694 = vmatprep.subr.mxu0 %v3601
        %3695 = vmatpush1.msra.mxu0 %v3600
        %3696 = vmatprep.subr.mxu0 %v3605
        %3697 = vmatpush1.msra.mxu0 %v3604
        %3698 = vmatprep.subr.mxu0 %v3609
        %3699 = vmatpush1.msra.mxu0 %v3608
        %3700 = vmatprep.subr.mxu0 0.0
        %3701 = vmatpush1.msra.mxu0 0.0
        %3702 = vmatprep.subr.mxu0 0.0
        %3703 = vmatpush1.msra.mxu0 0.0
        %3704 = vmatprep.subr.mxu0 0.0
        %3705 = vmatpush1.msra.mxu0 0.0
        %3706 = vmatprep.subr.mxu0 0.0
        %3707 = vmatpush1.msra.mxu0 0.0
        %3708 = vmatprep.subr.mxu0 0.0
        %3709 = vmatpush1.msra.mxu0 0.0
        %3710 = vmatprep.subr.mxu0 0.0
        %3711 = vmatpush1.msra.mxu0 0.0
        %3712 = vmatprep.subr.mxu0 0.0
        %3713 = vmatpush1.msra.mxu0 0.0
        %3714 = vmatprep.subr.mxu0 0.0
        %3715 = vmatpush1.msra.mxu0 0.0
        %3716 = vmatprep.subr.mxu0 0.0
        %3717 = vmatpush1.msra.mxu0 0.0
        %3718 = vmatprep.subr.mxu0 0.0
        %3719 = vmatpush1.msra.mxu0 0.0
        %3720 = vmatprep.subr.mxu0 0.0
        %3721 = vmatpush1.msra.mxu0 0.0
        %3722 = vmatprep.subr.mxu0 0.0
        %3723 = vmatpush1.msra.mxu0 0.0
        %3724 = vmatprep.subr.mxu0 0.0
        %3725 = vmatpush1.msra.mxu0 0.0
        %3726 = vmatprep.subr.mxu0 0.0
        %3727 = vmatpush1.msra.mxu0 0.0
        %3728 = vmatprep.subr.mxu0 0.0
        %3729 = vmatpush1.msra.mxu0 0.0
        %3730 = vmatprep.subr.mxu0 0.0
        %3731 = vmatpush1.msra.mxu0 0.0
        %3732 = vmatprep.subr.mxu0 0.0
        %3733 = vmatpush1.msra.mxu0 0.0
        %3734 = vmatprep.subr.mxu0 0.0
        %3735 = vmatpush1.msra.mxu0 0.0
        %3736 = vmatprep.subr.mxu0 0.0
        %3737 = vmatpush1.msra.mxu0 0.0
        %3738 = vmatprep.subr.mxu0 0.0
        %3739 = vmatpush1.msra.mxu0 0.0
        %3740 = vmatprep.subr.mxu0 0.0
        %3741 = vmatpush1.msra.mxu0 0.0
        %3742 = vmatprep.subr.mxu0 0.0
        %3743 = vmatpush1.msra.mxu0 0.0
        %3744 = vmatprep.subr.mxu0 0.0
        %3745 = vmatpush1.msra.mxu0 0.0
        %3746 = vmatprep.subr.mxu0 0.0
        %3747 = vmatpush1.msra.mxu0 0.0
        %3748 = vmatprep.mubr.f32.mxu0 0.0
        %3749 = vmatmul.mubr.f32.gmra.mrb[0].mxu0 %v3611
        %v3750 = vpop.f32.mrb[0].mxu0
        %v3751 = vadd.f32 0.0, %v3750
        %v3752 = vpop.f32.mrb[0].mxu0
        %v3753 = vadd.f32 0.0, %v3752
        %3754 = vdwg.mxu0
        %v3755 = vadd.f32 %v3569, %v3680
        %v3756 = vadd.f32 %v3570, %v3682
        %v3757 = vadd.f32 %v3571, %v3751
        %v3758 = vadd.f32 %v3572, %v3753
        %v3759 = vrot.slane %v2649, 6
        %v3761 = vrot.slane %v2650, 5
        %v3763 = vsel %vm2654, %v3759, %v3761
        %v3764 = vld [vmem:[%s227 + $0x600] sm:$0xff]
        %v3765 = vld [vmem:[%s227 + $0x608] sm:$0xff]
        %v3766 = vld [vmem:[%s227 + $0x610] sm:$0xff]
        %v3767 = vld [vmem:[%s227 + $0x618] sm:$0xff]
        %v3768 = vld [vmem:[%s227 + $0x620] sm:$0xff]
        %v3769 = vld [vmem:[%s227 + $0x628] sm:$0xff]
        %v3770 = vld [vmem:[%s227 + $0x630] sm:$0xff]
        %v3771 = vld [vmem:[%s227 + $0x638] sm:$0xff]
        %v3772 = vld [vmem:[%s227 + $0x640] sm:$0xff]
        %v3773 = vld [vmem:[%s227 + $0x648] sm:$0xff]
        %v3774 = vld [vmem:[%s227 + $0x650] sm:$0xff]
        %v3775 = vld [vmem:[%s227 + $0x658] sm:$0xff]
        %v3776 = vld [vmem:[%s227 + $0x660] sm:$0xff]
        %v3777 = vld [vmem:[%s227 + $0x668] sm:$0xff]
        %v3778 = vld [vmem:[%s227 + $0x670] sm:$0xff]
        %v3779 = vld [vmem:[%s227 + $0x678] sm:$0xff]
        %v3780 = vld [vmem:[%s227 + $0x680] sm:$0xff]
        %v3781 = vld [vmem:[%s227 + $0x688] sm:$0xff]
        %v3782 = vld [vmem:[%s227 + $0x690] sm:$0xff]
        %v3783 = vld [vmem:[%s227 + $0x698] sm:$0xff]
        %v3784 = vld [vmem:[%s227 + $0x6a0] sm:$0xff]
        %v3785 = vld [vmem:[%s227 + $0x6a8] sm:$0xff]
        %v3786 = vld [vmem:[%s227 + $0x6b0] sm:$0xff]
        %v3787 = vld [vmem:[%s227 + $0x6b8] sm:$0xff]
        %v3788 = vld [vmem:[%s227 + $0x6c0] sm:$0xff]
        %v3789 = vld [vmem:[%s227 + $0x6c8] sm:$0xff]
        %v3790 = vld [vmem:[%s227 + $0x6d0] sm:$0xff]
        %v3791 = vld [vmem:[%s227 + $0x6d8] sm:$0xff]
        %v3792 = vld [vmem:[%s227 + $0x6e0] sm:$0xff]
        %v3793 = vld [vmem:[%s227 + $0x6e8] sm:$0xff]
        %v3794 = vld [vmem:[%s227 + $0x6f0] sm:$0xff]
        %v3795 = vld [vmem:[%s227 + $0x6f8] sm:$0xff]
        %v3797 = vsel %vm2724, %v3763, 0
        %3799 = vmatprep.subr.mxu0 %v3765
        %3800 = vmatpush1.msra.mxu0 %v3764
        %3801 = vmatprep.subr.mxu0 %v3769
        %3802 = vmatpush1.msra.mxu0 %v3768
        %3803 = vmatprep.subr.mxu0 %v3773
        %3804 = vmatpush1.msra.mxu0 %v3772
        %3805 = vmatprep.subr.mxu0 %v3777
        %3806 = vmatpush1.msra.mxu0 %v3776
        %3807 = vmatprep.subr.mxu0 %v3781
        %3808 = vmatpush1.msra.mxu0 %v3780
        %3809 = vmatprep.subr.mxu0 %v3785
        %3810 = vmatpush1.msra.mxu0 %v3784
        %3811 = vmatprep.subr.mxu0 %v3789
        %3812 = vmatpush1.msra.mxu0 %v3788
        %3813 = vmatprep.subr.mxu0 %v3793
        %3814 = vmatpush1.msra.mxu0 %v3792
        %3815 = vmatprep.subr.mxu0 0.0
        %3816 = vmatpush1.msra.mxu0 0.0
        %3817 = vmatprep.subr.mxu0 0.0
        %3818 = vmatpush1.msra.mxu0 0.0
        %3819 = vmatprep.subr.mxu0 0.0
        %3820 = vmatpush1.msra.mxu0 0.0
        %3821 = vmatprep.subr.mxu0 0.0
        %3822 = vmatpush1.msra.mxu0 0.0
        %3823 = vmatprep.subr.mxu0 0.0
        %3824 = vmatpush1.msra.mxu0 0.0
        %3825 = vmatprep.subr.mxu0 0.0
        %3826 = vmatpush1.msra.mxu0 0.0
        %3827 = vmatprep.subr.mxu0 0.0
        %3828 = vmatpush1.msra.mxu0 0.0
        %3829 = vmatprep.subr.mxu0 0.0
        %3830 = vmatpush1.msra.mxu0 0.0
        %3831 = vmatprep.subr.mxu0 0.0
        %3832 = vmatpush1.msra.mxu0 0.0
        %3833 = vmatprep.subr.mxu0 0.0
        %3834 = vmatpush1.msra.mxu0 0.0
        %3835 = vmatprep.subr.mxu0 0.0
        %3836 = vmatpush1.msra.mxu0 0.0
        %3837 = vmatprep.subr.mxu0 0.0
        %3838 = vmatpush1.msra.mxu0 0.0
        %3839 = vmatprep.subr.mxu0 0.0
        %3840 = vmatpush1.msra.mxu0 0.0
        %3841 = vmatprep.subr.mxu0 0.0
        %3842 = vmatpush1.msra.mxu0 0.0
        %3843 = vmatprep.subr.mxu0 0.0
        %3844 = vmatpush1.msra.mxu0 0.0
        %3845 = vmatprep.subr.mxu0 0.0
        %3846 = vmatpush1.msra.mxu0 0.0
        %3847 = vmatprep.subr.mxu0 0.0
        %3848 = vmatpush1.msra.mxu0 0.0
        %3849 = vmatprep.subr.mxu0 0.0
        %3850 = vmatpush1.msra.mxu0 0.0
        %3851 = vmatprep.subr.mxu0 0.0
        %3852 = vmatpush1.msra.mxu0 0.0
        %3853 = vmatprep.subr.mxu0 0.0
        %3854 = vmatpush1.msra.mxu0 0.0
        %3855 = vmatprep.subr.mxu0 0.0
        %3856 = vmatpush1.msra.mxu0 0.0
        %3857 = vmatprep.subr.mxu0 0.0
        %3858 = vmatpush1.msra.mxu0 0.0
        %3859 = vmatprep.subr.mxu0 0.0
        %3860 = vmatpush1.msra.mxu0 0.0
        %3861 = vmatprep.subr.mxu0 0.0
        %3862 = vmatpush1.msra.mxu0 0.0
        %3863 = vmatprep.mubr.f32.mxu0 0.0
        %3864 = vmatmul.mubr.f32.gmra.mrb[0].mxu0 %v3797
        %v3865 = vpop.f32.mrb[0].mxu0
        %v3866 = vadd.f32 0.0, %v3865
        %v3867 = vpop.f32.mrb[0].mxu0
        %v3868 = vadd.f32 0.0, %v3867
        %3869 = vdwg.mxu0
        %3870 = vmatprep.subr.mxu0 %v3767
        %3871 = vmatpush1.msra.mxu0 %v3766
        %3872 = vmatprep.subr.mxu0 %v3771
        %3873 = vmatpush1.msra.mxu0 %v3770
        %3874 = vmatprep.subr.mxu0 %v3775
        %3875 = vmatpush1.msra.mxu0 %v3774
        %3876 = vmatprep.subr.mxu0 %v3779
        %3877 = vmatpush1.msra.mxu0 %v3778
        %3878 = vmatprep.subr.mxu0 %v3783
        %3879 = vmatpush1.msra.mxu0 %v3782
        %3880 = vmatprep.subr.mxu0 %v3787
        %3881 = vmatpush1.msra.mxu0 %v3786
        %3882 = vmatprep.subr.mxu0 %v3791
        %3883 = vmatpush1.msra.mxu0 %v3790
        %3884 = vmatprep.subr.mxu0 %v3795
        %3885 = vmatpush1.msra.mxu0 %v3794
        %3886 = vmatprep.subr.mxu0 0.0
        %3887 = vmatpush1.msra.mxu0 0.0
        %3888 = vmatprep.subr.mxu0 0.0
        %3889 = vmatpush1.msra.mxu0 0.0
        %3890 = vmatprep.subr.mxu0 0.0
        %3891 = vmatpush1.msra.mxu0 0.0
        %3892 = vmatprep.subr.mxu0 0.0
        %3893 = vmatpush1.msra.mxu0 0.0
        %3894 = vmatprep.subr.mxu0 0.0
        %3895 = vmatpush1.msra.mxu0 0.0
        %3896 = vmatprep.subr.mxu0 0.0
        %3897 = vmatpush1.msra.mxu0 0.0
        %3898 = vmatprep.subr.mxu0 0.0
        %3899 = vmatpush1.msra.mxu0 0.0
        %3900 = vmatprep.subr.mxu0 0.0
        %3901 = vmatpush1.msra.mxu0 0.0
        %3902 = vmatprep.subr.mxu0 0.0
        %3903 = vmatpush1.msra.mxu0 0.0
        %3904 = vmatprep.subr.mxu0 0.0
        %3905 = vmatpush1.msra.mxu0 0.0
        %3906 = vmatprep.subr.mxu0 0.0
        %3907 = vmatpush1.msra.mxu0 0.0
        %3908 = vmatprep.subr.mxu0 0.0
        %3909 = vmatpush1.msra.mxu0 0.0
        %3910 = vmatprep.subr.mxu0 0.0
        %3911 = vmatpush1.msra.mxu0 0.0
        %3912 = vmatprep.subr.mxu0 0.0
        %3913 = vmatpush1.msra.mxu0 0.0
        %3914 = vmatprep.subr.mxu0 0.0
        %3915 = vmatpush1.msra.mxu0 0.0
        %3916 = vmatprep.subr.mxu0 0.0
        %3917 = vmatpush1.msra.mxu0 0.0
        %3918 = vmatprep.subr.mxu0 0.0
        %3919 = vmatpush1.msra.mxu0 0.0
        %3920 = vmatprep.subr.mxu0 0.0
        %3921 = vmatpush1.msra.mxu0 0.0
        %3922 = vmatprep.subr.mxu0 0.0
        %3923 = vmatpush1.msra.mxu0 0.0
        %3924 = vmatprep.subr.mxu0 0.0
        %3925 = vmatpush1.msra.mxu0 0.0
        %3926 = vmatprep.subr.mxu0 0.0
        %3927 = vmatpush1.msra.mxu0 0.0
        %3928 = vmatprep.subr.mxu0 0.0
        %3929 = vmatpush1.msra.mxu0 0.0
        %3930 = vmatprep.subr.mxu0 0.0
        %3931 = vmatpush1.msra.mxu0 0.0
        %3932 = vmatprep.subr.mxu0 0.0
        %3933 = vmatpush1.msra.mxu0 0.0
        %3934 = vmatprep.mubr.f32.mxu0 0.0
        %3935 = vmatmul.mubr.f32.gmra.mrb[0].mxu0 %v3797
        %v3936 = vpop.f32.mrb[0].mxu0
        %v3937 = vadd.f32 0.0, %v3936
        %v3938 = vpop.f32.mrb[0].mxu0
        %v3939 = vadd.f32 0.0, %v3938
        %3940 = vdwg.mxu0
        %v3941 = vadd.f32 %v3755, %v3866
        %v3942 = vadd.f32 %v3756, %v3868
        %v3943 = vadd.f32 %v3757, %v3937
        %v3944 = vadd.f32 %v3758, %v3939
        %v3945 = vrot.slane %v2649, 7
        %v3947 = vrot.slane %v2650, 6
        %v3949 = vsel %vm2654, %v3945, %v3947
        %v3950 = vld [vmem:[%s227 + $0x700] sm:$0xff]
        %v3951 = vld [vmem:[%s227 + $0x708] sm:$0xff]
        %v3952 = vld [vmem:[%s227 + $0x710] sm:$0xff]
        %v3953 = vld [vmem:[%s227 + $0x718] sm:$0xff]
        %v3954 = vld [vmem:[%s227 + $0x720] sm:$0xff]
        %v3955 = vld [vmem:[%s227 + $0x728] sm:$0xff]
        %v3956 = vld [vmem:[%s227 + $0x730] sm:$0xff]
        %v3957 = vld [vmem:[%s227 + $0x738] sm:$0xff]
        %v3958 = vld [vmem:[%s227 + $0x740] sm:$0xff]
        %v3959 = vld [vmem:[%s227 + $0x748] sm:$0xff]
        %v3960 = vld [vmem:[%s227 + $0x750] sm:$0xff]
        %v3961 = vld [vmem:[%s227 + $0x758] sm:$0xff]
        %v3962 = vld [vmem:[%s227 + $0x760] sm:$0xff]
        %v3963 = vld [vmem:[%s227 + $0x768] sm:$0xff]
        %v3964 = vld [vmem:[%s227 + $0x770] sm:$0xff]
        %v3965 = vld [vmem:[%s227 + $0x778] sm:$0xff]
        %v3966 = vld [vmem:[%s227 + $0x780] sm:$0xff]
        %v3967 = vld [vmem:[%s227 + $0x788] sm:$0xff]
        %v3968 = vld [vmem:[%s227 + $0x790] sm:$0xff]
        %v3969 = vld [vmem:[%s227 + $0x798] sm:$0xff]
        %v3970 = vld [vmem:[%s227 + $0x7a0] sm:$0xff]
        %v3971 = vld [vmem:[%s227 + $0x7a8] sm:$0xff]
        %v3972 = vld [vmem:[%s227 + $0x7b0] sm:$0xff]
        %v3973 = vld [vmem:[%s227 + $0x7b8] sm:$0xff]
        %v3974 = vld [vmem:[%s227 + $0x7c0] sm:$0xff]
        %v3975 = vld [vmem:[%s227 + $0x7c8] sm:$0xff]
        %v3976 = vld [vmem:[%s227 + $0x7d0] sm:$0xff]
        %v3977 = vld [vmem:[%s227 + $0x7d8] sm:$0xff]
        %v3978 = vld [vmem:[%s227 + $0x7e0] sm:$0xff]
        %v3979 = vld [vmem:[%s227 + $0x7e8] sm:$0xff]
        %v3980 = vld [vmem:[%s227 + $0x7f0] sm:$0xff]
        %v3981 = vld [vmem:[%s227 + $0x7f8] sm:$0xff]
        %v3983 = vsel %vm2724, %v3949, 0
        %3985 = vmatprep.subr.mxu0 %v3951
        %3986 = vmatpush1.msra.mxu0 %v3950
        %3987 = vmatprep.subr.mxu0 %v3955
        %3988 = vmatpush1.msra.mxu0 %v3954
        %3989 = vmatprep.subr.mxu0 %v3959
        %3990 = vmatpush1.msra.mxu0 %v3958
        %3991 = vmatprep.subr.mxu0 %v3963
        %3992 = vmatpush1.msra.mxu0 %v3962
        %3993 = vmatprep.subr.mxu0 %v3967
        %3994 = vmatpush1.msra.mxu0 %v3966
        %3995 = vmatprep.subr.mxu0 %v3971
        %3996 = vmatpush1.msra.mxu0 %v3970
        %3997 = vmatprep.subr.mxu0 %v3975
        %3998 = vmatpush1.msra.mxu0 %v3974
        %3999 = vmatprep.subr.mxu0 %v3979
        %4000 = vmatpush1.msra.mxu0 %v3978
        %4001 = vmatprep.subr.mxu0 0.0
        %4002 = vmatpush1.msra.mxu0 0.0
        %4003 = vmatprep.subr.mxu0 0.0
        %4004 = vmatpush1.msra.mxu0 0.0
        %4005 = vmatprep.subr.mxu0 0.0
        %4006 = vmatpush1.msra.mxu0 0.0
        %4007 = vmatprep.subr.mxu0 0.0
        %4008 = vmatpush1.msra.mxu0 0.0
        %4009 = vmatprep.subr.mxu0 0.0
        %4010 = vmatpush1.msra.mxu0 0.0
        %4011 = vmatprep.subr.mxu0 0.0
        %4012 = vmatpush1.msra.mxu0 0.0
        %4013 = vmatprep.subr.mxu0 0.0
        %4014 = vmatpush1.msra.mxu0 0.0
        %4015 = vmatprep.subr.mxu0 0.0
        %4016 = vmatpush1.msra.mxu0 0.0
        %4017 = vmatprep.subr.mxu0 0.0
        %4018 = vmatpush1.msra.mxu0 0.0
        %4019 = vmatprep.subr.mxu0 0.0
        %4020 = vmatpush1.msra.mxu0 0.0
        %4021 = vmatprep.subr.mxu0 0.0
        %4022 = vmatpush1.msra.mxu0 0.0
        %4023 = vmatprep.subr.mxu0 0.0
        %4024 = vmatpush1.msra.mxu0 0.0
        %4025 = vmatprep.subr.mxu0 0.0
        %4026 = vmatpush1.msra.mxu0 0.0
        %4027 = vmatprep.subr.mxu0 0.0
        %4028 = vmatpush1.msra.mxu0 0.0
        %4029 = vmatprep.subr.mxu0 0.0
        %4030 = vmatpush1.msra.mxu0 0.0
        %4031 = vmatprep.subr.mxu0 0.0
        %4032 = vmatpush1.msra.mxu0 0.0
        %4033 = vmatprep.subr.mxu0 0.0
        %4034 = vmatpush1.msra.mxu0 0.0
        %4035 = vmatprep.subr.mxu0 0.0
        %4036 = vmatpush1.msra.mxu0 0.0
        %4037 = vmatprep.subr.mxu0 0.0
        %4038 = vmatpush1.msra.mxu0 0.0
        %4039 = vmatprep.subr.mxu0 0.0
        %4040 = vmatpush1.msra.mxu0 0.0
        %4041 = vmatprep.subr.mxu0 0.0
        %4042 = vmatpush1.msra.mxu0 0.0
        %4043 = vmatprep.subr.mxu0 0.0
        %4044 = vmatpush1.msra.mxu0 0.0
        %4045 = vmatprep.subr.mxu0 0.0
        %4046 = vmatpush1.msra.mxu0 0.0
        %4047 = vmatprep.subr.mxu0 0.0
        %4048 = vmatpush1.msra.mxu0 0.0
        %4049 = vmatprep.mubr.f32.mxu0 0.0
        %4050 = vmatmul.mubr.f32.gmra.mrb[0].mxu0 %v3983
        %v4051 = vpop.f32.mrb[0].mxu0
        %v4052 = vadd.f32 0.0, %v4051
        %v4053 = vpop.f32.mrb[0].mxu0
        %v4054 = vadd.f32 0.0, %v4053
        %4055 = vdwg.mxu0
        %4056 = vmatprep.subr.mxu0 %v3953
        %4057 = vmatpush1.msra.mxu0 %v3952
        %4058 = vmatprep.subr.mxu0 %v3957
        %4059 = vmatpush1.msra.mxu0 %v3956
        %4060 = vmatprep.subr.mxu0 %v3961
        %4061 = vmatpush1.msra.mxu0 %v3960
        %4062 = vmatprep.subr.mxu0 %v3965
        %4063 = vmatpush1.msra.mxu0 %v3964
        %4064 = vmatprep.subr.mxu0 %v3969
        %4065 = vmatpush1.msra.mxu0 %v3968
        %4066 = vmatprep.subr.mxu0 %v3973
        %4067 = vmatpush1.msra.mxu0 %v3972
        %4068 = vmatprep.subr.mxu0 %v3977
        %4069 = vmatpush1.msra.mxu0 %v3976
        %4070 = vmatprep.subr.mxu0 %v3981
        %4071 = vmatpush1.msra.mxu0 %v3980
        %4072 = vmatprep.subr.mxu0 0.0
        %4073 = vmatpush1.msra.mxu0 0.0
        %4074 = vmatprep.subr.mxu0 0.0
        %4075 = vmatpush1.msra.mxu0 0.0
        %4076 = vmatprep.subr.mxu0 0.0
        %4077 = vmatpush1.msra.mxu0 0.0
        %4078 = vmatprep.subr.mxu0 0.0
        %4079 = vmatpush1.msra.mxu0 0.0
        %4080 = vmatprep.subr.mxu0 0.0
        %4081 = vmatpush1.msra.mxu0 0.0
        %4082 = vmatprep.subr.mxu0 0.0
        %4083 = vmatpush1.msra.mxu0 0.0
        %4084 = vmatprep.subr.mxu0 0.0
        %4085 = vmatpush1.msra.mxu0 0.0
        %4086 = vmatprep.subr.mxu0 0.0
        %4087 = vmatpush1.msra.mxu0 0.0
        %4088 = vmatprep.subr.mxu0 0.0
        %4089 = vmatpush1.msra.mxu0 0.0
        %4090 = vmatprep.subr.mxu0 0.0
        %4091 = vmatpush1.msra.mxu0 0.0
        %4092 = vmatprep.subr.mxu0 0.0
        %4093 = vmatpush1.msra.mxu0 0.0
        %4094 = vmatprep.subr.mxu0 0.0
        %4095 = vmatpush1.msra.mxu0 0.0
        %4096 = vmatprep.subr.mxu0 0.0
        %4097 = vmatpush1.msra.mxu0 0.0
        %4098 = vmatprep.subr.mxu0 0.0
        %4099 = vmatpush1.msra.mxu0 0.0
        %4100 = vmatprep.subr.mxu0 0.0
        %4101 = vmatpush1.msra.mxu0 0.0
        %4102 = vmatprep.subr.mxu0 0.0
        %4103 = vmatpush1.msra.mxu0 0.0
        %4104 = vmatprep.subr.mxu0 0.0
        %4105 = vmatpush1.msra.mxu0 0.0
        %4106 = vmatprep.subr.mxu0 0.0
        %4107 = vmatpush1.msra.mxu0 0.0
        %4108 = vmatprep.subr.mxu0 0.0
        %4109 = vmatpush1.msra.mxu0 0.0
        %4110 = vmatprep.subr.mxu0 0.0
        %4111 = vmatpush1.msra.mxu0 0.0
        %4112 = vmatprep.subr.mxu0 0.0
        %4113 = vmatpush1.msra.mxu0 0.0
        %4114 = vmatprep.subr.mxu0 0.0
        %4115 = vmatpush1.msra.mxu0 0.0
        %4116 = vmatprep.subr.mxu0 0.0
        %4117 = vmatpush1.msra.mxu0 0.0
        %4118 = vmatprep.subr.mxu0 0.0
        %4119 = vmatpush1.msra.mxu0 0.0
        %4120 = vmatprep.mubr.f32.mxu0 0.0
        %4121 = vmatmul.mubr.f32.gmra.mrb[0].mxu0 %v3983
        %v4122 = vpop.f32.mrb[0].mxu0
        %v4123 = vadd.f32 0.0, %v4122
        %v4124 = vpop.f32.mrb[0].mxu0
        %v4125 = vadd.f32 0.0, %v4124
        %4126 = vdwg.mxu0
        %v4127 = vadd.f32 %v3941, %v4052
        %v4128 = vadd.f32 %v3942, %v4054
        %v4129 = vadd.f32 %v3943, %v4123
        %v4130 = vadd.f32 %v3944, %v4125
        %v4131 = vld [vmem:[%s236] sm:$0xf]
        %v4133 = vlaneseq
        %v4134 = vshrl.u32 %v4133, 7
        %v4135 = vsub.s32 0, %v4134
        %v4136 = vrot.slane %v4131, %v4135
        %v4137 = vlaneseq
        %v4138 = vshrl.u32 %v4137, 7
        %v4139 = vsub.s32 1, %v4138
        %v4140 = vrot.slane %v4131, %v4139
        %v4141 = vlaneseq
        %v4142 = vshrl.u32 %v4141, 7
        %v4143 = vsub.s32 2, %v4142
        %v4144 = vrot.slane %v4131, %v4143
        %v4145 = vlaneseq
        %v4146 = vshrl.u32 %v4145, 7
        %v4147 = vsub.s32 3, %v4146
        %v4148 = vrot.slane %v4131, %v4147
        %v4153 = vadd.f32 %v4127, %v4136
        %v4154 = vadd.f32 %v4128, %v4140
        %v4155 = vadd.f32 %v4129, %v4144
        %v4156 = vadd.f32 %v4130, %v4148
        %v4161 = vcombine.low %v4153, %v4154
        %v4162 = vcombine.low %v4155, %v4156
        %v4164 = vunpack.c.l.s4 1983009808
        %v4165 = vunpack.c.0.s8 %v4164
        %v4166 = vlaneseq
        %v4167 = vshrl.u32 %v4166, 7
        %v4168 = vsub.s32 %v4165, %v4167
        %v4169 = vrot.slane %v4161, %v4168
        %v4171 = vunpack.c.l.s4 1983009808
        %v4172 = vunpack.c.0.s8 %v4171
        %v4173 = vlaneseq
        %v4174 = vshrl.u32 %v4173, 7
        %v4175 = vsub.s32 %v4172, %v4174
        %v4176 = vrot.slane %v4162, %v4175
        %v4177 = vcombine.low %v4169, %v4176
        %4179 = vst [vmem:[%s265] sm:$0xff] %v4177
        %s4180 = sand.u32 %s124, 1
        %s4181 = scalar_lea.sflag [#allocation5], %s4180
        %s4182 = sand.u32 %s124, 1
        %s4183 = smul.addr %s4182, 8
        %s4184 = scalar_lea.vmem [#allocation9], %s4183
        // Predicated region
        $region53: #{tpu_custom_call.1} parent=35 // pred_check
          %p4185 = pneg %p134
        $region54: #{tpu_custom_call.1} parent=35 // pred_check_branch
          %4187 = sbr.rel (%p4185) target = $region56
        $region55: #{tpu_custom_call.1} parent=35 // pred_region
          %s4188 = smul.u32 4, %s22
          %s4190 = ssub.s32 128, 128
          %4191 = vsyncadd %s4181, %s4190
          %s4192 = smul.addr %s4188, 32
          %s4193 = scalar_lea.hbm %s4, %s4192
          %s4195 = sshll.u32 %s4184, 4
          %s4196 = int_to_ptr.vmem [resolvable:$true] %s4195
          %4198 = dma.vmem_to_hbm [thread:$0]  %s4196, 128, %s4193, %s4181
        $region56: #{tpu_custom_call.1} parent=35 // pred_fallthru
          _
      $region36: #{tpu_custom_call.1} parent=5 // pred_fallthru
        _
      %p4199 = scmp.le.s32.totalorder 2, %s17
      // Predicated region
      $region57: #{tpu_custom_call.1} parent=5 // pred_check
        %p4200 = pneg %p4199
      $region58: #{tpu_custom_call.1} parent=5 // pred_check_branch
        %4202 = sbr.rel (%p4200) target = $region60
      $region59: #{tpu_custom_call.1} parent=5 // pred_region
        %s4203 = ssub.s32 %s17, 2
        // Predicated region
        $region61: #{tpu_custom_call.1} parent=59 // pred_check
          %p4204 = pneg %p140
        $region62: #{tpu_custom_call.1} parent=59 // pred_check_branch
          %4206 = sbr.rel (%p4204) target = $region64
        $region63: #{tpu_custom_call.1} parent=59 // pred_region
          %s4207 = sand.u32 %s125, 1
          %s4208 = scalar_lea.sflag [#allocation5], %s4207
          %s4209 = sand.u32 %s125, 1
          %s4210 = smul.addr %s4209, 8
          %s4211 = scalar_lea.vmem [#allocation9], %s4210
          %4212 = dma.done %s4208, 128
        $region64: #{tpu_custom_call.1} parent=59 // pred_fallthru
          _
      $region60: #{tpu_custom_call.1} parent=5 // pred_fallthru
        _
    $region6: #{tpu_custom_call.1} parent=1 // loop_footer
      %s21 = sadd.s32 1, %s17
    $region7: #{tpu_custom_call.1} parent=1 // loop_footer_branch
      %16 = sbr.rel target = $region3
    $region8: #{tpu_custom_call.1} parent=1 // loop_exit
      _
    %4213 = vsyncpa [#allocation4], 1
    %s4214 = scalar_lea.sflag [#allocation4], 1
    %4215 = vsyncpa %s4214, 1
    %4216 = vsyncpa [#allocation7], 1
    %s4217 = scalar_lea.sflag [#allocation7], 1
    %4218 = vsyncpa %s4217, 1
    %4219 = vsyncpa [#allocation5], 1
    %s4220 = scalar_lea.sflag [#allocation5], 1
    %4221 = vsyncpa %s4220, 1

</llo_original>
